<compile_context>
chip_gen: v6e
topology: v6e:2x2x1
jax: 0.10.0
libtpu: 0.0.40
codegen_flags: <defaults>
</compile_context>

<pallas_src>
import numpy as np
import jax
import jax.numpy as jnp
from jax import lax
from jax.experimental import pallas as pl
from jax.experimental.pallas import tpu as pltpu

N_PHASE0 = 16      # 2 ** (number of maxpool stages)
PHASE_LEN = 256    # L / 16 == fc1 in_features
CONV_SHAPES = [(2, 1), (4, 2), (2, 4), (1, 2)]          # (C_out, C_in) per conv stage
FC_HEAD_DIMS = [(256, 64), (64, 32), (32, 16), (16, 8), (8, 1)]


# ----------------------------------------------------------------------------- kernel
def ua_cnn_kernel(x_ref, cp_ref, w1_ref, wstack_ref, bpack_ref, vec_ref, fc_ref):
    bt = x_ref.shape[1]          # batch tile
    L = x_ref.shape[2]           # 256
    f32 = jnp.float32

    # Hoisted lane masks: zero the lane that wraps around in a circular roll so the
    # polyphase boundary matches zero-padded conv semantics.
    lane = lax.broadcasted_iota(jnp.int32, (bt, L), 1)
    not_first = (lane > 0).astype(f32)        # zero lane 0
    not_last = (lane < L - 1).astype(f32)     # zero lane L-1

    def shift_prev(a):   # out[:, j] = a[:, j-1], zero at j == 0
        return pltpu.roll(a, shift=1, axis=1) * not_first

    def shift_next(a):   # out[:, j] = a[:, j+1], zero at j == L-1
        return pltpu.roll(a, shift=L - 1, axis=1) * not_last

    def conv_relu_pool(phases, c_out, c_in, base):
        # phases: list (len P) of lists (len c_in) of (bt, L) tiles.
        # SMEM layout per stage: [bias(c_out)] + [w[co][ci][k]] row-major.
        P = len(phases)
        # Hoist scalar reads / bias broadcasts out of the phase loop.
        w = [[[cp_ref[base + c_out + (co * c_in + ci) * 3 + k] for k in range(3)]
              for ci in range(c_in)] for co in range(c_out)]
        bias_v = [jnp.full((bt, L), cp_ref[base + co], f32) for co in range(c_out)]
        # Boundary neighbour phases across the polyphase fold (computed once per stage).
        prev_last = [shift_prev(phases[P - 1][ci]) for ci in range(c_in)]
        next_first = [shift_next(phases[0][ci]) for ci in range(c_in)]

        def taps_for(p):
            return (prev_last if p == 0 else phases[p - 1],          # signal[t-1]
                    phases[p],                                       # signal[t]
                    next_first if p == P - 1 else phases[p + 1])     # signal[t+1]

        def accum(p, co):
            taps = taps_for(p)
            acc = bias_v[co]
            for k in range(3):
                for ci in range(c_in):
                    acc = acc + w[co][ci][k] * taps[k][ci]           # VPU FMA
            return acc

        # Fused pool: compute the phase pair (2q, 2q+1) and immediately reduce it.
        # relu(max(a, b)) == max(max(a, b), 0)  (ReLU is monotone), so only one extra
        # max per output tile and at most two pre-pool accumulators live at a time.
        out = []
        for q in range(P // 2):
            row = []
            for co in range(c_out):
                a = accum(2 * q, co)
                b = accum(2 * q + 1, co)
                row.append(jnp.maximum(jnp.maximum(a, b), 0.0))      # pool + ReLU
            out.append(row)
        return out

    # initial phases: 16 phases x 1 channel, each (bt, 256)
    phases = [[x_ref[p]] for p in range(N_PHASE0)]
    base = 0
    for c_out, c_in in CONV_SHAPES:
        phases = conv_relu_pool(phases, c_out, c_in, base)
        base += c_out + c_out * c_in * 3

    v = phases[0][0]                                   # (bt, 256) == out_vector rows
    vec_ref[...] = v.astype(vec_ref.dtype)

    # Fused two-head MLP: 5 block-diagonal 128-wide matmuls, [head | head_var] in lanes.
    bpack = bpack_ref[...]                             # (8, 128); row r = bias of layer r+1
    h = jnp.dot(v, w1_ref[...], preferred_element_type=f32) + bpack[0:1, :]
    h = jnp.maximum(h, 0.0)
    for j in range(4):
        h = jnp.dot(h, wstack_ref[j], preferred_element_type=f32) + bpack[j + 1:j + 2, :]
        if j < 3:
            h = jnp.maximum(h, 0.0)
    fc_ref[...] = h.astype(fc_ref.dtype)               # lane 0 = out, lane 1 = out_var


# ----------------------------------------------------------------------------- packing helpers
def _pack_conv_params(p):
    pieces = []
    for wn, bn in [("w1", "b1"), ("w2", "b2"), ("w3", "b3"), ("w4", "b4")]:
        pieces.append(p[bn].reshape(-1).astype(jnp.float32))
        pieces.append(p[wn].reshape(-1).astype(jnp.float32))   # row-major (co, ci, k)
    return jnp.concatenate(pieces)


def _pack_fc_params(p):
    fc, fcv = p["fc"], p["fc_var"]
    # layer 1: [fc1 | fc1_var] -> (256, 128)
    W1 = jnp.concatenate([fc[0][0].T, fcv[0][0].T], axis=1).astype(jnp.float32)
    b_list = [jnp.concatenate([fc[0][1], fcv[0][1]]).astype(jnp.float32)]        # (128,)
    Ws = []
    for j in range(4):
        (Wa, ba), (Wb, bb) = fc[j + 1], fcv[j + 1]
        no, ni = Wa.shape                      # torch layout (out_features, in_features)
        W = jnp.zeros((128, 128), jnp.float32)
        W = W.at[0:ni, 0:no].set(Wa.T).at[ni:2 * ni, no:2 * no].set(Wb.T)
        Ws.append(W)
        b = jnp.zeros((128,), jnp.float32).at[0:no].set(ba).at[no:2 * no].set(bb)
        b_list.append(b)
    wstack = jnp.stack(Ws)                                                       # (4, 128, 128)
    bpack = jnp.zeros((8, 128), jnp.float32).at[0:5, :].set(jnp.stack(b_list))   # (8, 128)
    return W1, wstack, bpack


# ----------------------------------------------------------------------------- wrapper
def ua_cnn_forward(x, p, b_tile=None):
    B, C_in, L = x.shape
    assert C_in == 1 and L == N_PHASE0 * PHASE_LEN
    if b_tile is None:
        # Big tiles amortize per-step overhead and fill MXU-M; cap at 128 so the
        # double-buffered x tile + spill scratch stays well inside 32 MiB scoped VMEM.
        b_tile = min(128, max(8, int(pl.next_power_of_2(B))))
        # Keep >= 2 grid steps whenever possible so ("parallel",) actually shards the
        # batch across both v7x TensorCores (no effect on v5e/v6e).
        while b_tile > 8 and pl.cdiv(B, b_tile) < 2:
            b_tile //= 2
    b_pad = pl.cdiv(B, b_tile) * b_tile

    # Polyphase fold (pure-JAX glue, one extra HBM pass): x[b, 0, i*16+p] -> x_ph[p, b, i].
    x_ph = x.reshape(B, PHASE_LEN, N_PHASE0).transpose(2, 0, 1).astype(jnp.float32)
    if b_pad != B:
        x_ph = jnp.pad(x_ph, ((0, 0), (0, b_pad - B), (0, 0)))

    cp = _pack_conv_params(p)                 # small SMEM scalar table (69 floats)
    W1, wstack, bpack = _pack_fc_params(p)

    grid = (b_pad // b_tile,)
    in_specs = [
        pl.BlockSpec((N_PHASE0, b_tile, PHASE_LEN), lambda i: (0, i, 0)),
        pl.BlockSpec(memory_space=pltpu.MemorySpace.SMEM),
        pl.BlockSpec((PHASE_LEN, 128), lambda i: (0, 0)),
        pl.BlockSpec((4, 128, 128), lambda i: (0, 0, 0)),
        pl.BlockSpec((8, 128), lambda i: (0, 0)),
    ]
    out_specs = (
        pl.BlockSpec((b_tile, PHASE_LEN), lambda i: (i, 0)),
        pl.BlockSpec((b_tile, 128), lambda i: (i, 0)),
    )
    out_shape = (
        jax.ShapeDtypeStruct((b_pad, PHASE_LEN), jnp.float32),
        jax.ShapeDtypeStruct((b_pad, 128), jnp.float32),
    )

    fn = pl.pallas_call(
        ua_cnn_kernel,
        out_shape=out_shape,
        grid_spec=pltpu.PrefetchScalarGridSpec(
            num_scalar_prefetch=0, grid=grid, in_specs=in_specs, out_specs=out_specs),
        compiler_params=pltpu.CompilerParams(
            dimension_semantics=("parallel",),
            vmem_limit_bytes=32 * 1024 * 1024),
    )
    vec_res, fc_res = fn(x_ph, cp, W1, wstack, bpack)

    out_vec = vec_res[:B].reshape(B, 1, PHASE_LEN)
    out = fc_res[:B, 0].reshape(B, 1, 1)
    out_var = fc_res[:B, 1].reshape(B, 1, 1)
    return out, out_vec, out_var


# ----------------------------------------------------------------------------- reference
def ref_forward(x, p):
    prec = lax.Precision.HIGHEST

    def conv1d(h, w, b):
        y = lax.conv_general_dilated(h, w, window_strides=(1,), padding=[(1, 1)],
                                     dimension_numbers=("NCH", "OIH", "NCH"),
                                     precision=prec)
        return y + b[None, :, None]

    def pool(h):
        B, C, L = h.shape
        return h.reshape(B, C, L // 2, 2).max(axis=-1)

    h = pool(jax.nn.relu(conv1d(x, p["w1"], p["b1"])))
    h = pool(jax.nn.relu(conv1d(h, p["w2"], p["b2"])))
    h = pool(jax.nn.relu(conv1d(h, p["w3"], p["b3"])))
    out_vec = pool(jax.nn.relu(conv1d(h, p["w4"], p["b4"])))

    def mlp(v, layers):
        h = v
        for i, (W, b) in enumerate(layers):
            h = jnp.dot(h, W.T, precision=prec) + b
            if i < len(layers) - 1:
                h = jax.nn.relu(h)
        return h

    return mlp(out_vec, p["fc"]), out_vec, mlp(out_vec, p["fc_var"])


# ----------------------------------------------------------------------------- init + main
def init_linear(key, fan_in, fan_out):
    k1, k2 = jax.random.split(key)
    bound = 1.0 / np.sqrt(fan_in)
    W = jax.random.uniform(k1, (fan_out, fan_in), jnp.float32, -bound, bound)
    b = jax.random.uniform(k2, (fan_out,), jnp.float32, -bound, bound)
    return W, b


def init_conv(key, c_in, c_out, k=3):
    k1, k2 = jax.random.split(key)
    bound = 1.0 / np.sqrt(c_in * k)
    W = jax.random.uniform(k1, (c_out, c_in, k), jnp.float32, -bound, bound)
    b = jax.random.uniform(k2, (c_out,), jnp.float32, -bound, bound)
    return W, b


if __name__ == "__main__":
    B = 16
    L = N_PHASE0 * PHASE_LEN   # 4096 (implied by fc1(256) after 4x pool-by-2)
    keys = jax.random.split(jax.random.PRNGKey(0), 16)

    x = jax.random.uniform(keys[0], (B, 1, L), jnp.float32, -1.0, 1.0)

    p = {}
    p["w1"], p["b1"] = init_conv(keys[1], 1, 2)
    p["w2"], p["b2"] = init_conv(keys[2], 2, 4)
    p["w3"], p["b3"] = init_conv(keys[3], 4, 2)
    p["w4"], p["b4"] = init_conv(keys[4], 2, 1)
    p["fc"] = [init_linear(keys[5 + i], di, do) for i, (di, do) in enumerate(FC_HEAD_DIMS)]
    p["fc_var"] = [init_linear(keys[10 + i], di, do) for i, (di, do) in enumerate(FC_HEAD_DIMS)]

    # Default heuristic -> b_tile=8, grid of 2 steps (exercises the batched pipeline and
    # the multi-step "parallel" grid path).
    out, out_vec, out_var = ua_cnn_forward(x, p)
    out = jax.block_until_ready(out)
    out_vec = jax.block_until_ready(out_vec)
    out_var = jax.block_until_ready(out_var)

    r_out, r_vec, r_var = ref_forward(x, p)
    np.testing.assert_allclose(np.asarray(out_vec), np.asarray(r_vec), rtol=5e-2, atol=2e-3)
    np.testing.assert_allclose(np.asarray(out), np.asarray(r_out), rtol=5e-2, atol=2e-3)
    np.testing.assert_allclose(np.asarray(out_var), np.asarray(r_var), rtol=5e-2, atol=2e-3)

    print("KERNEL_OK")
</pallas_src>

<mosaic_0001>
module attributes {stable_mosaic.version = 11 : i64} {
  func.func @ua_cnn_kernel(%arg0: i32, %arg1: memref<16x8x256xf32, #tpu.memory_space<vmem>>, %arg2: memref<69xf32, #tpu.memory_space<smem>>, %arg3: memref<256x128xf32, #tpu.memory_space<vmem>>, %arg4: memref<4x128x128xf32, #tpu.memory_space<vmem>>, %arg5: memref<8x128xf32, #tpu.memory_space<vmem>>, %arg6: memref<8x256xf32, #tpu.memory_space<vmem>>, %arg7: memref<8x128xf32, #tpu.memory_space<vmem>>) attributes {dimension_semantics = [#tpu.dimension_semantics<parallel>], iteration_bounds = array<i64: 2>, scalar_prefetch = 0 : i64, scratch_operands = 0 : i64, tpu.core_type = #tpu.core_type<tc>, window_params = [{transform_indices = @transform_0, window_bounds = array<i64: 16, 8, 256>}, {transform_indices = @transform_1, window_bounds = array<i64: 69>}, {pipeline_mode = #tpu.pipeline_mode<synchronous>, transform_indices = @transform_2, window_bounds = array<i64: 256, 128>}, {pipeline_mode = #tpu.pipeline_mode<synchronous>, transform_indices = @transform_3, window_bounds = array<i64: 4, 128, 128>}, {pipeline_mode = #tpu.pipeline_mode<synchronous>, transform_indices = @transform_4, window_bounds = array<i64: 8, 128>}, {transform_indices = @transform_5, window_bounds = array<i64: 8, 256>}, {transform_indices = @transform_6, window_bounds = array<i64: 8, 128>}]} {
    %0 = tpu.iota {dimensions = array<i32: 1>} : vector<8x256xi32>
    %c0_i32 = arith.constant 0 : i32
    %1 = vector.broadcast %c0_i32 : i32 to vector<8x256xi32>
    %2 = arith.cmpi sgt, %0, %1 : vector<8x256xi32>
    %3 = arith.extui %2 : vector<8x256xi1> to vector<8x256xi32>
    %4 = arith.sitofp %3 : vector<8x256xi32> to vector<8x256xf32>
    %c255_i32 = arith.constant 255 : i32
    %5 = vector.broadcast %c255_i32 : i32 to vector<8x256xi32>
    %6 = arith.cmpi slt, %0, %5 : vector<8x256xi32>
    %7 = arith.extui %6 : vector<8x256xi1> to vector<8x256xi32>
    %8 = arith.sitofp %7 : vector<8x256xi32> to vector<8x256xf32>
    %c0 = arith.constant 0 : index
    %c0_0 = arith.constant 0 : index
    %c0_1 = arith.constant 0 : index
    %9 = vector.load %arg1[%c0, %c0_0, %c0_1] : memref<16x8x256xf32, #tpu.memory_space<vmem>>, vector<1x8x256xf32>
    %10 = vector.shape_cast %9 : vector<1x8x256xf32> to vector<8x256xf32>
    %c1 = arith.constant 1 : index
    %c0_2 = arith.constant 0 : index
    %c0_3 = arith.constant 0 : index
    %11 = vector.load %arg1[%c1, %c0_2, %c0_3] : memref<16x8x256xf32, #tpu.memory_space<vmem>>, vector<1x8x256xf32>
    %12 = vector.shape_cast %11 : vector<1x8x256xf32> to vector<8x256xf32>
    %c2 = arith.constant 2 : index
    %c0_4 = arith.constant 0 : index
    %c0_5 = arith.constant 0 : index
    %13 = vector.load %arg1[%c2, %c0_4, %c0_5] : memref<16x8x256xf32, #tpu.memory_space<vmem>>, vector<1x8x256xf32>
    %14 = vector.shape_cast %13 : vector<1x8x256xf32> to vector<8x256xf32>
    %c3 = arith.constant 3 : index
    %c0_6 = arith.constant 0 : index
    %c0_7 = arith.constant 0 : index
    %15 = vector.load %arg1[%c3, %c0_6, %c0_7] : memref<16x8x256xf32, #tpu.memory_space<vmem>>, vector<1x8x256xf32>
    %16 = vector.shape_cast %15 : vector<1x8x256xf32> to vector<8x256xf32>
    %c4 = arith.constant 4 : index
    %c0_8 = arith.constant 0 : index
    %c0_9 = arith.constant 0 : index
    %17 = vector.load %arg1[%c4, %c0_8, %c0_9] : memref<16x8x256xf32, #tpu.memory_space<vmem>>, vector<1x8x256xf32>
    %18 = vector.shape_cast %17 : vector<1x8x256xf32> to vector<8x256xf32>
    %c5 = arith.constant 5 : index
    %c0_10 = arith.constant 0 : index
    %c0_11 = arith.constant 0 : index
    %19 = vector.load %arg1[%c5, %c0_10, %c0_11] : memref<16x8x256xf32, #tpu.memory_space<vmem>>, vector<1x8x256xf32>
    %20 = vector.shape_cast %19 : vector<1x8x256xf32> to vector<8x256xf32>
    %c6 = arith.constant 6 : index
    %c0_12 = arith.constant 0 : index
    %c0_13 = arith.constant 0 : index
    %21 = vector.load %arg1[%c6, %c0_12, %c0_13] : memref<16x8x256xf32, #tpu.memory_space<vmem>>, vector<1x8x256xf32>
    %22 = vector.shape_cast %21 : vector<1x8x256xf32> to vector<8x256xf32>
    %c7 = arith.constant 7 : index
    %c0_14 = arith.constant 0 : index
    %c0_15 = arith.constant 0 : index
    %23 = vector.load %arg1[%c7, %c0_14, %c0_15] : memref<16x8x256xf32, #tpu.memory_space<vmem>>, vector<1x8x256xf32>
    %24 = vector.shape_cast %23 : vector<1x8x256xf32> to vector<8x256xf32>
    %c8 = arith.constant 8 : index
    %c0_16 = arith.constant 0 : index
    %c0_17 = arith.constant 0 : index
    %25 = vector.load %arg1[%c8, %c0_16, %c0_17] : memref<16x8x256xf32, #tpu.memory_space<vmem>>, vector<1x8x256xf32>
    %26 = vector.shape_cast %25 : vector<1x8x256xf32> to vector<8x256xf32>
    %c9 = arith.constant 9 : index
    %c0_18 = arith.constant 0 : index
    %c0_19 = arith.constant 0 : index
    %27 = vector.load %arg1[%c9, %c0_18, %c0_19] : memref<16x8x256xf32, #tpu.memory_space<vmem>>, vector<1x8x256xf32>
    %28 = vector.shape_cast %27 : vector<1x8x256xf32> to vector<8x256xf32>
    %c10 = arith.constant 10 : index
    %c0_20 = arith.constant 0 : index
    %c0_21 = arith.constant 0 : index
    %29 = vector.load %arg1[%c10, %c0_20, %c0_21] : memref<16x8x256xf32, #tpu.memory_space<vmem>>, vector<1x8x256xf32>
    %30 = vector.shape_cast %29 : vector<1x8x256xf32> to vector<8x256xf32>
    %c11 = arith.constant 11 : index
    %c0_22 = arith.constant 0 : index
    %c0_23 = arith.constant 0 : index
    %31 = vector.load %arg1[%c11, %c0_22, %c0_23] : memref<16x8x256xf32, #tpu.memory_space<vmem>>, vector<1x8x256xf32>
    %32 = vector.shape_cast %31 : vector<1x8x256xf32> to vector<8x256xf32>
    %c12 = arith.constant 12 : index
    %c0_24 = arith.constant 0 : index
    %c0_25 = arith.constant 0 : index
    %33 = vector.load %arg1[%c12, %c0_24, %c0_25] : memref<16x8x256xf32, #tpu.memory_space<vmem>>, vector<1x8x256xf32>
    %34 = vector.shape_cast %33 : vector<1x8x256xf32> to vector<8x256xf32>
    %c13 = arith.constant 13 : index
    %c0_26 = arith.constant 0 : index
    %c0_27 = arith.constant 0 : index
    %35 = vector.load %arg1[%c13, %c0_26, %c0_27] : memref<16x8x256xf32, #tpu.memory_space<vmem>>, vector<1x8x256xf32>
    %36 = vector.shape_cast %35 : vector<1x8x256xf32> to vector<8x256xf32>
    %c14 = arith.constant 14 : index
    %c0_28 = arith.constant 0 : index
    %c0_29 = arith.constant 0 : index
    %37 = vector.load %arg1[%c14, %c0_28, %c0_29] : memref<16x8x256xf32, #tpu.memory_space<vmem>>, vector<1x8x256xf32>
    %38 = vector.shape_cast %37 : vector<1x8x256xf32> to vector<8x256xf32>
    %c15 = arith.constant 15 : index
    %c0_30 = arith.constant 0 : index
    %c0_31 = arith.constant 0 : index
    %39 = vector.load %arg1[%c15, %c0_30, %c0_31] : memref<16x8x256xf32, #tpu.memory_space<vmem>>, vector<1x8x256xf32>
    %40 = vector.shape_cast %39 : vector<1x8x256xf32> to vector<8x256xf32>
    %c2_32 = arith.constant 2 : index
    %41 = memref.load %arg2[%c2_32] : memref<69xf32, #tpu.memory_space<smem>>
    %c3_33 = arith.constant 3 : index
    %42 = memref.load %arg2[%c3_33] : memref<69xf32, #tpu.memory_space<smem>>
    %c4_34 = arith.constant 4 : index
    %43 = memref.load %arg2[%c4_34] : memref<69xf32, #tpu.memory_space<smem>>
    %c5_35 = arith.constant 5 : index
    %44 = memref.load %arg2[%c5_35] : memref<69xf32, #tpu.memory_space<smem>>
    %c6_36 = arith.constant 6 : index
    %45 = memref.load %arg2[%c6_36] : memref<69xf32, #tpu.memory_space<smem>>
    %c7_37 = arith.constant 7 : index
    %46 = memref.load %arg2[%c7_37] : memref<69xf32, #tpu.memory_space<smem>>
    %c0_38 = arith.constant 0 : index
    %47 = memref.load %arg2[%c0_38] : memref<69xf32, #tpu.memory_space<smem>>
    %48 = vector.broadcast %47 : f32 to vector<8x256xf32>
    %c1_39 = arith.constant 1 : index
    %49 = memref.load %arg2[%c1_39] : memref<69xf32, #tpu.memory_space<smem>>
    %50 = vector.broadcast %49 : f32 to vector<8x256xf32>
    %c1_i32 = arith.constant 1 : i32
    %51 = tpu.dynamic_rotate %40 by %c1_i32 dim 1 : vector<8x256xf32>, i32 -> vector<8x256xf32>
    %52 = arith.mulf %51, %4 : vector<8x256xf32>
    %c255_i32_40 = arith.constant 255 : i32
    %53 = tpu.dynamic_rotate %10 by %c255_i32_40 dim 1 : vector<8x256xf32>, i32 -> vector<8x256xf32>
    %54 = arith.mulf %53, %8 : vector<8x256xf32>
    %55 = vector.broadcast %41 : f32 to vector<8x256xf32>
    %56 = arith.mulf %55, %52 : vector<8x256xf32>
    %57 = arith.addf %48, %56 : vector<8x256xf32>
    %58 = vector.broadcast %42 : f32 to vector<8x256xf32>
    %59 = arith.mulf %58, %10 : vector<8x256xf32>
    %60 = arith.addf %57, %59 : vector<8x256xf32>
    %61 = vector.broadcast %43 : f32 to vector<8x256xf32>
    %62 = arith.mulf %61, %12 : vector<8x256xf32>
    %63 = arith.addf %60, %62 : vector<8x256xf32>
    %64 = vector.broadcast %41 : f32 to vector<8x256xf32>
    %65 = arith.mulf %64, %10 : vector<8x256xf32>
    %66 = arith.addf %48, %65 : vector<8x256xf32>
    %67 = vector.broadcast %42 : f32 to vector<8x256xf32>
    %68 = arith.mulf %67, %12 : vector<8x256xf32>
    %69 = arith.addf %66, %68 : vector<8x256xf32>
    %70 = vector.broadcast %43 : f32 to vector<8x256xf32>
    %71 = arith.mulf %70, %14 : vector<8x256xf32>
    %72 = arith.addf %69, %71 : vector<8x256xf32>
    %73 = arith.maximumf %63, %72 : vector<8x256xf32>
    %cst = arith.constant 0.000000e+00 : f32
    %74 = vector.broadcast %cst : f32 to vector<8x256xf32>
    %75 = arith.maximumf %73, %74 : vector<8x256xf32>
    %76 = vector.broadcast %44 : f32 to vector<8x256xf32>
    %77 = arith.mulf %76, %52 : vector<8x256xf32>
    %78 = arith.addf %50, %77 : vector<8x256xf32>
    %79 = vector.broadcast %45 : f32 to vector<8x256xf32>
    %80 = arith.mulf %79, %10 : vector<8x256xf32>
    %81 = arith.addf %78, %80 : vector<8x256xf32>
    %82 = vector.broadcast %46 : f32 to vector<8x256xf32>
    %83 = arith.mulf %82, %12 : vector<8x256xf32>
    %84 = arith.addf %81, %83 : vector<8x256xf32>
    %85 = vector.broadcast %44 : f32 to vector<8x256xf32>
    %86 = arith.mulf %85, %10 : vector<8x256xf32>
    %87 = arith.addf %50, %86 : vector<8x256xf32>
    %88 = vector.broadcast %45 : f32 to vector<8x256xf32>
    %89 = arith.mulf %88, %12 : vector<8x256xf32>
    %90 = arith.addf %87, %89 : vector<8x256xf32>
    %91 = vector.broadcast %46 : f32 to vector<8x256xf32>
    %92 = arith.mulf %91, %14 : vector<8x256xf32>
    %93 = arith.addf %90, %92 : vector<8x256xf32>
    %94 = arith.maximumf %84, %93 : vector<8x256xf32>
    %cst_41 = arith.constant 0.000000e+00 : f32
    %95 = vector.broadcast %cst_41 : f32 to vector<8x256xf32>
    %96 = arith.maximumf %94, %95 : vector<8x256xf32>
    %97 = vector.broadcast %41 : f32 to vector<8x256xf32>
    %98 = arith.mulf %97, %12 : vector<8x256xf32>
    %99 = arith.addf %48, %98 : vector<8x256xf32>
    %100 = vector.broadcast %42 : f32 to vector<8x256xf32>
    %101 = arith.mulf %100, %14 : vector<8x256xf32>
    %102 = arith.addf %99, %101 : vector<8x256xf32>
    %103 = vector.broadcast %43 : f32 to vector<8x256xf32>
    %104 = arith.mulf %103, %16 : vector<8x256xf32>
    %105 = arith.addf %102, %104 : vector<8x256xf32>
    %106 = vector.broadcast %41 : f32 to vector<8x256xf32>
    %107 = arith.mulf %106, %14 : vector<8x256xf32>
    %108 = arith.addf %48, %107 : vector<8x256xf32>
    %109 = vector.broadcast %42 : f32 to vector<8x256xf32>
    %110 = arith.mulf %109, %16 : vector<8x256xf32>
    %111 = arith.addf %108, %110 : vector<8x256xf32>
    %112 = vector.broadcast %43 : f32 to vector<8x256xf32>
    %113 = arith.mulf %112, %18 : vector<8x256xf32>
    %114 = arith.addf %111, %113 : vector<8x256xf32>
    %115 = arith.maximumf %105, %114 : vector<8x256xf32>
    %cst_42 = arith.constant 0.000000e+00 : f32
    %116 = vector.broadcast %cst_42 : f32 to vector<8x256xf32>
    %117 = arith.maximumf %115, %116 : vector<8x256xf32>
    %118 = vector.broadcast %44 : f32 to vector<8x256xf32>
    %119 = arith.mulf %118, %12 : vector<8x256xf32>
    %120 = arith.addf %50, %119 : vector<8x256xf32>
    %121 = vector.broadcast %45 : f32 to vector<8x256xf32>
    %122 = arith.mulf %121, %14 : vector<8x256xf32>
    %123 = arith.addf %120, %122 : vector<8x256xf32>
    %124 = vector.broadcast %46 : f32 to vector<8x256xf32>
    %125 = arith.mulf %124, %16 : vector<8x256xf32>
    %126 = arith.addf %123, %125 : vector<8x256xf32>
    %127 = vector.broadcast %44 : f32 to vector<8x256xf32>
    %128 = arith.mulf %127, %14 : vector<8x256xf32>
    %129 = arith.addf %50, %128 : vector<8x256xf32>
    %130 = vector.broadcast %45 : f32 to vector<8x256xf32>
    %131 = arith.mulf %130, %16 : vector<8x256xf32>
    %132 = arith.addf %129, %131 : vector<8x256xf32>
    %133 = vector.broadcast %46 : f32 to vector<8x256xf32>
    %134 = arith.mulf %133, %18 : vector<8x256xf32>
    %135 = arith.addf %132, %134 : vector<8x256xf32>
    %136 = arith.maximumf %126, %135 : vector<8x256xf32>
    %cst_43 = arith.constant 0.000000e+00 : f32
    %137 = vector.broadcast %cst_43 : f32 to vector<8x256xf32>
    %138 = arith.maximumf %136, %137 : vector<8x256xf32>
    %139 = vector.broadcast %41 : f32 to vector<8x256xf32>
    %140 = arith.mulf %139, %16 : vector<8x256xf32>
    %141 = arith.addf %48, %140 : vector<8x256xf32>
    %142 = vector.broadcast %42 : f32 to vector<8x256xf32>
    %143 = arith.mulf %142, %18 : vector<8x256xf32>
    %144 = arith.addf %141, %143 : vector<8x256xf32>
    %145 = vector.broadcast %43 : f32 to vector<8x256xf32>
    %146 = arith.mulf %145, %20 : vector<8x256xf32>
    %147 = arith.addf %144, %146 : vector<8x256xf32>
    %148 = vector.broadcast %41 : f32 to vector<8x256xf32>
    %149 = arith.mulf %148, %18 : vector<8x256xf32>
    %150 = arith.addf %48, %149 : vector<8x256xf32>
    %151 = vector.broadcast %42 : f32 to vector<8x256xf32>
    %152 = arith.mulf %151, %20 : vector<8x256xf32>
    %153 = arith.addf %150, %152 : vector<8x256xf32>
    %154 = vector.broadcast %43 : f32 to vector<8x256xf32>
    %155 = arith.mulf %154, %22 : vector<8x256xf32>
    %156 = arith.addf %153, %155 : vector<8x256xf32>
    %157 = arith.maximumf %147, %156 : vector<8x256xf32>
    %cst_44 = arith.constant 0.000000e+00 : f32
    %158 = vector.broadcast %cst_44 : f32 to vector<8x256xf32>
    %159 = arith.maximumf %157, %158 : vector<8x256xf32>
    %160 = vector.broadcast %44 : f32 to vector<8x256xf32>
    %161 = arith.mulf %160, %16 : vector<8x256xf32>
    %162 = arith.addf %50, %161 : vector<8x256xf32>
    %163 = vector.broadcast %45 : f32 to vector<8x256xf32>
    %164 = arith.mulf %163, %18 : vector<8x256xf32>
    %165 = arith.addf %162, %164 : vector<8x256xf32>
    %166 = vector.broadcast %46 : f32 to vector<8x256xf32>
    %167 = arith.mulf %166, %20 : vector<8x256xf32>
    %168 = arith.addf %165, %167 : vector<8x256xf32>
    %169 = vector.broadcast %44 : f32 to vector<8x256xf32>
    %170 = arith.mulf %169, %18 : vector<8x256xf32>
    %171 = arith.addf %50, %170 : vector<8x256xf32>
    %172 = vector.broadcast %45 : f32 to vector<8x256xf32>
    %173 = arith.mulf %172, %20 : vector<8x256xf32>
    %174 = arith.addf %171, %173 : vector<8x256xf32>
    %175 = vector.broadcast %46 : f32 to vector<8x256xf32>
    %176 = arith.mulf %175, %22 : vector<8x256xf32>
    %177 = arith.addf %174, %176 : vector<8x256xf32>
    %178 = arith.maximumf %168, %177 : vector<8x256xf32>
    %cst_45 = arith.constant 0.000000e+00 : f32
    %179 = vector.broadcast %cst_45 : f32 to vector<8x256xf32>
    %180 = arith.maximumf %178, %179 : vector<8x256xf32>
    %181 = vector.broadcast %41 : f32 to vector<8x256xf32>
    %182 = arith.mulf %181, %20 : vector<8x256xf32>
    %183 = arith.addf %48, %182 : vector<8x256xf32>
    %184 = vector.broadcast %42 : f32 to vector<8x256xf32>
    %185 = arith.mulf %184, %22 : vector<8x256xf32>
    %186 = arith.addf %183, %185 : vector<8x256xf32>
    %187 = vector.broadcast %43 : f32 to vector<8x256xf32>
    %188 = arith.mulf %187, %24 : vector<8x256xf32>
    %189 = arith.addf %186, %188 : vector<8x256xf32>
    %190 = vector.broadcast %41 : f32 to vector<8x256xf32>
    %191 = arith.mulf %190, %22 : vector<8x256xf32>
    %192 = arith.addf %48, %191 : vector<8x256xf32>
    %193 = vector.broadcast %42 : f32 to vector<8x256xf32>
    %194 = arith.mulf %193, %24 : vector<8x256xf32>
    %195 = arith.addf %192, %194 : vector<8x256xf32>
    %196 = vector.broadcast %43 : f32 to vector<8x256xf32>
    %197 = arith.mulf %196, %26 : vector<8x256xf32>
    %198 = arith.addf %195, %197 : vector<8x256xf32>
    %199 = arith.maximumf %189, %198 : vector<8x256xf32>
    %cst_46 = arith.constant 0.000000e+00 : f32
    %200 = vector.broadcast %cst_46 : f32 to vector<8x256xf32>
    %201 = arith.maximumf %199, %200 : vector<8x256xf32>
    %202 = vector.broadcast %44 : f32 to vector<8x256xf32>
    %203 = arith.mulf %202, %20 : vector<8x256xf32>
    %204 = arith.addf %50, %203 : vector<8x256xf32>
    %205 = vector.broadcast %45 : f32 to vector<8x256xf32>
    %206 = arith.mulf %205, %22 : vector<8x256xf32>
    %207 = arith.addf %204, %206 : vector<8x256xf32>
    %208 = vector.broadcast %46 : f32 to vector<8x256xf32>
    %209 = arith.mulf %208, %24 : vector<8x256xf32>
    %210 = arith.addf %207, %209 : vector<8x256xf32>
    %211 = vector.broadcast %44 : f32 to vector<8x256xf32>
    %212 = arith.mulf %211, %22 : vector<8x256xf32>
    %213 = arith.addf %50, %212 : vector<8x256xf32>
    %214 = vector.broadcast %45 : f32 to vector<8x256xf32>
    %215 = arith.mulf %214, %24 : vector<8x256xf32>
    %216 = arith.addf %213, %215 : vector<8x256xf32>
    %217 = vector.broadcast %46 : f32 to vector<8x256xf32>
    %218 = arith.mulf %217, %26 : vector<8x256xf32>
    %219 = arith.addf %216, %218 : vector<8x256xf32>
    %220 = arith.maximumf %210, %219 : vector<8x256xf32>
    %cst_47 = arith.constant 0.000000e+00 : f32
    %221 = vector.broadcast %cst_47 : f32 to vector<8x256xf32>
    %222 = arith.maximumf %220, %221 : vector<8x256xf32>
    %223 = vector.broadcast %41 : f32 to vector<8x256xf32>
    %224 = arith.mulf %223, %24 : vector<8x256xf32>
    %225 = arith.addf %48, %224 : vector<8x256xf32>
    %226 = vector.broadcast %42 : f32 to vector<8x256xf32>
    %227 = arith.mulf %226, %26 : vector<8x256xf32>
    %228 = arith.addf %225, %227 : vector<8x256xf32>
    %229 = vector.broadcast %43 : f32 to vector<8x256xf32>
    %230 = arith.mulf %229, %28 : vector<8x256xf32>
    %231 = arith.addf %228, %230 : vector<8x256xf32>
    %232 = vector.broadcast %41 : f32 to vector<8x256xf32>
    %233 = arith.mulf %232, %26 : vector<8x256xf32>
    %234 = arith.addf %48, %233 : vector<8x256xf32>
    %235 = vector.broadcast %42 : f32 to vector<8x256xf32>
    %236 = arith.mulf %235, %28 : vector<8x256xf32>
    %237 = arith.addf %234, %236 : vector<8x256xf32>
    %238 = vector.broadcast %43 : f32 to vector<8x256xf32>
    %239 = arith.mulf %238, %30 : vector<8x256xf32>
    %240 = arith.addf %237, %239 : vector<8x256xf32>
    %241 = arith.maximumf %231, %240 : vector<8x256xf32>
    %cst_48 = arith.constant 0.000000e+00 : f32
    %242 = vector.broadcast %cst_48 : f32 to vector<8x256xf32>
    %243 = arith.maximumf %241, %242 : vector<8x256xf32>
    %244 = vector.broadcast %44 : f32 to vector<8x256xf32>
    %245 = arith.mulf %244, %24 : vector<8x256xf32>
    %246 = arith.addf %50, %245 : vector<8x256xf32>
    %247 = vector.broadcast %45 : f32 to vector<8x256xf32>
    %248 = arith.mulf %247, %26 : vector<8x256xf32>
    %249 = arith.addf %246, %248 : vector<8x256xf32>
    %250 = vector.broadcast %46 : f32 to vector<8x256xf32>
    %251 = arith.mulf %250, %28 : vector<8x256xf32>
    %252 = arith.addf %249, %251 : vector<8x256xf32>
    %253 = vector.broadcast %44 : f32 to vector<8x256xf32>
    %254 = arith.mulf %253, %26 : vector<8x256xf32>
    %255 = arith.addf %50, %254 : vector<8x256xf32>
    %256 = vector.broadcast %45 : f32 to vector<8x256xf32>
    %257 = arith.mulf %256, %28 : vector<8x256xf32>
    %258 = arith.addf %255, %257 : vector<8x256xf32>
    %259 = vector.broadcast %46 : f32 to vector<8x256xf32>
    %260 = arith.mulf %259, %30 : vector<8x256xf32>
    %261 = arith.addf %258, %260 : vector<8x256xf32>
    %262 = arith.maximumf %252, %261 : vector<8x256xf32>
    %cst_49 = arith.constant 0.000000e+00 : f32
    %263 = vector.broadcast %cst_49 : f32 to vector<8x256xf32>
    %264 = arith.maximumf %262, %263 : vector<8x256xf32>
    %265 = vector.broadcast %41 : f32 to vector<8x256xf32>
    %266 = arith.mulf %265, %28 : vector<8x256xf32>
    %267 = arith.addf %48, %266 : vector<8x256xf32>
    %268 = vector.broadcast %42 : f32 to vector<8x256xf32>
    %269 = arith.mulf %268, %30 : vector<8x256xf32>
    %270 = arith.addf %267, %269 : vector<8x256xf32>
    %271 = vector.broadcast %43 : f32 to vector<8x256xf32>
    %272 = arith.mulf %271, %32 : vector<8x256xf32>
    %273 = arith.addf %270, %272 : vector<8x256xf32>
    %274 = vector.broadcast %41 : f32 to vector<8x256xf32>
    %275 = arith.mulf %274, %30 : vector<8x256xf32>
    %276 = arith.addf %48, %275 : vector<8x256xf32>
    %277 = vector.broadcast %42 : f32 to vector<8x256xf32>
    %278 = arith.mulf %277, %32 : vector<8x256xf32>
    %279 = arith.addf %276, %278 : vector<8x256xf32>
    %280 = vector.broadcast %43 : f32 to vector<8x256xf32>
    %281 = arith.mulf %280, %34 : vector<8x256xf32>
    %282 = arith.addf %279, %281 : vector<8x256xf32>
    %283 = arith.maximumf %273, %282 : vector<8x256xf32>
    %cst_50 = arith.constant 0.000000e+00 : f32
    %284 = vector.broadcast %cst_50 : f32 to vector<8x256xf32>
    %285 = arith.maximumf %283, %284 : vector<8x256xf32>
    %286 = vector.broadcast %44 : f32 to vector<8x256xf32>
    %287 = arith.mulf %286, %28 : vector<8x256xf32>
    %288 = arith.addf %50, %287 : vector<8x256xf32>
    %289 = vector.broadcast %45 : f32 to vector<8x256xf32>
    %290 = arith.mulf %289, %30 : vector<8x256xf32>
    %291 = arith.addf %288, %290 : vector<8x256xf32>
    %292 = vector.broadcast %46 : f32 to vector<8x256xf32>
    %293 = arith.mulf %292, %32 : vector<8x256xf32>
    %294 = arith.addf %291, %293 : vector<8x256xf32>
    %295 = vector.broadcast %44 : f32 to vector<8x256xf32>
    %296 = arith.mulf %295, %30 : vector<8x256xf32>
    %297 = arith.addf %50, %296 : vector<8x256xf32>
    %298 = vector.broadcast %45 : f32 to vector<8x256xf32>
    %299 = arith.mulf %298, %32 : vector<8x256xf32>
    %300 = arith.addf %297, %299 : vector<8x256xf32>
    %301 = vector.broadcast %46 : f32 to vector<8x256xf32>
    %302 = arith.mulf %301, %34 : vector<8x256xf32>
    %303 = arith.addf %300, %302 : vector<8x256xf32>
    %304 = arith.maximumf %294, %303 : vector<8x256xf32>
    %cst_51 = arith.constant 0.000000e+00 : f32
    %305 = vector.broadcast %cst_51 : f32 to vector<8x256xf32>
    %306 = arith.maximumf %304, %305 : vector<8x256xf32>
    %307 = vector.broadcast %41 : f32 to vector<8x256xf32>
    %308 = arith.mulf %307, %32 : vector<8x256xf32>
    %309 = arith.addf %48, %308 : vector<8x256xf32>
    %310 = vector.broadcast %42 : f32 to vector<8x256xf32>
    %311 = arith.mulf %310, %34 : vector<8x256xf32>
    %312 = arith.addf %309, %311 : vector<8x256xf32>
    %313 = vector.broadcast %43 : f32 to vector<8x256xf32>
    %314 = arith.mulf %313, %36 : vector<8x256xf32>
    %315 = arith.addf %312, %314 : vector<8x256xf32>
    %316 = vector.broadcast %41 : f32 to vector<8x256xf32>
    %317 = arith.mulf %316, %34 : vector<8x256xf32>
    %318 = arith.addf %48, %317 : vector<8x256xf32>
    %319 = vector.broadcast %42 : f32 to vector<8x256xf32>
    %320 = arith.mulf %319, %36 : vector<8x256xf32>
    %321 = arith.addf %318, %320 : vector<8x256xf32>
    %322 = vector.broadcast %43 : f32 to vector<8x256xf32>
    %323 = arith.mulf %322, %38 : vector<8x256xf32>
    %324 = arith.addf %321, %323 : vector<8x256xf32>
    %325 = arith.maximumf %315, %324 : vector<8x256xf32>
    %cst_52 = arith.constant 0.000000e+00 : f32
    %326 = vector.broadcast %cst_52 : f32 to vector<8x256xf32>
    %327 = arith.maximumf %325, %326 : vector<8x256xf32>
    %328 = vector.broadcast %44 : f32 to vector<8x256xf32>
    %329 = arith.mulf %328, %32 : vector<8x256xf32>
    %330 = arith.addf %50, %329 : vector<8x256xf32>
    %331 = vector.broadcast %45 : f32 to vector<8x256xf32>
    %332 = arith.mulf %331, %34 : vector<8x256xf32>
    %333 = arith.addf %330, %332 : vector<8x256xf32>
    %334 = vector.broadcast %46 : f32 to vector<8x256xf32>
    %335 = arith.mulf %334, %36 : vector<8x256xf32>
    %336 = arith.addf %333, %335 : vector<8x256xf32>
    %337 = vector.broadcast %44 : f32 to vector<8x256xf32>
    %338 = arith.mulf %337, %34 : vector<8x256xf32>
    %339 = arith.addf %50, %338 : vector<8x256xf32>
    %340 = vector.broadcast %45 : f32 to vector<8x256xf32>
    %341 = arith.mulf %340, %36 : vector<8x256xf32>
    %342 = arith.addf %339, %341 : vector<8x256xf32>
    %343 = vector.broadcast %46 : f32 to vector<8x256xf32>
    %344 = arith.mulf %343, %38 : vector<8x256xf32>
    %345 = arith.addf %342, %344 : vector<8x256xf32>
    %346 = arith.maximumf %336, %345 : vector<8x256xf32>
    %cst_53 = arith.constant 0.000000e+00 : f32
    %347 = vector.broadcast %cst_53 : f32 to vector<8x256xf32>
    %348 = arith.maximumf %346, %347 : vector<8x256xf32>
    %349 = vector.broadcast %41 : f32 to vector<8x256xf32>
    %350 = arith.mulf %349, %36 : vector<8x256xf32>
    %351 = arith.addf %48, %350 : vector<8x256xf32>
    %352 = vector.broadcast %42 : f32 to vector<8x256xf32>
    %353 = arith.mulf %352, %38 : vector<8x256xf32>
    %354 = arith.addf %351, %353 : vector<8x256xf32>
    %355 = vector.broadcast %43 : f32 to vector<8x256xf32>
    %356 = arith.mulf %355, %40 : vector<8x256xf32>
    %357 = arith.addf %354, %356 : vector<8x256xf32>
    %358 = vector.broadcast %41 : f32 to vector<8x256xf32>
    %359 = arith.mulf %358, %38 : vector<8x256xf32>
    %360 = arith.addf %48, %359 : vector<8x256xf32>
    %361 = vector.broadcast %42 : f32 to vector<8x256xf32>
    %362 = arith.mulf %361, %40 : vector<8x256xf32>
    %363 = arith.addf %360, %362 : vector<8x256xf32>
    %364 = vector.broadcast %43 : f32 to vector<8x256xf32>
    %365 = arith.mulf %364, %54 : vector<8x256xf32>
    %366 = arith.addf %363, %365 : vector<8x256xf32>
    %367 = arith.maximumf %357, %366 : vector<8x256xf32>
    %cst_54 = arith.constant 0.000000e+00 : f32
    %368 = vector.broadcast %cst_54 : f32 to vector<8x256xf32>
    %369 = arith.maximumf %367, %368 : vector<8x256xf32>
    %370 = vector.broadcast %44 : f32 to vector<8x256xf32>
    %371 = arith.mulf %370, %36 : vector<8x256xf32>
    %372 = arith.addf %50, %371 : vector<8x256xf32>
    %373 = vector.broadcast %45 : f32 to vector<8x256xf32>
    %374 = arith.mulf %373, %38 : vector<8x256xf32>
    %375 = arith.addf %372, %374 : vector<8x256xf32>
    %376 = vector.broadcast %46 : f32 to vector<8x256xf32>
    %377 = arith.mulf %376, %40 : vector<8x256xf32>
    %378 = arith.addf %375, %377 : vector<8x256xf32>
    %379 = vector.broadcast %44 : f32 to vector<8x256xf32>
    %380 = arith.mulf %379, %38 : vector<8x256xf32>
    %381 = arith.addf %50, %380 : vector<8x256xf32>
    %382 = vector.broadcast %45 : f32 to vector<8x256xf32>
    %383 = arith.mulf %382, %40 : vector<8x256xf32>
    %384 = arith.addf %381, %383 : vector<8x256xf32>
    %385 = vector.broadcast %46 : f32 to vector<8x256xf32>
    %386 = arith.mulf %385, %54 : vector<8x256xf32>
    %387 = arith.addf %384, %386 : vector<8x256xf32>
    %388 = arith.maximumf %378, %387 : vector<8x256xf32>
    %cst_55 = arith.constant 0.000000e+00 : f32
    %389 = vector.broadcast %cst_55 : f32 to vector<8x256xf32>
    %390 = arith.maximumf %388, %389 : vector<8x256xf32>
    %c12_56 = arith.constant 12 : index
    %391 = memref.load %arg2[%c12_56] : memref<69xf32, #tpu.memory_space<smem>>
    %c13_57 = arith.constant 13 : index
    %392 = memref.load %arg2[%c13_57] : memref<69xf32, #tpu.memory_space<smem>>
    %c14_58 = arith.constant 14 : index
    %393 = memref.load %arg2[%c14_58] : memref<69xf32, #tpu.memory_space<smem>>
    %c15_59 = arith.constant 15 : index
    %394 = memref.load %arg2[%c15_59] : memref<69xf32, #tpu.memory_space<smem>>
    %c16 = arith.constant 16 : index
    %395 = memref.load %arg2[%c16] : memref<69xf32, #tpu.memory_space<smem>>
    %c17 = arith.constant 17 : index
    %396 = memref.load %arg2[%c17] : memref<69xf32, #tpu.memory_space<smem>>
    %c18 = arith.constant 18 : index
    %397 = memref.load %arg2[%c18] : memref<69xf32, #tpu.memory_space<smem>>
    %c19 = arith.constant 19 : index
    %398 = memref.load %arg2[%c19] : memref<69xf32, #tpu.memory_space<smem>>
    %c20 = arith.constant 20 : index
    %399 = memref.load %arg2[%c20] : memref<69xf32, #tpu.memory_space<smem>>
    %c21 = arith.constant 21 : index
    %400 = memref.load %arg2[%c21] : memref<69xf32, #tpu.memory_space<smem>>
    %c22 = arith.constant 22 : index
    %401 = memref.load %arg2[%c22] : memref<69xf32, #tpu.memory_space<smem>>
    %c23 = arith.constant 23 : index
    %402 = memref.load %arg2[%c23] : memref<69xf32, #tpu.memory_space<smem>>
    %c24 = arith.constant 24 : index
    %403 = memref.load %arg2[%c24] : memref<69xf32, #tpu.memory_space<smem>>
    %c25 = arith.constant 25 : index
    %404 = memref.load %arg2[%c25] : memref<69xf32, #tpu.memory_space<smem>>
    %c26 = arith.constant 26 : index
    %405 = memref.load %arg2[%c26] : memref<69xf32, #tpu.memory_space<smem>>
    %c27 = arith.constant 27 : index
    %406 = memref.load %arg2[%c27] : memref<69xf32, #tpu.memory_space<smem>>
    %c28 = arith.constant 28 : index
    %407 = memref.load %arg2[%c28] : memref<69xf32, #tpu.memory_space<smem>>
    %c29 = arith.constant 29 : index
    %408 = memref.load %arg2[%c29] : memref<69xf32, #tpu.memory_space<smem>>
    %c30 = arith.constant 30 : index
    %409 = memref.load %arg2[%c30] : memref<69xf32, #tpu.memory_space<smem>>
    %c31 = arith.constant 31 : index
    %410 = memref.load %arg2[%c31] : memref<69xf32, #tpu.memory_space<smem>>
    %c32 = arith.constant 32 : index
    %411 = memref.load %arg2[%c32] : memref<69xf32, #tpu.memory_space<smem>>
    %c33 = arith.constant 33 : index
    %412 = memref.load %arg2[%c33] : memref<69xf32, #tpu.memory_space<smem>>
    %c34 = arith.constant 34 : index
    %413 = memref.load %arg2[%c34] : memref<69xf32, #tpu.memory_space<smem>>
    %c35 = arith.constant 35 : index
    %414 = memref.load %arg2[%c35] : memref<69xf32, #tpu.memory_space<smem>>
    %c8_60 = arith.constant 8 : index
    %415 = memref.load %arg2[%c8_60] : memref<69xf32, #tpu.memory_space<smem>>
    %416 = vector.broadcast %415 : f32 to vector<8x256xf32>
    %c9_61 = arith.constant 9 : index
    %417 = memref.load %arg2[%c9_61] : memref<69xf32, #tpu.memory_space<smem>>
    %418 = vector.broadcast %417 : f32 to vector<8x256xf32>
    %c10_62 = arith.constant 10 : index
    %419 = memref.load %arg2[%c10_62] : memref<69xf32, #tpu.memory_space<smem>>
    %420 = vector.broadcast %419 : f32 to vector<8x256xf32>
    %c11_63 = arith.constant 11 : index
    %421 = memref.load %arg2[%c11_63] : memref<69xf32, #tpu.memory_space<smem>>
    %422 = vector.broadcast %421 : f32 to vector<8x256xf32>
    %c1_i32_64 = arith.constant 1 : i32
    %423 = tpu.dynamic_rotate %369 by %c1_i32_64 dim 1 : vector<8x256xf32>, i32 -> vector<8x256xf32>
    %424 = arith.mulf %423, %4 : vector<8x256xf32>
    %c1_i32_65 = arith.constant 1 : i32
    %425 = tpu.dynamic_rotate %390 by %c1_i32_65 dim 1 : vector<8x256xf32>, i32 -> vector<8x256xf32>
    %426 = arith.mulf %425, %4 : vector<8x256xf32>
    %c255_i32_66 = arith.constant 255 : i32
    %427 = tpu.dynamic_rotate %75 by %c255_i32_66 dim 1 : vector<8x256xf32>, i32 -> vector<8x256xf32>
    %428 = arith.mulf %427, %8 : vector<8x256xf32>
    %c255_i32_67 = arith.constant 255 : i32
    %429 = tpu.dynamic_rotate %96 by %c255_i32_67 dim 1 : vector<8x256xf32>, i32 -> vector<8x256xf32>
    %430 = arith.mulf %429, %8 : vector<8x256xf32>
    %431 = vector.broadcast %391 : f32 to vector<8x256xf32>
    %432 = arith.mulf %431, %424 : vector<8x256xf32>
    %433 = arith.addf %416, %432 : vector<8x256xf32>
    %434 = vector.broadcast %394 : f32 to vector<8x256xf32>
    %435 = arith.mulf %434, %426 : vector<8x256xf32>
    %436 = arith.addf %433, %435 : vector<8x256xf32>
    %437 = vector.broadcast %392 : f32 to vector<8x256xf32>
    %438 = arith.mulf %437, %75 : vector<8x256xf32>
    %439 = arith.addf %436, %438 : vector<8x256xf32>
    %440 = vector.broadcast %395 : f32 to vector<8x256xf32>
    %441 = arith.mulf %440, %96 : vector<8x256xf32>
    %442 = arith.addf %439, %441 : vector<8x256xf32>
    %443 = vector.broadcast %393 : f32 to vector<8x256xf32>
    %444 = arith.mulf %443, %117 : vector<8x256xf32>
    %445 = arith.addf %442, %444 : vector<8x256xf32>
    %446 = vector.broadcast %396 : f32 to vector<8x256xf32>
    %447 = arith.mulf %446, %138 : vector<8x256xf32>
    %448 = arith.addf %445, %447 : vector<8x256xf32>
    %449 = vector.broadcast %391 : f32 to vector<8x256xf32>
    %450 = arith.mulf %449, %75 : vector<8x256xf32>
    %451 = arith.addf %416, %450 : vector<8x256xf32>
    %452 = vector.broadcast %394 : f32 to vector<8x256xf32>
    %453 = arith.mulf %452, %96 : vector<8x256xf32>
    %454 = arith.addf %451, %453 : vector<8x256xf32>
    %455 = vector.broadcast %392 : f32 to vector<8x256xf32>
    %456 = arith.mulf %455, %117 : vector<8x256xf32>
    %457 = arith.addf %454, %456 : vector<8x256xf32>
    %458 = vector.broadcast %395 : f32 to vector<8x256xf32>
    %459 = arith.mulf %458, %138 : vector<8x256xf32>
    %460 = arith.addf %457, %459 : vector<8x256xf32>
    %461 = vector.broadcast %393 : f32 to vector<8x256xf32>
    %462 = arith.mulf %461, %159 : vector<8x256xf32>
    %463 = arith.addf %460, %462 : vector<8x256xf32>
    %464 = vector.broadcast %396 : f32 to vector<8x256xf32>
    %465 = arith.mulf %464, %180 : vector<8x256xf32>
    %466 = arith.addf %463, %465 : vector<8x256xf32>
    %467 = arith.maximumf %448, %466 : vector<8x256xf32>
    %cst_68 = arith.constant 0.000000e+00 : f32
    %468 = vector.broadcast %cst_68 : f32 to vector<8x256xf32>
    %469 = arith.maximumf %467, %468 : vector<8x256xf32>
    %470 = vector.broadcast %397 : f32 to vector<8x256xf32>
    %471 = arith.mulf %470, %424 : vector<8x256xf32>
    %472 = arith.addf %418, %471 : vector<8x256xf32>
    %473 = vector.broadcast %400 : f32 to vector<8x256xf32>
    %474 = arith.mulf %473, %426 : vector<8x256xf32>
    %475 = arith.addf %472, %474 : vector<8x256xf32>
    %476 = vector.broadcast %398 : f32 to vector<8x256xf32>
    %477 = arith.mulf %476, %75 : vector<8x256xf32>
    %478 = arith.addf %475, %477 : vector<8x256xf32>
    %479 = vector.broadcast %401 : f32 to vector<8x256xf32>
    %480 = arith.mulf %479, %96 : vector<8x256xf32>
    %481 = arith.addf %478, %480 : vector<8x256xf32>
    %482 = vector.broadcast %399 : f32 to vector<8x256xf32>
    %483 = arith.mulf %482, %117 : vector<8x256xf32>
    %484 = arith.addf %481, %483 : vector<8x256xf32>
    %485 = vector.broadcast %402 : f32 to vector<8x256xf32>
    %486 = arith.mulf %485, %138 : vector<8x256xf32>
    %487 = arith.addf %484, %486 : vector<8x256xf32>
    %488 = vector.broadcast %397 : f32 to vector<8x256xf32>
    %489 = arith.mulf %488, %75 : vector<8x256xf32>
    %490 = arith.addf %418, %489 : vector<8x256xf32>
    %491 = vector.broadcast %400 : f32 to vector<8x256xf32>
    %492 = arith.mulf %491, %96 : vector<8x256xf32>
    %493 = arith.addf %490, %492 : vector<8x256xf32>
    %494 = vector.broadcast %398 : f32 to vector<8x256xf32>
    %495 = arith.mulf %494, %117 : vector<8x256xf32>
    %496 = arith.addf %493, %495 : vector<8x256xf32>
    %497 = vector.broadcast %401 : f32 to vector<8x256xf32>
    %498 = arith.mulf %497, %138 : vector<8x256xf32>
    %499 = arith.addf %496, %498 : vector<8x256xf32>
    %500 = vector.broadcast %399 : f32 to vector<8x256xf32>
    %501 = arith.mulf %500, %159 : vector<8x256xf32>
    %502 = arith.addf %499, %501 : vector<8x256xf32>
    %503 = vector.broadcast %402 : f32 to vector<8x256xf32>
    %504 = arith.mulf %503, %180 : vector<8x256xf32>
    %505 = arith.addf %502, %504 : vector<8x256xf32>
    %506 = arith.maximumf %487, %505 : vector<8x256xf32>
    %cst_69 = arith.constant 0.000000e+00 : f32
    %507 = vector.broadcast %cst_69 : f32 to vector<8x256xf32>
    %508 = arith.maximumf %506, %507 : vector<8x256xf32>
    %509 = vector.broadcast %403 : f32 to vector<8x256xf32>
    %510 = arith.mulf %509, %424 : vector<8x256xf32>
    %511 = arith.addf %420, %510 : vector<8x256xf32>
    %512 = vector.broadcast %406 : f32 to vector<8x256xf32>
    %513 = arith.mulf %512, %426 : vector<8x256xf32>
    %514 = arith.addf %511, %513 : vector<8x256xf32>
    %515 = vector.broadcast %404 : f32 to vector<8x256xf32>
    %516 = arith.mulf %515, %75 : vector<8x256xf32>
    %517 = arith.addf %514, %516 : vector<8x256xf32>
    %518 = vector.broadcast %407 : f32 to vector<8x256xf32>
    %519 = arith.mulf %518, %96 : vector<8x256xf32>
    %520 = arith.addf %517, %519 : vector<8x256xf32>
    %521 = vector.broadcast %405 : f32 to vector<8x256xf32>
    %522 = arith.mulf %521, %117 : vector<8x256xf32>
    %523 = arith.addf %520, %522 : vector<8x256xf32>
    %524 = vector.broadcast %408 : f32 to vector<8x256xf32>
    %525 = arith.mulf %524, %138 : vector<8x256xf32>
    %526 = arith.addf %523, %525 : vector<8x256xf32>
    %527 = vector.broadcast %403 : f32 to vector<8x256xf32>
    %528 = arith.mulf %527, %75 : vector<8x256xf32>
    %529 = arith.addf %420, %528 : vector<8x256xf32>
    %530 = vector.broadcast %406 : f32 to vector<8x256xf32>
    %531 = arith.mulf %530, %96 : vector<8x256xf32>
    %532 = arith.addf %529, %531 : vector<8x256xf32>
    %533 = vector.broadcast %404 : f32 to vector<8x256xf32>
    %534 = arith.mulf %533, %117 : vector<8x256xf32>
    %535 = arith.addf %532, %534 : vector<8x256xf32>
    %536 = vector.broadcast %407 : f32 to vector<8x256xf32>
    %537 = arith.mulf %536, %138 : vector<8x256xf32>
    %538 = arith.addf %535, %537 : vector<8x256xf32>
    %539 = vector.broadcast %405 : f32 to vector<8x256xf32>
    %540 = arith.mulf %539, %159 : vector<8x256xf32>
    %541 = arith.addf %538, %540 : vector<8x256xf32>
    %542 = vector.broadcast %408 : f32 to vector<8x256xf32>
    %543 = arith.mulf %542, %180 : vector<8x256xf32>
    %544 = arith.addf %541, %543 : vector<8x256xf32>
    %545 = arith.maximumf %526, %544 : vector<8x256xf32>
    %cst_70 = arith.constant 0.000000e+00 : f32
    %546 = vector.broadcast %cst_70 : f32 to vector<8x256xf32>
    %547 = arith.maximumf %545, %546 : vector<8x256xf32>
    %548 = vector.broadcast %409 : f32 to vector<8x256xf32>
    %549 = arith.mulf %548, %424 : vector<8x256xf32>
    %550 = arith.addf %422, %549 : vector<8x256xf32>
    %551 = vector.broadcast %412 : f32 to vector<8x256xf32>
    %552 = arith.mulf %551, %426 : vector<8x256xf32>
    %553 = arith.addf %550, %552 : vector<8x256xf32>
    %554 = vector.broadcast %410 : f32 to vector<8x256xf32>
    %555 = arith.mulf %554, %75 : vector<8x256xf32>
    %556 = arith.addf %553, %555 : vector<8x256xf32>
    %557 = vector.broadcast %413 : f32 to vector<8x256xf32>
    %558 = arith.mulf %557, %96 : vector<8x256xf32>
    %559 = arith.addf %556, %558 : vector<8x256xf32>
    %560 = vector.broadcast %411 : f32 to vector<8x256xf32>
    %561 = arith.mulf %560, %117 : vector<8x256xf32>
    %562 = arith.addf %559, %561 : vector<8x256xf32>
    %563 = vector.broadcast %414 : f32 to vector<8x256xf32>
    %564 = arith.mulf %563, %138 : vector<8x256xf32>
    %565 = arith.addf %562, %564 : vector<8x256xf32>
    %566 = vector.broadcast %409 : f32 to vector<8x256xf32>
    %567 = arith.mulf %566, %75 : vector<8x256xf32>
    %568 = arith.addf %422, %567 : vector<8x256xf32>
    %569 = vector.broadcast %412 : f32 to vector<8x256xf32>
    %570 = arith.mulf %569, %96 : vector<8x256xf32>
    %571 = arith.addf %568, %570 : vector<8x256xf32>
    %572 = vector.broadcast %410 : f32 to vector<8x256xf32>
    %573 = arith.mulf %572, %117 : vector<8x256xf32>
    %574 = arith.addf %571, %573 : vector<8x256xf32>
    %575 = vector.broadcast %413 : f32 to vector<8x256xf32>
    %576 = arith.mulf %575, %138 : vector<8x256xf32>
    %577 = arith.addf %574, %576 : vector<8x256xf32>
    %578 = vector.broadcast %411 : f32 to vector<8x256xf32>
    %579 = arith.mulf %578, %159 : vector<8x256xf32>
    %580 = arith.addf %577, %579 : vector<8x256xf32>
    %581 = vector.broadcast %414 : f32 to vector<8x256xf32>
    %582 = arith.mulf %581, %180 : vector<8x256xf32>
    %583 = arith.addf %580, %582 : vector<8x256xf32>
    %584 = arith.maximumf %565, %583 : vector<8x256xf32>
    %cst_71 = arith.constant 0.000000e+00 : f32
    %585 = vector.broadcast %cst_71 : f32 to vector<8x256xf32>
    %586 = arith.maximumf %584, %585 : vector<8x256xf32>
    %587 = vector.broadcast %391 : f32 to vector<8x256xf32>
    %588 = arith.mulf %587, %117 : vector<8x256xf32>
    %589 = arith.addf %416, %588 : vector<8x256xf32>
    %590 = vector.broadcast %394 : f32 to vector<8x256xf32>
    %591 = arith.mulf %590, %138 : vector<8x256xf32>
    %592 = arith.addf %589, %591 : vector<8x256xf32>
    %593 = vector.broadcast %392 : f32 to vector<8x256xf32>
    %594 = arith.mulf %593, %159 : vector<8x256xf32>
    %595 = arith.addf %592, %594 : vector<8x256xf32>
    %596 = vector.broadcast %395 : f32 to vector<8x256xf32>
    %597 = arith.mulf %596, %180 : vector<8x256xf32>
    %598 = arith.addf %595, %597 : vector<8x256xf32>
    %599 = vector.broadcast %393 : f32 to vector<8x256xf32>
    %600 = arith.mulf %599, %201 : vector<8x256xf32>
    %601 = arith.addf %598, %600 : vector<8x256xf32>
    %602 = vector.broadcast %396 : f32 to vector<8x256xf32>
    %603 = arith.mulf %602, %222 : vector<8x256xf32>
    %604 = arith.addf %601, %603 : vector<8x256xf32>
    %605 = vector.broadcast %391 : f32 to vector<8x256xf32>
    %606 = arith.mulf %605, %159 : vector<8x256xf32>
    %607 = arith.addf %416, %606 : vector<8x256xf32>
    %608 = vector.broadcast %394 : f32 to vector<8x256xf32>
    %609 = arith.mulf %608, %180 : vector<8x256xf32>
    %610 = arith.addf %607, %609 : vector<8x256xf32>
    %611 = vector.broadcast %392 : f32 to vector<8x256xf32>
    %612 = arith.mulf %611, %201 : vector<8x256xf32>
    %613 = arith.addf %610, %612 : vector<8x256xf32>
    %614 = vector.broadcast %395 : f32 to vector<8x256xf32>
    %615 = arith.mulf %614, %222 : vector<8x256xf32>
    %616 = arith.addf %613, %615 : vector<8x256xf32>
    %617 = vector.broadcast %393 : f32 to vector<8x256xf32>
    %618 = arith.mulf %617, %243 : vector<8x256xf32>
    %619 = arith.addf %616, %618 : vector<8x256xf32>
    %620 = vector.broadcast %396 : f32 to vector<8x256xf32>
    %621 = arith.mulf %620, %264 : vector<8x256xf32>
    %622 = arith.addf %619, %621 : vector<8x256xf32>
    %623 = arith.maximumf %604, %622 : vector<8x256xf32>
    %cst_72 = arith.constant 0.000000e+00 : f32
    %624 = vector.broadcast %cst_72 : f32 to vector<8x256xf32>
    %625 = arith.maximumf %623, %624 : vector<8x256xf32>
    %626 = vector.broadcast %397 : f32 to vector<8x256xf32>
    %627 = arith.mulf %626, %117 : vector<8x256xf32>
    %628 = arith.addf %418, %627 : vector<8x256xf32>
    %629 = vector.broadcast %400 : f32 to vector<8x256xf32>
    %630 = arith.mulf %629, %138 : vector<8x256xf32>
    %631 = arith.addf %628, %630 : vector<8x256xf32>
    %632 = vector.broadcast %398 : f32 to vector<8x256xf32>
    %633 = arith.mulf %632, %159 : vector<8x256xf32>
    %634 = arith.addf %631, %633 : vector<8x256xf32>
    %635 = vector.broadcast %401 : f32 to vector<8x256xf32>
    %636 = arith.mulf %635, %180 : vector<8x256xf32>
    %637 = arith.addf %634, %636 : vector<8x256xf32>
    %638 = vector.broadcast %399 : f32 to vector<8x256xf32>
    %639 = arith.mulf %638, %201 : vector<8x256xf32>
    %640 = arith.addf %637, %639 : vector<8x256xf32>
    %641 = vector.broadcast %402 : f32 to vector<8x256xf32>
    %642 = arith.mulf %641, %222 : vector<8x256xf32>
    %643 = arith.addf %640, %642 : vector<8x256xf32>
    %644 = vector.broadcast %397 : f32 to vector<8x256xf32>
    %645 = arith.mulf %644, %159 : vector<8x256xf32>
    %646 = arith.addf %418, %645 : vector<8x256xf32>
    %647 = vector.broadcast %400 : f32 to vector<8x256xf32>
    %648 = arith.mulf %647, %180 : vector<8x256xf32>
    %649 = arith.addf %646, %648 : vector<8x256xf32>
    %650 = vector.broadcast %398 : f32 to vector<8x256xf32>
    %651 = arith.mulf %650, %201 : vector<8x256xf32>
    %652 = arith.addf %649, %651 : vector<8x256xf32>
    %653 = vector.broadcast %401 : f32 to vector<8x256xf32>
    %654 = arith.mulf %653, %222 : vector<8x256xf32>
    %655 = arith.addf %652, %654 : vector<8x256xf32>
    %656 = vector.broadcast %399 : f32 to vector<8x256xf32>
    %657 = arith.mulf %656, %243 : vector<8x256xf32>
    %658 = arith.addf %655, %657 : vector<8x256xf32>
    %659 = vector.broadcast %402 : f32 to vector<8x256xf32>
    %660 = arith.mulf %659, %264 : vector<8x256xf32>
    %661 = arith.addf %658, %660 : vector<8x256xf32>
    %662 = arith.maximumf %643, %661 : vector<8x256xf32>
    %cst_73 = arith.constant 0.000000e+00 : f32
    %663 = vector.broadcast %cst_73 : f32 to vector<8x256xf32>
    %664 = arith.maximumf %662, %663 : vector<8x256xf32>
    %665 = vector.broadcast %403 : f32 to vector<8x256xf32>
    %666 = arith.mulf %665, %117 : vector<8x256xf32>
    %667 = arith.addf %420, %666 : vector<8x256xf32>
    %668 = vector.broadcast %406 : f32 to vector<8x256xf32>
    %669 = arith.mulf %668, %138 : vector<8x256xf32>
    %670 = arith.addf %667, %669 : vector<8x256xf32>
    %671 = vector.broadcast %404 : f32 to vector<8x256xf32>
    %672 = arith.mulf %671, %159 : vector<8x256xf32>
    %673 = arith.addf %670, %672 : vector<8x256xf32>
    %674 = vector.broadcast %407 : f32 to vector<8x256xf32>
    %675 = arith.mulf %674, %180 : vector<8x256xf32>
    %676 = arith.addf %673, %675 : vector<8x256xf32>
    %677 = vector.broadcast %405 : f32 to vector<8x256xf32>
    %678 = arith.mulf %677, %201 : vector<8x256xf32>
    %679 = arith.addf %676, %678 : vector<8x256xf32>
    %680 = vector.broadcast %408 : f32 to vector<8x256xf32>
    %681 = arith.mulf %680, %222 : vector<8x256xf32>
    %682 = arith.addf %679, %681 : vector<8x256xf32>
    %683 = vector.broadcast %403 : f32 to vector<8x256xf32>
    %684 = arith.mulf %683, %159 : vector<8x256xf32>
    %685 = arith.addf %420, %684 : vector<8x256xf32>
    %686 = vector.broadcast %406 : f32 to vector<8x256xf32>
    %687 = arith.mulf %686, %180 : vector<8x256xf32>
    %688 = arith.addf %685, %687 : vector<8x256xf32>
    %689 = vector.broadcast %404 : f32 to vector<8x256xf32>
    %690 = arith.mulf %689, %201 : vector<8x256xf32>
    %691 = arith.addf %688, %690 : vector<8x256xf32>
    %692 = vector.broadcast %407 : f32 to vector<8x256xf32>
    %693 = arith.mulf %692, %222 : vector<8x256xf32>
    %694 = arith.addf %691, %693 : vector<8x256xf32>
    %695 = vector.broadcast %405 : f32 to vector<8x256xf32>
    %696 = arith.mulf %695, %243 : vector<8x256xf32>
    %697 = arith.addf %694, %696 : vector<8x256xf32>
    %698 = vector.broadcast %408 : f32 to vector<8x256xf32>
    %699 = arith.mulf %698, %264 : vector<8x256xf32>
    %700 = arith.addf %697, %699 : vector<8x256xf32>
    %701 = arith.maximumf %682, %700 : vector<8x256xf32>
    %cst_74 = arith.constant 0.000000e+00 : f32
    %702 = vector.broadcast %cst_74 : f32 to vector<8x256xf32>
    %703 = arith.maximumf %701, %702 : vector<8x256xf32>
    %704 = vector.broadcast %409 : f32 to vector<8x256xf32>
    %705 = arith.mulf %704, %117 : vector<8x256xf32>
    %706 = arith.addf %422, %705 : vector<8x256xf32>
    %707 = vector.broadcast %412 : f32 to vector<8x256xf32>
    %708 = arith.mulf %707, %138 : vector<8x256xf32>
    %709 = arith.addf %706, %708 : vector<8x256xf32>
    %710 = vector.broadcast %410 : f32 to vector<8x256xf32>
    %711 = arith.mulf %710, %159 : vector<8x256xf32>
    %712 = arith.addf %709, %711 : vector<8x256xf32>
    %713 = vector.broadcast %413 : f32 to vector<8x256xf32>
    %714 = arith.mulf %713, %180 : vector<8x256xf32>
    %715 = arith.addf %712, %714 : vector<8x256xf32>
    %716 = vector.broadcast %411 : f32 to vector<8x256xf32>
    %717 = arith.mulf %716, %201 : vector<8x256xf32>
    %718 = arith.addf %715, %717 : vector<8x256xf32>
    %719 = vector.broadcast %414 : f32 to vector<8x256xf32>
    %720 = arith.mulf %719, %222 : vector<8x256xf32>
    %721 = arith.addf %718, %720 : vector<8x256xf32>
    %722 = vector.broadcast %409 : f32 to vector<8x256xf32>
    %723 = arith.mulf %722, %159 : vector<8x256xf32>
    %724 = arith.addf %422, %723 : vector<8x256xf32>
    %725 = vector.broadcast %412 : f32 to vector<8x256xf32>
    %726 = arith.mulf %725, %180 : vector<8x256xf32>
    %727 = arith.addf %724, %726 : vector<8x256xf32>
    %728 = vector.broadcast %410 : f32 to vector<8x256xf32>
    %729 = arith.mulf %728, %201 : vector<8x256xf32>
    %730 = arith.addf %727, %729 : vector<8x256xf32>
    %731 = vector.broadcast %413 : f32 to vector<8x256xf32>
    %732 = arith.mulf %731, %222 : vector<8x256xf32>
    %733 = arith.addf %730, %732 : vector<8x256xf32>
    %734 = vector.broadcast %411 : f32 to vector<8x256xf32>
    %735 = arith.mulf %734, %243 : vector<8x256xf32>
    %736 = arith.addf %733, %735 : vector<8x256xf32>
    %737 = vector.broadcast %414 : f32 to vector<8x256xf32>
    %738 = arith.mulf %737, %264 : vector<8x256xf32>
    %739 = arith.addf %736, %738 : vector<8x256xf32>
    %740 = arith.maximumf %721, %739 : vector<8x256xf32>
    %cst_75 = arith.constant 0.000000e+00 : f32
    %741 = vector.broadcast %cst_75 : f32 to vector<8x256xf32>
    %742 = arith.maximumf %740, %741 : vector<8x256xf32>
    %743 = vector.broadcast %391 : f32 to vector<8x256xf32>
    %744 = arith.mulf %743, %201 : vector<8x256xf32>
    %745 = arith.addf %416, %744 : vector<8x256xf32>
    %746 = vector.broadcast %394 : f32 to vector<8x256xf32>
    %747 = arith.mulf %746, %222 : vector<8x256xf32>
    %748 = arith.addf %745, %747 : vector<8x256xf32>
    %749 = vector.broadcast %392 : f32 to vector<8x256xf32>
    %750 = arith.mulf %749, %243 : vector<8x256xf32>
    %751 = arith.addf %748, %750 : vector<8x256xf32>
    %752 = vector.broadcast %395 : f32 to vector<8x256xf32>
    %753 = arith.mulf %752, %264 : vector<8x256xf32>
    %754 = arith.addf %751, %753 : vector<8x256xf32>
    %755 = vector.broadcast %393 : f32 to vector<8x256xf32>
    %756 = arith.mulf %755, %285 : vector<8x256xf32>
    %757 = arith.addf %754, %756 : vector<8x256xf32>
    %758 = vector.broadcast %396 : f32 to vector<8x256xf32>
    %759 = arith.mulf %758, %306 : vector<8x256xf32>
    %760 = arith.addf %757, %759 : vector<8x256xf32>
    %761 = vector.broadcast %391 : f32 to vector<8x256xf32>
    %762 = arith.mulf %761, %243 : vector<8x256xf32>
    %763 = arith.addf %416, %762 : vector<8x256xf32>
    %764 = vector.broadcast %394 : f32 to vector<8x256xf32>
    %765 = arith.mulf %764, %264 : vector<8x256xf32>
    %766 = arith.addf %763, %765 : vector<8x256xf32>
    %767 = vector.broadcast %392 : f32 to vector<8x256xf32>
    %768 = arith.mulf %767, %285 : vector<8x256xf32>
    %769 = arith.addf %766, %768 : vector<8x256xf32>
    %770 = vector.broadcast %395 : f32 to vector<8x256xf32>
    %771 = arith.mulf %770, %306 : vector<8x256xf32>
    %772 = arith.addf %769, %771 : vector<8x256xf32>
    %773 = vector.broadcast %393 : f32 to vector<8x256xf32>
    %774 = arith.mulf %773, %327 : vector<8x256xf32>
    %775 = arith.addf %772, %774 : vector<8x256xf32>
    %776 = vector.broadcast %396 : f32 to vector<8x256xf32>
    %777 = arith.mulf %776, %348 : vector<8x256xf32>
    %778 = arith.addf %775, %777 : vector<8x256xf32>
    %779 = arith.maximumf %760, %778 : vector<8x256xf32>
    %cst_76 = arith.constant 0.000000e+00 : f32
    %780 = vector.broadcast %cst_76 : f32 to vector<8x256xf32>
    %781 = arith.maximumf %779, %780 : vector<8x256xf32>
    %782 = vector.broadcast %397 : f32 to vector<8x256xf32>
    %783 = arith.mulf %782, %201 : vector<8x256xf32>
    %784 = arith.addf %418, %783 : vector<8x256xf32>
    %785 = vector.broadcast %400 : f32 to vector<8x256xf32>
    %786 = arith.mulf %785, %222 : vector<8x256xf32>
    %787 = arith.addf %784, %786 : vector<8x256xf32>
    %788 = vector.broadcast %398 : f32 to vector<8x256xf32>
    %789 = arith.mulf %788, %243 : vector<8x256xf32>
    %790 = arith.addf %787, %789 : vector<8x256xf32>
    %791 = vector.broadcast %401 : f32 to vector<8x256xf32>
    %792 = arith.mulf %791, %264 : vector<8x256xf32>
    %793 = arith.addf %790, %792 : vector<8x256xf32>
    %794 = vector.broadcast %399 : f32 to vector<8x256xf32>
    %795 = arith.mulf %794, %285 : vector<8x256xf32>
    %796 = arith.addf %793, %795 : vector<8x256xf32>
    %797 = vector.broadcast %402 : f32 to vector<8x256xf32>
    %798 = arith.mulf %797, %306 : vector<8x256xf32>
    %799 = arith.addf %796, %798 : vector<8x256xf32>
    %800 = vector.broadcast %397 : f32 to vector<8x256xf32>
    %801 = arith.mulf %800, %243 : vector<8x256xf32>
    %802 = arith.addf %418, %801 : vector<8x256xf32>
    %803 = vector.broadcast %400 : f32 to vector<8x256xf32>
    %804 = arith.mulf %803, %264 : vector<8x256xf32>
    %805 = arith.addf %802, %804 : vector<8x256xf32>
    %806 = vector.broadcast %398 : f32 to vector<8x256xf32>
    %807 = arith.mulf %806, %285 : vector<8x256xf32>
    %808 = arith.addf %805, %807 : vector<8x256xf32>
    %809 = vector.broadcast %401 : f32 to vector<8x256xf32>
    %810 = arith.mulf %809, %306 : vector<8x256xf32>
    %811 = arith.addf %808, %810 : vector<8x256xf32>
    %812 = vector.broadcast %399 : f32 to vector<8x256xf32>
    %813 = arith.mulf %812, %327 : vector<8x256xf32>
    %814 = arith.addf %811, %813 : vector<8x256xf32>
    %815 = vector.broadcast %402 : f32 to vector<8x256xf32>
    %816 = arith.mulf %815, %348 : vector<8x256xf32>
    %817 = arith.addf %814, %816 : vector<8x256xf32>
    %818 = arith.maximumf %799, %817 : vector<8x256xf32>
    %cst_77 = arith.constant 0.000000e+00 : f32
    %819 = vector.broadcast %cst_77 : f32 to vector<8x256xf32>
    %820 = arith.maximumf %818, %819 : vector<8x256xf32>
    %821 = vector.broadcast %403 : f32 to vector<8x256xf32>
    %822 = arith.mulf %821, %201 : vector<8x256xf32>
    %823 = arith.addf %420, %822 : vector<8x256xf32>
    %824 = vector.broadcast %406 : f32 to vector<8x256xf32>
    %825 = arith.mulf %824, %222 : vector<8x256xf32>
    %826 = arith.addf %823, %825 : vector<8x256xf32>
    %827 = vector.broadcast %404 : f32 to vector<8x256xf32>
    %828 = arith.mulf %827, %243 : vector<8x256xf32>
    %829 = arith.addf %826, %828 : vector<8x256xf32>
    %830 = vector.broadcast %407 : f32 to vector<8x256xf32>
    %831 = arith.mulf %830, %264 : vector<8x256xf32>
    %832 = arith.addf %829, %831 : vector<8x256xf32>
    %833 = vector.broadcast %405 : f32 to vector<8x256xf32>
    %834 = arith.mulf %833, %285 : vector<8x256xf32>
    %835 = arith.addf %832, %834 : vector<8x256xf32>
    %836 = vector.broadcast %408 : f32 to vector<8x256xf32>
    %837 = arith.mulf %836, %306 : vector<8x256xf32>
    %838 = arith.addf %835, %837 : vector<8x256xf32>
    %839 = vector.broadcast %403 : f32 to vector<8x256xf32>
    %840 = arith.mulf %839, %243 : vector<8x256xf32>
    %841 = arith.addf %420, %840 : vector<8x256xf32>
    %842 = vector.broadcast %406 : f32 to vector<8x256xf32>
    %843 = arith.mulf %842, %264 : vector<8x256xf32>
    %844 = arith.addf %841, %843 : vector<8x256xf32>
    %845 = vector.broadcast %404 : f32 to vector<8x256xf32>
    %846 = arith.mulf %845, %285 : vector<8x256xf32>
    %847 = arith.addf %844, %846 : vector<8x256xf32>
    %848 = vector.broadcast %407 : f32 to vector<8x256xf32>
    %849 = arith.mulf %848, %306 : vector<8x256xf32>
    %850 = arith.addf %847, %849 : vector<8x256xf32>
    %851 = vector.broadcast %405 : f32 to vector<8x256xf32>
    %852 = arith.mulf %851, %327 : vector<8x256xf32>
    %853 = arith.addf %850, %852 : vector<8x256xf32>
    %854 = vector.broadcast %408 : f32 to vector<8x256xf32>
    %855 = arith.mulf %854, %348 : vector<8x256xf32>
    %856 = arith.addf %853, %855 : vector<8x256xf32>
    %857 = arith.maximumf %838, %856 : vector<8x256xf32>
    %cst_78 = arith.constant 0.000000e+00 : f32
    %858 = vector.broadcast %cst_78 : f32 to vector<8x256xf32>
    %859 = arith.maximumf %857, %858 : vector<8x256xf32>
    %860 = vector.broadcast %409 : f32 to vector<8x256xf32>
    %861 = arith.mulf %860, %201 : vector<8x256xf32>
    %862 = arith.addf %422, %861 : vector<8x256xf32>
    %863 = vector.broadcast %412 : f32 to vector<8x256xf32>
    %864 = arith.mulf %863, %222 : vector<8x256xf32>
    %865 = arith.addf %862, %864 : vector<8x256xf32>
    %866 = vector.broadcast %410 : f32 to vector<8x256xf32>
    %867 = arith.mulf %866, %243 : vector<8x256xf32>
    %868 = arith.addf %865, %867 : vector<8x256xf32>
    %869 = vector.broadcast %413 : f32 to vector<8x256xf32>
    %870 = arith.mulf %869, %264 : vector<8x256xf32>
    %871 = arith.addf %868, %870 : vector<8x256xf32>
    %872 = vector.broadcast %411 : f32 to vector<8x256xf32>
    %873 = arith.mulf %872, %285 : vector<8x256xf32>
    %874 = arith.addf %871, %873 : vector<8x256xf32>
    %875 = vector.broadcast %414 : f32 to vector<8x256xf32>
    %876 = arith.mulf %875, %306 : vector<8x256xf32>
    %877 = arith.addf %874, %876 : vector<8x256xf32>
    %878 = vector.broadcast %409 : f32 to vector<8x256xf32>
    %879 = arith.mulf %878, %243 : vector<8x256xf32>
    %880 = arith.addf %422, %879 : vector<8x256xf32>
    %881 = vector.broadcast %412 : f32 to vector<8x256xf32>
    %882 = arith.mulf %881, %264 : vector<8x256xf32>
    %883 = arith.addf %880, %882 : vector<8x256xf32>
    %884 = vector.broadcast %410 : f32 to vector<8x256xf32>
    %885 = arith.mulf %884, %285 : vector<8x256xf32>
    %886 = arith.addf %883, %885 : vector<8x256xf32>
    %887 = vector.broadcast %413 : f32 to vector<8x256xf32>
    %888 = arith.mulf %887, %306 : vector<8x256xf32>
    %889 = arith.addf %886, %888 : vector<8x256xf32>
    %890 = vector.broadcast %411 : f32 to vector<8x256xf32>
    %891 = arith.mulf %890, %327 : vector<8x256xf32>
    %892 = arith.addf %889, %891 : vector<8x256xf32>
    %893 = vector.broadcast %414 : f32 to vector<8x256xf32>
    %894 = arith.mulf %893, %348 : vector<8x256xf32>
    %895 = arith.addf %892, %894 : vector<8x256xf32>
    %896 = arith.maximumf %877, %895 : vector<8x256xf32>
    %cst_79 = arith.constant 0.000000e+00 : f32
    %897 = vector.broadcast %cst_79 : f32 to vector<8x256xf32>
    %898 = arith.maximumf %896, %897 : vector<8x256xf32>
    %899 = vector.broadcast %391 : f32 to vector<8x256xf32>
    %900 = arith.mulf %899, %285 : vector<8x256xf32>
    %901 = arith.addf %416, %900 : vector<8x256xf32>
    %902 = vector.broadcast %394 : f32 to vector<8x256xf32>
    %903 = arith.mulf %902, %306 : vector<8x256xf32>
    %904 = arith.addf %901, %903 : vector<8x256xf32>
    %905 = vector.broadcast %392 : f32 to vector<8x256xf32>
    %906 = arith.mulf %905, %327 : vector<8x256xf32>
    %907 = arith.addf %904, %906 : vector<8x256xf32>
    %908 = vector.broadcast %395 : f32 to vector<8x256xf32>
    %909 = arith.mulf %908, %348 : vector<8x256xf32>
    %910 = arith.addf %907, %909 : vector<8x256xf32>
    %911 = vector.broadcast %393 : f32 to vector<8x256xf32>
    %912 = arith.mulf %911, %369 : vector<8x256xf32>
    %913 = arith.addf %910, %912 : vector<8x256xf32>
    %914 = vector.broadcast %396 : f32 to vector<8x256xf32>
    %915 = arith.mulf %914, %390 : vector<8x256xf32>
    %916 = arith.addf %913, %915 : vector<8x256xf32>
    %917 = vector.broadcast %391 : f32 to vector<8x256xf32>
    %918 = arith.mulf %917, %327 : vector<8x256xf32>
    %919 = arith.addf %416, %918 : vector<8x256xf32>
    %920 = vector.broadcast %394 : f32 to vector<8x256xf32>
    %921 = arith.mulf %920, %348 : vector<8x256xf32>
    %922 = arith.addf %919, %921 : vector<8x256xf32>
    %923 = vector.broadcast %392 : f32 to vector<8x256xf32>
    %924 = arith.mulf %923, %369 : vector<8x256xf32>
    %925 = arith.addf %922, %924 : vector<8x256xf32>
    %926 = vector.broadcast %395 : f32 to vector<8x256xf32>
    %927 = arith.mulf %926, %390 : vector<8x256xf32>
    %928 = arith.addf %925, %927 : vector<8x256xf32>
    %929 = vector.broadcast %393 : f32 to vector<8x256xf32>
    %930 = arith.mulf %929, %428 : vector<8x256xf32>
    %931 = arith.addf %928, %930 : vector<8x256xf32>
    %932 = vector.broadcast %396 : f32 to vector<8x256xf32>
    %933 = arith.mulf %932, %430 : vector<8x256xf32>
    %934 = arith.addf %931, %933 : vector<8x256xf32>
    %935 = arith.maximumf %916, %934 : vector<8x256xf32>
    %cst_80 = arith.constant 0.000000e+00 : f32
    %936 = vector.broadcast %cst_80 : f32 to vector<8x256xf32>
    %937 = arith.maximumf %935, %936 : vector<8x256xf32>
    %938 = vector.broadcast %397 : f32 to vector<8x256xf32>
    %939 = arith.mulf %938, %285 : vector<8x256xf32>
    %940 = arith.addf %418, %939 : vector<8x256xf32>
    %941 = vector.broadcast %400 : f32 to vector<8x256xf32>
    %942 = arith.mulf %941, %306 : vector<8x256xf32>
    %943 = arith.addf %940, %942 : vector<8x256xf32>
    %944 = vector.broadcast %398 : f32 to vector<8x256xf32>
    %945 = arith.mulf %944, %327 : vector<8x256xf32>
    %946 = arith.addf %943, %945 : vector<8x256xf32>
    %947 = vector.broadcast %401 : f32 to vector<8x256xf32>
    %948 = arith.mulf %947, %348 : vector<8x256xf32>
    %949 = arith.addf %946, %948 : vector<8x256xf32>
    %950 = vector.broadcast %399 : f32 to vector<8x256xf32>
    %951 = arith.mulf %950, %369 : vector<8x256xf32>
    %952 = arith.addf %949, %951 : vector<8x256xf32>
    %953 = vector.broadcast %402 : f32 to vector<8x256xf32>
    %954 = arith.mulf %953, %390 : vector<8x256xf32>
    %955 = arith.addf %952, %954 : vector<8x256xf32>
    %956 = vector.broadcast %397 : f32 to vector<8x256xf32>
    %957 = arith.mulf %956, %327 : vector<8x256xf32>
    %958 = arith.addf %418, %957 : vector<8x256xf32>
    %959 = vector.broadcast %400 : f32 to vector<8x256xf32>
    %960 = arith.mulf %959, %348 : vector<8x256xf32>
    %961 = arith.addf %958, %960 : vector<8x256xf32>
    %962 = vector.broadcast %398 : f32 to vector<8x256xf32>
    %963 = arith.mulf %962, %369 : vector<8x256xf32>
    %964 = arith.addf %961, %963 : vector<8x256xf32>
    %965 = vector.broadcast %401 : f32 to vector<8x256xf32>
    %966 = arith.mulf %965, %390 : vector<8x256xf32>
    %967 = arith.addf %964, %966 : vector<8x256xf32>
    %968 = vector.broadcast %399 : f32 to vector<8x256xf32>
    %969 = arith.mulf %968, %428 : vector<8x256xf32>
    %970 = arith.addf %967, %969 : vector<8x256xf32>
    %971 = vector.broadcast %402 : f32 to vector<8x256xf32>
    %972 = arith.mulf %971, %430 : vector<8x256xf32>
    %973 = arith.addf %970, %972 : vector<8x256xf32>
    %974 = arith.maximumf %955, %973 : vector<8x256xf32>
    %cst_81 = arith.constant 0.000000e+00 : f32
    %975 = vector.broadcast %cst_81 : f32 to vector<8x256xf32>
    %976 = arith.maximumf %974, %975 : vector<8x256xf32>
    %977 = vector.broadcast %403 : f32 to vector<8x256xf32>
    %978 = arith.mulf %977, %285 : vector<8x256xf32>
    %979 = arith.addf %420, %978 : vector<8x256xf32>
    %980 = vector.broadcast %406 : f32 to vector<8x256xf32>
    %981 = arith.mulf %980, %306 : vector<8x256xf32>
    %982 = arith.addf %979, %981 : vector<8x256xf32>
    %983 = vector.broadcast %404 : f32 to vector<8x256xf32>
    %984 = arith.mulf %983, %327 : vector<8x256xf32>
    %985 = arith.addf %982, %984 : vector<8x256xf32>
    %986 = vector.broadcast %407 : f32 to vector<8x256xf32>
    %987 = arith.mulf %986, %348 : vector<8x256xf32>
    %988 = arith.addf %985, %987 : vector<8x256xf32>
    %989 = vector.broadcast %405 : f32 to vector<8x256xf32>
    %990 = arith.mulf %989, %369 : vector<8x256xf32>
    %991 = arith.addf %988, %990 : vector<8x256xf32>
    %992 = vector.broadcast %408 : f32 to vector<8x256xf32>
    %993 = arith.mulf %992, %390 : vector<8x256xf32>
    %994 = arith.addf %991, %993 : vector<8x256xf32>
    %995 = vector.broadcast %403 : f32 to vector<8x256xf32>
    %996 = arith.mulf %995, %327 : vector<8x256xf32>
    %997 = arith.addf %420, %996 : vector<8x256xf32>
    %998 = vector.broadcast %406 : f32 to vector<8x256xf32>
    %999 = arith.mulf %998, %348 : vector<8x256xf32>
    %1000 = arith.addf %997, %999 : vector<8x256xf32>
    %1001 = vector.broadcast %404 : f32 to vector<8x256xf32>
    %1002 = arith.mulf %1001, %369 : vector<8x256xf32>
    %1003 = arith.addf %1000, %1002 : vector<8x256xf32>
    %1004 = vector.broadcast %407 : f32 to vector<8x256xf32>
    %1005 = arith.mulf %1004, %390 : vector<8x256xf32>
    %1006 = arith.addf %1003, %1005 : vector<8x256xf32>
    %1007 = vector.broadcast %405 : f32 to vector<8x256xf32>
    %1008 = arith.mulf %1007, %428 : vector<8x256xf32>
    %1009 = arith.addf %1006, %1008 : vector<8x256xf32>
    %1010 = vector.broadcast %408 : f32 to vector<8x256xf32>
    %1011 = arith.mulf %1010, %430 : vector<8x256xf32>
    %1012 = arith.addf %1009, %1011 : vector<8x256xf32>
    %1013 = arith.maximumf %994, %1012 : vector<8x256xf32>
    %cst_82 = arith.constant 0.000000e+00 : f32
    %1014 = vector.broadcast %cst_82 : f32 to vector<8x256xf32>
    %1015 = arith.maximumf %1013, %1014 : vector<8x256xf32>
    %1016 = vector.broadcast %409 : f32 to vector<8x256xf32>
    %1017 = arith.mulf %1016, %285 : vector<8x256xf32>
    %1018 = arith.addf %422, %1017 : vector<8x256xf32>
    %1019 = vector.broadcast %412 : f32 to vector<8x256xf32>
    %1020 = arith.mulf %1019, %306 : vector<8x256xf32>
    %1021 = arith.addf %1018, %1020 : vector<8x256xf32>
    %1022 = vector.broadcast %410 : f32 to vector<8x256xf32>
    %1023 = arith.mulf %1022, %327 : vector<8x256xf32>
    %1024 = arith.addf %1021, %1023 : vector<8x256xf32>
    %1025 = vector.broadcast %413 : f32 to vector<8x256xf32>
    %1026 = arith.mulf %1025, %348 : vector<8x256xf32>
    %1027 = arith.addf %1024, %1026 : vector<8x256xf32>
    %1028 = vector.broadcast %411 : f32 to vector<8x256xf32>
    %1029 = arith.mulf %1028, %369 : vector<8x256xf32>
    %1030 = arith.addf %1027, %1029 : vector<8x256xf32>
    %1031 = vector.broadcast %414 : f32 to vector<8x256xf32>
    %1032 = arith.mulf %1031, %390 : vector<8x256xf32>
    %1033 = arith.addf %1030, %1032 : vector<8x256xf32>
    %1034 = vector.broadcast %409 : f32 to vector<8x256xf32>
    %1035 = arith.mulf %1034, %327 : vector<8x256xf32>
    %1036 = arith.addf %422, %1035 : vector<8x256xf32>
    %1037 = vector.broadcast %412 : f32 to vector<8x256xf32>
    %1038 = arith.mulf %1037, %348 : vector<8x256xf32>
    %1039 = arith.addf %1036, %1038 : vector<8x256xf32>
    %1040 = vector.broadcast %410 : f32 to vector<8x256xf32>
    %1041 = arith.mulf %1040, %369 : vector<8x256xf32>
    %1042 = arith.addf %1039, %1041 : vector<8x256xf32>
    %1043 = vector.broadcast %413 : f32 to vector<8x256xf32>
    %1044 = arith.mulf %1043, %390 : vector<8x256xf32>
    %1045 = arith.addf %1042, %1044 : vector<8x256xf32>
    %1046 = vector.broadcast %411 : f32 to vector<8x256xf32>
    %1047 = arith.mulf %1046, %428 : vector<8x256xf32>
    %1048 = arith.addf %1045, %1047 : vector<8x256xf32>
    %1049 = vector.broadcast %414 : f32 to vector<8x256xf32>
    %1050 = arith.mulf %1049, %430 : vector<8x256xf32>
    %1051 = arith.addf %1048, %1050 : vector<8x256xf32>
    %1052 = arith.maximumf %1033, %1051 : vector<8x256xf32>
    %cst_83 = arith.constant 0.000000e+00 : f32
    %1053 = vector.broadcast %cst_83 : f32 to vector<8x256xf32>
    %1054 = arith.maximumf %1052, %1053 : vector<8x256xf32>
    %c38 = arith.constant 38 : index
    %1055 = memref.load %arg2[%c38] : memref<69xf32, #tpu.memory_space<smem>>
    %c39 = arith.constant 39 : index
    %1056 = memref.load %arg2[%c39] : memref<69xf32, #tpu.memory_space<smem>>
    %c40 = arith.constant 40 : index
    %1057 = memref.load %arg2[%c40] : memref<69xf32, #tpu.memory_space<smem>>
    %c41 = arith.constant 41 : index
    %1058 = memref.load %arg2[%c41] : memref<69xf32, #tpu.memory_space<smem>>
    %c42 = arith.constant 42 : index
    %1059 = memref.load %arg2[%c42] : memref<69xf32, #tpu.memory_space<smem>>
    %c43 = arith.constant 43 : index
    %1060 = memref.load %arg2[%c43] : memref<69xf32, #tpu.memory_space<smem>>
    %c44 = arith.constant 44 : index
    %1061 = memref.load %arg2[%c44] : memref<69xf32, #tpu.memory_space<smem>>
    %c45 = arith.constant 45 : index
    %1062 = memref.load %arg2[%c45] : memref<69xf32, #tpu.memory_space<smem>>
    %c46 = arith.constant 46 : index
    %1063 = memref.load %arg2[%c46] : memref<69xf32, #tpu.memory_space<smem>>
    %c47 = arith.constant 47 : index
    %1064 = memref.load %arg2[%c47] : memref<69xf32, #tpu.memory_space<smem>>
    %c48 = arith.constant 48 : index
    %1065 = memref.load %arg2[%c48] : memref<69xf32, #tpu.memory_space<smem>>
    %c49 = arith.constant 49 : index
    %1066 = memref.load %arg2[%c49] : memref<69xf32, #tpu.memory_space<smem>>
    %c50 = arith.constant 50 : index
    %1067 = memref.load %arg2[%c50] : memref<69xf32, #tpu.memory_space<smem>>
    %c51 = arith.constant 51 : index
    %1068 = memref.load %arg2[%c51] : memref<69xf32, #tpu.memory_space<smem>>
    %c52 = arith.constant 52 : index
    %1069 = memref.load %arg2[%c52] : memref<69xf32, #tpu.memory_space<smem>>
    %c53 = arith.constant 53 : index
    %1070 = memref.load %arg2[%c53] : memref<69xf32, #tpu.memory_space<smem>>
    %c54 = arith.constant 54 : index
    %1071 = memref.load %arg2[%c54] : memref<69xf32, #tpu.memory_space<smem>>
    %c55 = arith.constant 55 : index
    %1072 = memref.load %arg2[%c55] : memref<69xf32, #tpu.memory_space<smem>>
    %c56 = arith.constant 56 : index
    %1073 = memref.load %arg2[%c56] : memref<69xf32, #tpu.memory_space<smem>>
    %c57 = arith.constant 57 : index
    %1074 = memref.load %arg2[%c57] : memref<69xf32, #tpu.memory_space<smem>>
    %c58 = arith.constant 58 : index
    %1075 = memref.load %arg2[%c58] : memref<69xf32, #tpu.memory_space<smem>>
    %c59 = arith.constant 59 : index
    %1076 = memref.load %arg2[%c59] : memref<69xf32, #tpu.memory_space<smem>>
    %c60 = arith.constant 60 : index
    %1077 = memref.load %arg2[%c60] : memref<69xf32, #tpu.memory_space<smem>>
    %c61 = arith.constant 61 : index
    %1078 = memref.load %arg2[%c61] : memref<69xf32, #tpu.memory_space<smem>>
    %c36 = arith.constant 36 : index
    %1079 = memref.load %arg2[%c36] : memref<69xf32, #tpu.memory_space<smem>>
    %1080 = vector.broadcast %1079 : f32 to vector<8x256xf32>
    %c37 = arith.constant 37 : index
    %1081 = memref.load %arg2[%c37] : memref<69xf32, #tpu.memory_space<smem>>
    %1082 = vector.broadcast %1081 : f32 to vector<8x256xf32>
    %c1_i32_84 = arith.constant 1 : i32
    %1083 = tpu.dynamic_rotate %937 by %c1_i32_84 dim 1 : vector<8x256xf32>, i32 -> vector<8x256xf32>
    %1084 = arith.mulf %1083, %4 : vector<8x256xf32>
    %c1_i32_85 = arith.constant 1 : i32
    %1085 = tpu.dynamic_rotate %976 by %c1_i32_85 dim 1 : vector<8x256xf32>, i32 -> vector<8x256xf32>
    %1086 = arith.mulf %1085, %4 : vector<8x256xf32>
    %c1_i32_86 = arith.constant 1 : i32
    %1087 = tpu.dynamic_rotate %1015 by %c1_i32_86 dim 1 : vector<8x256xf32>, i32 -> vector<8x256xf32>
    %1088 = arith.mulf %1087, %4 : vector<8x256xf32>
    %c1_i32_87 = arith.constant 1 : i32
    %1089 = tpu.dynamic_rotate %1054 by %c1_i32_87 dim 1 : vector<8x256xf32>, i32 -> vector<8x256xf32>
    %1090 = arith.mulf %1089, %4 : vector<8x256xf32>
    %c255_i32_88 = arith.constant 255 : i32
    %1091 = tpu.dynamic_rotate %469 by %c255_i32_88 dim 1 : vector<8x256xf32>, i32 -> vector<8x256xf32>
    %1092 = arith.mulf %1091, %8 : vector<8x256xf32>
    %c255_i32_89 = arith.constant 255 : i32
    %1093 = tpu.dynamic_rotate %508 by %c255_i32_89 dim 1 : vector<8x256xf32>, i32 -> vector<8x256xf32>
    %1094 = arith.mulf %1093, %8 : vector<8x256xf32>
    %c255_i32_90 = arith.constant 255 : i32
    %1095 = tpu.dynamic_rotate %547 by %c255_i32_90 dim 1 : vector<8x256xf32>, i32 -> vector<8x256xf32>
    %1096 = arith.mulf %1095, %8 : vector<8x256xf32>
    %c255_i32_91 = arith.constant 255 : i32
    %1097 = tpu.dynamic_rotate %586 by %c255_i32_91 dim 1 : vector<8x256xf32>, i32 -> vector<8x256xf32>
    %1098 = arith.mulf %1097, %8 : vector<8x256xf32>
    %1099 = vector.broadcast %1055 : f32 to vector<8x256xf32>
    %1100 = arith.mulf %1099, %1084 : vector<8x256xf32>
    %1101 = arith.addf %1080, %1100 : vector<8x256xf32>
    %1102 = vector.broadcast %1058 : f32 to vector<8x256xf32>
    %1103 = arith.mulf %1102, %1086 : vector<8x256xf32>
    %1104 = arith.addf %1101, %1103 : vector<8x256xf32>
    %1105 = vector.broadcast %1061 : f32 to vector<8x256xf32>
    %1106 = arith.mulf %1105, %1088 : vector<8x256xf32>
    %1107 = arith.addf %1104, %1106 : vector<8x256xf32>
    %1108 = vector.broadcast %1064 : f32 to vector<8x256xf32>
    %1109 = arith.mulf %1108, %1090 : vector<8x256xf32>
    %1110 = arith.addf %1107, %1109 : vector<8x256xf32>
    %1111 = vector.broadcast %1056 : f32 to vector<8x256xf32>
    %1112 = arith.mulf %1111, %469 : vector<8x256xf32>
    %1113 = arith.addf %1110, %1112 : vector<8x256xf32>
    %1114 = vector.broadcast %1059 : f32 to vector<8x256xf32>
    %1115 = arith.mulf %1114, %508 : vector<8x256xf32>
    %1116 = arith.addf %1113, %1115 : vector<8x256xf32>
    %1117 = vector.broadcast %1062 : f32 to vector<8x256xf32>
    %1118 = arith.mulf %1117, %547 : vector<8x256xf32>
    %1119 = arith.addf %1116, %1118 : vector<8x256xf32>
    %1120 = vector.broadcast %1065 : f32 to vector<8x256xf32>
    %1121 = arith.mulf %1120, %586 : vector<8x256xf32>
    %1122 = arith.addf %1119, %1121 : vector<8x256xf32>
    %1123 = vector.broadcast %1057 : f32 to vector<8x256xf32>
    %1124 = arith.mulf %1123, %625 : vector<8x256xf32>
    %1125 = arith.addf %1122, %1124 : vector<8x256xf32>
    %1126 = vector.broadcast %1060 : f32 to vector<8x256xf32>
    %1127 = arith.mulf %1126, %664 : vector<8x256xf32>
    %1128 = arith.addf %1125, %1127 : vector<8x256xf32>
    %1129 = vector.broadcast %1063 : f32 to vector<8x256xf32>
    %1130 = arith.mulf %1129, %703 : vector<8x256xf32>
    %1131 = arith.addf %1128, %1130 : vector<8x256xf32>
    %1132 = vector.broadcast %1066 : f32 to vector<8x256xf32>
    %1133 = arith.mulf %1132, %742 : vector<8x256xf32>
    %1134 = arith.addf %1131, %1133 : vector<8x256xf32>
    %1135 = vector.broadcast %1055 : f32 to vector<8x256xf32>
    %1136 = arith.mulf %1135, %469 : vector<8x256xf32>
    %1137 = arith.addf %1080, %1136 : vector<8x256xf32>
    %1138 = vector.broadcast %1058 : f32 to vector<8x256xf32>
    %1139 = arith.mulf %1138, %508 : vector<8x256xf32>
    %1140 = arith.addf %1137, %1139 : vector<8x256xf32>
    %1141 = vector.broadcast %1061 : f32 to vector<8x256xf32>
    %1142 = arith.mulf %1141, %547 : vector<8x256xf32>
    %1143 = arith.addf %1140, %1142 : vector<8x256xf32>
    %1144 = vector.broadcast %1064 : f32 to vector<8x256xf32>
    %1145 = arith.mulf %1144, %586 : vector<8x256xf32>
    %1146 = arith.addf %1143, %1145 : vector<8x256xf32>
    %1147 = vector.broadcast %1056 : f32 to vector<8x256xf32>
    %1148 = arith.mulf %1147, %625 : vector<8x256xf32>
    %1149 = arith.addf %1146, %1148 : vector<8x256xf32>
    %1150 = vector.broadcast %1059 : f32 to vector<8x256xf32>
    %1151 = arith.mulf %1150, %664 : vector<8x256xf32>
    %1152 = arith.addf %1149, %1151 : vector<8x256xf32>
    %1153 = vector.broadcast %1062 : f32 to vector<8x256xf32>
    %1154 = arith.mulf %1153, %703 : vector<8x256xf32>
    %1155 = arith.addf %1152, %1154 : vector<8x256xf32>
    %1156 = vector.broadcast %1065 : f32 to vector<8x256xf32>
    %1157 = arith.mulf %1156, %742 : vector<8x256xf32>
    %1158 = arith.addf %1155, %1157 : vector<8x256xf32>
    %1159 = vector.broadcast %1057 : f32 to vector<8x256xf32>
    %1160 = arith.mulf %1159, %781 : vector<8x256xf32>
    %1161 = arith.addf %1158, %1160 : vector<8x256xf32>
    %1162 = vector.broadcast %1060 : f32 to vector<8x256xf32>
    %1163 = arith.mulf %1162, %820 : vector<8x256xf32>
    %1164 = arith.addf %1161, %1163 : vector<8x256xf32>
    %1165 = vector.broadcast %1063 : f32 to vector<8x256xf32>
    %1166 = arith.mulf %1165, %859 : vector<8x256xf32>
    %1167 = arith.addf %1164, %1166 : vector<8x256xf32>
    %1168 = vector.broadcast %1066 : f32 to vector<8x256xf32>
    %1169 = arith.mulf %1168, %898 : vector<8x256xf32>
    %1170 = arith.addf %1167, %1169 : vector<8x256xf32>
    %1171 = arith.maximumf %1134, %1170 : vector<8x256xf32>
    %cst_92 = arith.constant 0.000000e+00 : f32
    %1172 = vector.broadcast %cst_92 : f32 to vector<8x256xf32>
    %1173 = arith.maximumf %1171, %1172 : vector<8x256xf32>
    %1174 = vector.broadcast %1067 : f32 to vector<8x256xf32>
    %1175 = arith.mulf %1174, %1084 : vector<8x256xf32>
    %1176 = arith.addf %1082, %1175 : vector<8x256xf32>
    %1177 = vector.broadcast %1070 : f32 to vector<8x256xf32>
    %1178 = arith.mulf %1177, %1086 : vector<8x256xf32>
    %1179 = arith.addf %1176, %1178 : vector<8x256xf32>
    %1180 = vector.broadcast %1073 : f32 to vector<8x256xf32>
    %1181 = arith.mulf %1180, %1088 : vector<8x256xf32>
    %1182 = arith.addf %1179, %1181 : vector<8x256xf32>
    %1183 = vector.broadcast %1076 : f32 to vector<8x256xf32>
    %1184 = arith.mulf %1183, %1090 : vector<8x256xf32>
    %1185 = arith.addf %1182, %1184 : vector<8x256xf32>
    %1186 = vector.broadcast %1068 : f32 to vector<8x256xf32>
    %1187 = arith.mulf %1186, %469 : vector<8x256xf32>
    %1188 = arith.addf %1185, %1187 : vector<8x256xf32>
    %1189 = vector.broadcast %1071 : f32 to vector<8x256xf32>
    %1190 = arith.mulf %1189, %508 : vector<8x256xf32>
    %1191 = arith.addf %1188, %1190 : vector<8x256xf32>
    %1192 = vector.broadcast %1074 : f32 to vector<8x256xf32>
    %1193 = arith.mulf %1192, %547 : vector<8x256xf32>
    %1194 = arith.addf %1191, %1193 : vector<8x256xf32>
    %1195 = vector.broadcast %1077 : f32 to vector<8x256xf32>
    %1196 = arith.mulf %1195, %586 : vector<8x256xf32>
    %1197 = arith.addf %1194, %1196 : vector<8x256xf32>
    %1198 = vector.broadcast %1069 : f32 to vector<8x256xf32>
    %1199 = arith.mulf %1198, %625 : vector<8x256xf32>
    %1200 = arith.addf %1197, %1199 : vector<8x256xf32>
    %1201 = vector.broadcast %1072 : f32 to vector<8x256xf32>
    %1202 = arith.mulf %1201, %664 : vector<8x256xf32>
    %1203 = arith.addf %1200, %1202 : vector<8x256xf32>
    %1204 = vector.broadcast %1075 : f32 to vector<8x256xf32>
    %1205 = arith.mulf %1204, %703 : vector<8x256xf32>
    %1206 = arith.addf %1203, %1205 : vector<8x256xf32>
    %1207 = vector.broadcast %1078 : f32 to vector<8x256xf32>
    %1208 = arith.mulf %1207, %742 : vector<8x256xf32>
    %1209 = arith.addf %1206, %1208 : vector<8x256xf32>
    %1210 = vector.broadcast %1067 : f32 to vector<8x256xf32>
    %1211 = arith.mulf %1210, %469 : vector<8x256xf32>
    %1212 = arith.addf %1082, %1211 : vector<8x256xf32>
    %1213 = vector.broadcast %1070 : f32 to vector<8x256xf32>
    %1214 = arith.mulf %1213, %508 : vector<8x256xf32>
    %1215 = arith.addf %1212, %1214 : vector<8x256xf32>
    %1216 = vector.broadcast %1073 : f32 to vector<8x256xf32>
    %1217 = arith.mulf %1216, %547 : vector<8x256xf32>
    %1218 = arith.addf %1215, %1217 : vector<8x256xf32>
    %1219 = vector.broadcast %1076 : f32 to vector<8x256xf32>
    %1220 = arith.mulf %1219, %586 : vector<8x256xf32>
    %1221 = arith.addf %1218, %1220 : vector<8x256xf32>
    %1222 = vector.broadcast %1068 : f32 to vector<8x256xf32>
    %1223 = arith.mulf %1222, %625 : vector<8x256xf32>
    %1224 = arith.addf %1221, %1223 : vector<8x256xf32>
    %1225 = vector.broadcast %1071 : f32 to vector<8x256xf32>
    %1226 = arith.mulf %1225, %664 : vector<8x256xf32>
    %1227 = arith.addf %1224, %1226 : vector<8x256xf32>
    %1228 = vector.broadcast %1074 : f32 to vector<8x256xf32>
    %1229 = arith.mulf %1228, %703 : vector<8x256xf32>
    %1230 = arith.addf %1227, %1229 : vector<8x256xf32>
    %1231 = vector.broadcast %1077 : f32 to vector<8x256xf32>
    %1232 = arith.mulf %1231, %742 : vector<8x256xf32>
    %1233 = arith.addf %1230, %1232 : vector<8x256xf32>
    %1234 = vector.broadcast %1069 : f32 to vector<8x256xf32>
    %1235 = arith.mulf %1234, %781 : vector<8x256xf32>
    %1236 = arith.addf %1233, %1235 : vector<8x256xf32>
    %1237 = vector.broadcast %1072 : f32 to vector<8x256xf32>
    %1238 = arith.mulf %1237, %820 : vector<8x256xf32>
    %1239 = arith.addf %1236, %1238 : vector<8x256xf32>
    %1240 = vector.broadcast %1075 : f32 to vector<8x256xf32>
    %1241 = arith.mulf %1240, %859 : vector<8x256xf32>
    %1242 = arith.addf %1239, %1241 : vector<8x256xf32>
    %1243 = vector.broadcast %1078 : f32 to vector<8x256xf32>
    %1244 = arith.mulf %1243, %898 : vector<8x256xf32>
    %1245 = arith.addf %1242, %1244 : vector<8x256xf32>
    %1246 = arith.maximumf %1209, %1245 : vector<8x256xf32>
    %cst_93 = arith.constant 0.000000e+00 : f32
    %1247 = vector.broadcast %cst_93 : f32 to vector<8x256xf32>
    %1248 = arith.maximumf %1246, %1247 : vector<8x256xf32>
    %1249 = vector.broadcast %1055 : f32 to vector<8x256xf32>
    %1250 = arith.mulf %1249, %625 : vector<8x256xf32>
    %1251 = arith.addf %1080, %1250 : vector<8x256xf32>
    %1252 = vector.broadcast %1058 : f32 to vector<8x256xf32>
    %1253 = arith.mulf %1252, %664 : vector<8x256xf32>
    %1254 = arith.addf %1251, %1253 : vector<8x256xf32>
    %1255 = vector.broadcast %1061 : f32 to vector<8x256xf32>
    %1256 = arith.mulf %1255, %703 : vector<8x256xf32>
    %1257 = arith.addf %1254, %1256 : vector<8x256xf32>
    %1258 = vector.broadcast %1064 : f32 to vector<8x256xf32>
    %1259 = arith.mulf %1258, %742 : vector<8x256xf32>
    %1260 = arith.addf %1257, %1259 : vector<8x256xf32>
    %1261 = vector.broadcast %1056 : f32 to vector<8x256xf32>
    %1262 = arith.mulf %1261, %781 : vector<8x256xf32>
    %1263 = arith.addf %1260, %1262 : vector<8x256xf32>
    %1264 = vector.broadcast %1059 : f32 to vector<8x256xf32>
    %1265 = arith.mulf %1264, %820 : vector<8x256xf32>
    %1266 = arith.addf %1263, %1265 : vector<8x256xf32>
    %1267 = vector.broadcast %1062 : f32 to vector<8x256xf32>
    %1268 = arith.mulf %1267, %859 : vector<8x256xf32>
    %1269 = arith.addf %1266, %1268 : vector<8x256xf32>
    %1270 = vector.broadcast %1065 : f32 to vector<8x256xf32>
    %1271 = arith.mulf %1270, %898 : vector<8x256xf32>
    %1272 = arith.addf %1269, %1271 : vector<8x256xf32>
    %1273 = vector.broadcast %1057 : f32 to vector<8x256xf32>
    %1274 = arith.mulf %1273, %937 : vector<8x256xf32>
    %1275 = arith.addf %1272, %1274 : vector<8x256xf32>
    %1276 = vector.broadcast %1060 : f32 to vector<8x256xf32>
    %1277 = arith.mulf %1276, %976 : vector<8x256xf32>
    %1278 = arith.addf %1275, %1277 : vector<8x256xf32>
    %1279 = vector.broadcast %1063 : f32 to vector<8x256xf32>
    %1280 = arith.mulf %1279, %1015 : vector<8x256xf32>
    %1281 = arith.addf %1278, %1280 : vector<8x256xf32>
    %1282 = vector.broadcast %1066 : f32 to vector<8x256xf32>
    %1283 = arith.mulf %1282, %1054 : vector<8x256xf32>
    %1284 = arith.addf %1281, %1283 : vector<8x256xf32>
    %1285 = vector.broadcast %1055 : f32 to vector<8x256xf32>
    %1286 = arith.mulf %1285, %781 : vector<8x256xf32>
    %1287 = arith.addf %1080, %1286 : vector<8x256xf32>
    %1288 = vector.broadcast %1058 : f32 to vector<8x256xf32>
    %1289 = arith.mulf %1288, %820 : vector<8x256xf32>
    %1290 = arith.addf %1287, %1289 : vector<8x256xf32>
    %1291 = vector.broadcast %1061 : f32 to vector<8x256xf32>
    %1292 = arith.mulf %1291, %859 : vector<8x256xf32>
    %1293 = arith.addf %1290, %1292 : vector<8x256xf32>
    %1294 = vector.broadcast %1064 : f32 to vector<8x256xf32>
    %1295 = arith.mulf %1294, %898 : vector<8x256xf32>
    %1296 = arith.addf %1293, %1295 : vector<8x256xf32>
    %1297 = vector.broadcast %1056 : f32 to vector<8x256xf32>
    %1298 = arith.mulf %1297, %937 : vector<8x256xf32>
    %1299 = arith.addf %1296, %1298 : vector<8x256xf32>
    %1300 = vector.broadcast %1059 : f32 to vector<8x256xf32>
    %1301 = arith.mulf %1300, %976 : vector<8x256xf32>
    %1302 = arith.addf %1299, %1301 : vector<8x256xf32>
    %1303 = vector.broadcast %1062 : f32 to vector<8x256xf32>
    %1304 = arith.mulf %1303, %1015 : vector<8x256xf32>
    %1305 = arith.addf %1302, %1304 : vector<8x256xf32>
    %1306 = vector.broadcast %1065 : f32 to vector<8x256xf32>
    %1307 = arith.mulf %1306, %1054 : vector<8x256xf32>
    %1308 = arith.addf %1305, %1307 : vector<8x256xf32>
    %1309 = vector.broadcast %1057 : f32 to vector<8x256xf32>
    %1310 = arith.mulf %1309, %1092 : vector<8x256xf32>
    %1311 = arith.addf %1308, %1310 : vector<8x256xf32>
    %1312 = vector.broadcast %1060 : f32 to vector<8x256xf32>
    %1313 = arith.mulf %1312, %1094 : vector<8x256xf32>
    %1314 = arith.addf %1311, %1313 : vector<8x256xf32>
    %1315 = vector.broadcast %1063 : f32 to vector<8x256xf32>
    %1316 = arith.mulf %1315, %1096 : vector<8x256xf32>
    %1317 = arith.addf %1314, %1316 : vector<8x256xf32>
    %1318 = vector.broadcast %1066 : f32 to vector<8x256xf32>
    %1319 = arith.mulf %1318, %1098 : vector<8x256xf32>
    %1320 = arith.addf %1317, %1319 : vector<8x256xf32>
    %1321 = arith.maximumf %1284, %1320 : vector<8x256xf32>
    %cst_94 = arith.constant 0.000000e+00 : f32
    %1322 = vector.broadcast %cst_94 : f32 to vector<8x256xf32>
    %1323 = arith.maximumf %1321, %1322 : vector<8x256xf32>
    %1324 = vector.broadcast %1067 : f32 to vector<8x256xf32>
    %1325 = arith.mulf %1324, %625 : vector<8x256xf32>
    %1326 = arith.addf %1082, %1325 : vector<8x256xf32>
    %1327 = vector.broadcast %1070 : f32 to vector<8x256xf32>
    %1328 = arith.mulf %1327, %664 : vector<8x256xf32>
    %1329 = arith.addf %1326, %1328 : vector<8x256xf32>
    %1330 = vector.broadcast %1073 : f32 to vector<8x256xf32>
    %1331 = arith.mulf %1330, %703 : vector<8x256xf32>
    %1332 = arith.addf %1329, %1331 : vector<8x256xf32>
    %1333 = vector.broadcast %1076 : f32 to vector<8x256xf32>
    %1334 = arith.mulf %1333, %742 : vector<8x256xf32>
    %1335 = arith.addf %1332, %1334 : vector<8x256xf32>
    %1336 = vector.broadcast %1068 : f32 to vector<8x256xf32>
    %1337 = arith.mulf %1336, %781 : vector<8x256xf32>
    %1338 = arith.addf %1335, %1337 : vector<8x256xf32>
    %1339 = vector.broadcast %1071 : f32 to vector<8x256xf32>
    %1340 = arith.mulf %1339, %820 : vector<8x256xf32>
    %1341 = arith.addf %1338, %1340 : vector<8x256xf32>
    %1342 = vector.broadcast %1074 : f32 to vector<8x256xf32>
    %1343 = arith.mulf %1342, %859 : vector<8x256xf32>
    %1344 = arith.addf %1341, %1343 : vector<8x256xf32>
    %1345 = vector.broadcast %1077 : f32 to vector<8x256xf32>
    %1346 = arith.mulf %1345, %898 : vector<8x256xf32>
    %1347 = arith.addf %1344, %1346 : vector<8x256xf32>
    %1348 = vector.broadcast %1069 : f32 to vector<8x256xf32>
    %1349 = arith.mulf %1348, %937 : vector<8x256xf32>
    %1350 = arith.addf %1347, %1349 : vector<8x256xf32>
    %1351 = vector.broadcast %1072 : f32 to vector<8x256xf32>
    %1352 = arith.mulf %1351, %976 : vector<8x256xf32>
    %1353 = arith.addf %1350, %1352 : vector<8x256xf32>
    %1354 = vector.broadcast %1075 : f32 to vector<8x256xf32>
    %1355 = arith.mulf %1354, %1015 : vector<8x256xf32>
    %1356 = arith.addf %1353, %1355 : vector<8x256xf32>
    %1357 = vector.broadcast %1078 : f32 to vector<8x256xf32>
    %1358 = arith.mulf %1357, %1054 : vector<8x256xf32>
    %1359 = arith.addf %1356, %1358 : vector<8x256xf32>
    %1360 = vector.broadcast %1067 : f32 to vector<8x256xf32>
    %1361 = arith.mulf %1360, %781 : vector<8x256xf32>
    %1362 = arith.addf %1082, %1361 : vector<8x256xf32>
    %1363 = vector.broadcast %1070 : f32 to vector<8x256xf32>
    %1364 = arith.mulf %1363, %820 : vector<8x256xf32>
    %1365 = arith.addf %1362, %1364 : vector<8x256xf32>
    %1366 = vector.broadcast %1073 : f32 to vector<8x256xf32>
    %1367 = arith.mulf %1366, %859 : vector<8x256xf32>
    %1368 = arith.addf %1365, %1367 : vector<8x256xf32>
    %1369 = vector.broadcast %1076 : f32 to vector<8x256xf32>
    %1370 = arith.mulf %1369, %898 : vector<8x256xf32>
    %1371 = arith.addf %1368, %1370 : vector<8x256xf32>
    %1372 = vector.broadcast %1068 : f32 to vector<8x256xf32>
    %1373 = arith.mulf %1372, %937 : vector<8x256xf32>
    %1374 = arith.addf %1371, %1373 : vector<8x256xf32>
    %1375 = vector.broadcast %1071 : f32 to vector<8x256xf32>
    %1376 = arith.mulf %1375, %976 : vector<8x256xf32>
    %1377 = arith.addf %1374, %1376 : vector<8x256xf32>
    %1378 = vector.broadcast %1074 : f32 to vector<8x256xf32>
    %1379 = arith.mulf %1378, %1015 : vector<8x256xf32>
    %1380 = arith.addf %1377, %1379 : vector<8x256xf32>
    %1381 = vector.broadcast %1077 : f32 to vector<8x256xf32>
    %1382 = arith.mulf %1381, %1054 : vector<8x256xf32>
    %1383 = arith.addf %1380, %1382 : vector<8x256xf32>
    %1384 = vector.broadcast %1069 : f32 to vector<8x256xf32>
    %1385 = arith.mulf %1384, %1092 : vector<8x256xf32>
    %1386 = arith.addf %1383, %1385 : vector<8x256xf32>
    %1387 = vector.broadcast %1072 : f32 to vector<8x256xf32>
    %1388 = arith.mulf %1387, %1094 : vector<8x256xf32>
    %1389 = arith.addf %1386, %1388 : vector<8x256xf32>
    %1390 = vector.broadcast %1075 : f32 to vector<8x256xf32>
    %1391 = arith.mulf %1390, %1096 : vector<8x256xf32>
    %1392 = arith.addf %1389, %1391 : vector<8x256xf32>
    %1393 = vector.broadcast %1078 : f32 to vector<8x256xf32>
    %1394 = arith.mulf %1393, %1098 : vector<8x256xf32>
    %1395 = arith.addf %1392, %1394 : vector<8x256xf32>
    %1396 = arith.maximumf %1359, %1395 : vector<8x256xf32>
    %cst_95 = arith.constant 0.000000e+00 : f32
    %1397 = vector.broadcast %cst_95 : f32 to vector<8x256xf32>
    %1398 = arith.maximumf %1396, %1397 : vector<8x256xf32>
    %c63 = arith.constant 63 : index
    %1399 = memref.load %arg2[%c63] : memref<69xf32, #tpu.memory_space<smem>>
    %c64 = arith.constant 64 : index
    %1400 = memref.load %arg2[%c64] : memref<69xf32, #tpu.memory_space<smem>>
    %c65 = arith.constant 65 : index
    %1401 = memref.load %arg2[%c65] : memref<69xf32, #tpu.memory_space<smem>>
    %c66 = arith.constant 66 : index
    %1402 = memref.load %arg2[%c66] : memref<69xf32, #tpu.memory_space<smem>>
    %c67 = arith.constant 67 : index
    %1403 = memref.load %arg2[%c67] : memref<69xf32, #tpu.memory_space<smem>>
    %c68 = arith.constant 68 : index
    %1404 = memref.load %arg2[%c68] : memref<69xf32, #tpu.memory_space<smem>>
    %c62 = arith.constant 62 : index
    %1405 = memref.load %arg2[%c62] : memref<69xf32, #tpu.memory_space<smem>>
    %1406 = vector.broadcast %1405 : f32 to vector<8x256xf32>
    %c1_i32_96 = arith.constant 1 : i32
    %1407 = tpu.dynamic_rotate %1323 by %c1_i32_96 dim 1 : vector<8x256xf32>, i32 -> vector<8x256xf32>
    %1408 = arith.mulf %1407, %4 : vector<8x256xf32>
    %c1_i32_97 = arith.constant 1 : i32
    %1409 = tpu.dynamic_rotate %1398 by %c1_i32_97 dim 1 : vector<8x256xf32>, i32 -> vector<8x256xf32>
    %1410 = arith.mulf %1409, %4 : vector<8x256xf32>
    %c255_i32_98 = arith.constant 255 : i32
    %1411 = tpu.dynamic_rotate %1173 by %c255_i32_98 dim 1 : vector<8x256xf32>, i32 -> vector<8x256xf32>
    %1412 = arith.mulf %1411, %8 : vector<8x256xf32>
    %c255_i32_99 = arith.constant 255 : i32
    %1413 = tpu.dynamic_rotate %1248 by %c255_i32_99 dim 1 : vector<8x256xf32>, i32 -> vector<8x256xf32>
    %1414 = arith.mulf %1413, %8 : vector<8x256xf32>
    %1415 = vector.broadcast %1399 : f32 to vector<8x256xf32>
    %1416 = arith.mulf %1415, %1408 : vector<8x256xf32>
    %1417 = arith.addf %1406, %1416 : vector<8x256xf32>
    %1418 = vector.broadcast %1402 : f32 to vector<8x256xf32>
    %1419 = arith.mulf %1418, %1410 : vector<8x256xf32>
    %1420 = arith.addf %1417, %1419 : vector<8x256xf32>
    %1421 = vector.broadcast %1400 : f32 to vector<8x256xf32>
    %1422 = arith.mulf %1421, %1173 : vector<8x256xf32>
    %1423 = arith.addf %1420, %1422 : vector<8x256xf32>
    %1424 = vector.broadcast %1403 : f32 to vector<8x256xf32>
    %1425 = arith.mulf %1424, %1248 : vector<8x256xf32>
    %1426 = arith.addf %1423, %1425 : vector<8x256xf32>
    %1427 = vector.broadcast %1401 : f32 to vector<8x256xf32>
    %1428 = arith.mulf %1427, %1323 : vector<8x256xf32>
    %1429 = arith.addf %1426, %1428 : vector<8x256xf32>
    %1430 = vector.broadcast %1404 : f32 to vector<8x256xf32>
    %1431 = arith.mulf %1430, %1398 : vector<8x256xf32>
    %1432 = arith.addf %1429, %1431 : vector<8x256xf32>
    %1433 = vector.broadcast %1399 : f32 to vector<8x256xf32>
    %1434 = arith.mulf %1433, %1173 : vector<8x256xf32>
    %1435 = arith.addf %1406, %1434 : vector<8x256xf32>
    %1436 = vector.broadcast %1402 : f32 to vector<8x256xf32>
    %1437 = arith.mulf %1436, %1248 : vector<8x256xf32>
    %1438 = arith.addf %1435, %1437 : vector<8x256xf32>
    %1439 = vector.broadcast %1400 : f32 to vector<8x256xf32>
    %1440 = arith.mulf %1439, %1323 : vector<8x256xf32>
    %1441 = arith.addf %1438, %1440 : vector<8x256xf32>
    %1442 = vector.broadcast %1403 : f32 to vector<8x256xf32>
    %1443 = arith.mulf %1442, %1398 : vector<8x256xf32>
    %1444 = arith.addf %1441, %1443 : vector<8x256xf32>
    %1445 = vector.broadcast %1401 : f32 to vector<8x256xf32>
    %1446 = arith.mulf %1445, %1412 : vector<8x256xf32>
    %1447 = arith.addf %1444, %1446 : vector<8x256xf32>
    %1448 = vector.broadcast %1404 : f32 to vector<8x256xf32>
    %1449 = arith.mulf %1448, %1414 : vector<8x256xf32>
    %1450 = arith.addf %1447, %1449 : vector<8x256xf32>
    %1451 = arith.maximumf %1432, %1450 : vector<8x256xf32>
    %cst_100 = arith.constant 0.000000e+00 : f32
    %1452 = vector.broadcast %cst_100 : f32 to vector<8x256xf32>
    %1453 = arith.maximumf %1451, %1452 : vector<8x256xf32>
    %c0_101 = arith.constant 0 : index
    %c0_102 = arith.constant 0 : index
    %1454 = vector.load %arg6[%c0_101, %c0_102] : memref<8x256xf32, #tpu.memory_space<vmem>>, vector<8x256xf32>
    tpu.vector_store %arg6[%c0_101, %c0_102], %1453 {strides = array<i32>} : memref<8x256xf32, #tpu.memory_space<vmem>>, vector<8x256xf32>,
    %c0_103 = arith.constant 0 : index
    %c0_104 = arith.constant 0 : index
    %1455 = vector.load %arg5[%c0_103, %c0_104] : memref<8x128xf32, #tpu.memory_space<vmem>>, vector<8x128xf32>
    %c0_105 = arith.constant 0 : index
    %c0_106 = arith.constant 0 : index
    %1456 = vector.load %arg3[%c0_105, %c0_106] : memref<256x128xf32, #tpu.memory_space<vmem>>, vector<256x128xf32>
    %cst_107 = arith.constant dense<0.000000e+00> : vector<8x128xf32>
    %1457 = tpu.matmul %1453, %1456, %cst_107 {dimension_numbers = #tpu.dot_dimension_numbers<[1], [0], [0], [1], [0, 0, 1, 1], [], []>} : vector<8x256xf32>, vector<256x128xf32>, vector<8x128xf32> -> vector<8x128xf32>
    %1458 = vector.extract_strided_slice %1455 {offsets = [0, 0], sizes = [1, 128], strides = [1, 1]} : vector<8x128xf32> to vector<1x128xf32>
    %1459 = vector.broadcast %1458 : vector<1x128xf32> to vector<8x128xf32>
    %1460 = arith.addf %1457, %1459 : vector<8x128xf32>
    %cst_108 = arith.constant 0.000000e+00 : f32
    %1461 = vector.broadcast %cst_108 : f32 to vector<8x128xf32>
    %1462 = arith.maximumf %1460, %1461 : vector<8x128xf32>
    %c0_109 = arith.constant 0 : index
    %c0_110 = arith.constant 0 : index
    %c0_111 = arith.constant 0 : index
    %1463 = vector.load %arg4[%c0_109, %c0_110, %c0_111] : memref<4x128x128xf32, #tpu.memory_space<vmem>>, vector<1x128x128xf32>
    %1464 = vector.shape_cast %1463 : vector<1x128x128xf32> to vector<128x128xf32>
    %cst_112 = arith.constant dense<0.000000e+00> : vector<8x128xf32>
    %1465 = tpu.matmul %1462, %1464, %cst_112 {dimension_numbers = #tpu.dot_dimension_numbers<[1], [0], [0], [1], [0, 0, 1, 1], [], []>} : vector<8x128xf32>, vector<128x128xf32>, vector<8x128xf32> -> vector<8x128xf32>
    %1466 = vector.extract_strided_slice %1455 {offsets = [1, 0], sizes = [1, 128], strides = [1, 1]} : vector<8x128xf32> to vector<1x128xf32>
    %1467 = vector.broadcast %1466 : vector<1x128xf32> to vector<8x128xf32>
    %1468 = arith.addf %1465, %1467 : vector<8x128xf32>
    %cst_113 = arith.constant 0.000000e+00 : f32
    %1469 = vector.broadcast %cst_113 : f32 to vector<8x128xf32>
    %1470 = arith.maximumf %1468, %1469 : vector<8x128xf32>
    %c1_114 = arith.constant 1 : index
    %c0_115 = arith.constant 0 : index
    %c0_116 = arith.constant 0 : index
    %1471 = vector.load %arg4[%c1_114, %c0_115, %c0_116] : memref<4x128x128xf32, #tpu.memory_space<vmem>>, vector<1x128x128xf32>
    %1472 = vector.shape_cast %1471 : vector<1x128x128xf32> to vector<128x128xf32>
    %cst_117 = arith.constant dense<0.000000e+00> : vector<8x128xf32>
    %1473 = tpu.matmul %1470, %1472, %cst_117 {dimension_numbers = #tpu.dot_dimension_numbers<[1], [0], [0], [1], [0, 0, 1, 1], [], []>} : vector<8x128xf32>, vector<128x128xf32>, vector<8x128xf32> -> vector<8x128xf32>
    %1474 = vector.extract_strided_slice %1455 {offsets = [2, 0], sizes = [1, 128], strides = [1, 1]} : vector<8x128xf32> to vector<1x128xf32>
    %1475 = vector.broadcast %1474 : vector<1x128xf32> to vector<8x128xf32>
    %1476 = arith.addf %1473, %1475 : vector<8x128xf32>
    %cst_118 = arith.constant 0.000000e+00 : f32
    %1477 = vector.broadcast %cst_118 : f32 to vector<8x128xf32>
    %1478 = arith.maximumf %1476, %1477 : vector<8x128xf32>
    %c2_119 = arith.constant 2 : index
    %c0_120 = arith.constant 0 : index
    %c0_121 = arith.constant 0 : index
    %1479 = vector.load %arg4[%c2_119, %c0_120, %c0_121] : memref<4x128x128xf32, #tpu.memory_space<vmem>>, vector<1x128x128xf32>
    %1480 = vector.shape_cast %1479 : vector<1x128x128xf32> to vector<128x128xf32>
    %cst_122 = arith.constant dense<0.000000e+00> : vector<8x128xf32>
    %1481 = tpu.matmul %1478, %1480, %cst_122 {dimension_numbers = #tpu.dot_dimension_numbers<[1], [0], [0], [1], [0, 0, 1, 1], [], []>} : vector<8x128xf32>, vector<128x128xf32>, vector<8x128xf32> -> vector<8x128xf32>
    %1482 = vector.extract_strided_slice %1455 {offsets = [3, 0], sizes = [1, 128], strides = [1, 1]} : vector<8x128xf32> to vector<1x128xf32>
    %1483 = vector.broadcast %1482 : vector<1x128xf32> to vector<8x128xf32>
    %1484 = arith.addf %1481, %1483 : vector<8x128xf32>
    %cst_123 = arith.constant 0.000000e+00 : f32
    %1485 = vector.broadcast %cst_123 : f32 to vector<8x128xf32>
    %1486 = arith.maximumf %1484, %1485 : vector<8x128xf32>
    %c3_124 = arith.constant 3 : index
    %c0_125 = arith.constant 0 : index
    %c0_126 = arith.constant 0 : index
    %1487 = vector.load %arg4[%c3_124, %c0_125, %c0_126] : memref<4x128x128xf32, #tpu.memory_space<vmem>>, vector<1x128x128xf32>
    %1488 = vector.shape_cast %1487 : vector<1x128x128xf32> to vector<128x128xf32>
    %cst_127 = arith.constant dense<0.000000e+00> : vector<8x128xf32>
    %1489 = tpu.matmul %1486, %1488, %cst_127 {dimension_numbers = #tpu.dot_dimension_numbers<[1], [0], [0], [1], [0, 0, 1, 1], [], []>} : vector<8x128xf32>, vector<128x128xf32>, vector<8x128xf32> -> vector<8x128xf32>
    %1490 = vector.extract_strided_slice %1455 {offsets = [4, 0], sizes = [1, 128], strides = [1, 1]} : vector<8x128xf32> to vector<1x128xf32>
    %1491 = vector.broadcast %1490 : vector<1x128xf32> to vector<8x128xf32>
    %1492 = arith.addf %1489, %1491 : vector<8x128xf32>
    %c0_128 = arith.constant 0 : index
    %c0_129 = arith.constant 0 : index
    %1493 = vector.load %arg7[%c0_128, %c0_129] : memref<8x128xf32, #tpu.memory_space<vmem>>, vector<8x128xf32>
    tpu.vector_store %arg7[%c0_128, %c0_129], %1492 {strides = array<i32>} : memref<8x128xf32, #tpu.memory_space<vmem>>, vector<8x128xf32>,
    return
  }
  func.func @transform_0(%arg0: i32) -> (i32, i32, i32) {
    %c0_i32 = arith.constant 0 : i32
    %c0_i32_0 = arith.constant 0 : i32
    %c0_i32_1 = arith.constant 0 : i32
    return %c0_i32, %arg0, %c0_i32_0 : i32, i32, i32
  }
  func.func @transform_1(%arg0: i32) -> i32 {
    %c0_i32 = arith.constant 0 : i32
    %c0_i32_0 = arith.constant 0 : i32
    return %c0_i32 : i32
  }
  func.func @transform_2(%arg0: i32) -> (i32, i32) {
    %c0_i32 = arith.constant 0 : i32
    %c0_i32_0 = arith.constant 0 : i32
    %c0_i32_1 = arith.constant 0 : i32
    return %c0_i32, %c0_i32_0 : i32, i32
  }
  func.func @transform_3(%arg0: i32) -> (i32, i32, i32) {
    %c0_i32 = arith.constant 0 : i32
    %c0_i32_0 = arith.constant 0 : i32
    %c0_i32_1 = arith.constant 0 : i32
    %c0_i32_2 = arith.constant 0 : i32
    return %c0_i32, %c0_i32_0, %c0_i32_1 : i32, i32, i32
  }
  func.func @transform_4(%arg0: i32) -> (i32, i32) {
    %c0_i32 = arith.constant 0 : i32
    %c0_i32_0 = arith.constant 0 : i32
    %c0_i32_1 = arith.constant 0 : i32
    return %c0_i32, %c0_i32_0 : i32, i32
  }
  func.func @transform_5(%arg0: i32) -> (i32, i32) {
    %c0_i32 = arith.constant 0 : i32
    %c0_i32_0 = arith.constant 0 : i32
    return %arg0, %c0_i32 : i32, i32
  }
  func.func @transform_6(%arg0: i32) -> (i32, i32) {
    %c0_i32 = arith.constant 0 : i32
    %c0_i32_0 = arith.constant 0 : i32
    return %arg0, %c0_i32 : i32, i32
  }
}

</mosaic_0001>

<llo_original>
// kernel: tpu_custom_call.1
$region0: #{tpu_custom_call.1}
  #allocation0 [shape = 'u32[]', space=smem, size = 0x4, offset = 0x4, fixed_abs, tag = 'smem constant byte address 0x4 - core index']
  #allocation1 [shape = 'u32[144,128]{1,0:T(1,128)}', space=vmem, size = 0x12000, scoped, tag = 'internal scratch']
  %s0 = inlined_call_operand.hbm [shape: f32[16,16,256], index: 0, kind: input, shape index: {}]
  %s1 = inlined_call_operand.vmem [shape: f32[69], index: 1, kind: input, shape index: {}]
  %s2 = inlined_call_operand.hbm [shape: f32[256,128], index: 2, kind: input, shape index: {}]
  %s3 = inlined_call_operand.hbm [shape: f32[4,128,128], index: 3, kind: input, shape index: {}]
  %s4 = inlined_call_operand.hbm [shape: f32[8,128], index: 4, kind: input, shape index: {}]
  %s5 = inlined_call_operand.hbm [shape: f32[16,256], index: 5, kind: output, shape index: {0}]
  %s6 = inlined_call_operand.hbm [shape: f32[16,128], index: 6, kind: output, shape index: {1}]
  %7 = xla_tuple %s5, %s6
  %s8 = sld [smem:[#allocation0]]
  $region81: #{tpu_custom_call.1} parent=0
    _
  %s10 = ssub.s32 1, %s8
  %s11 = scalar_select 0, %s10, %s8
  $region1: #{tpu_custom_call.1} parent=0
    #allocation2 [shape = 'u8[262144]{0}', space=vmem, size = 0x40000, scoped, tag = 'input window, operand 0']
    #allocation3 [shape = 's32[2]{0}', space=sflag, size = 0x8, scoped, tag = 'scoped memory for tpu_custom_call.1']
    #allocation4 [shape = 's32[2]{0}', space=sflag, size = 0x8, scoped, tag = 'scoped memory for tpu_custom_call.1']
    #allocation5 [shape = 's32[2]{0}', space=sflag, size = 0x8, scoped, tag = 'scoped memory for tpu_custom_call.1']
    #allocation6 [shape = 'u8[512]{0}', space=smem, size = 0x200, scoped, tag = 'input window, operand 1, single buffered']
    #allocation7 [shape = 'u8[131072]{0}', space=vmem, size = 0x20000, scoped, tag = 'input window, operand 2, single buffered']
    #allocation8 [shape = 's32[1]{0}', space=sflag, size = 0x4, scoped, tag = 'scoped memory for tpu_custom_call.1']
    #allocation9 [shape = 'u8[262144]{0}', space=vmem, size = 0x40000, scoped, tag = 'input window, operand 3, single buffered']
    #allocation10 [shape = 'u8[4096]{0}', space=vmem, size = 0x1000, scoped, tag = 'input window, operand 4, single buffered']
    #allocation11 [shape = 's32[1]{0}', space=sflag, size = 0x4, scoped, tag = 'scoped memory for tpu_custom_call.1']
    #allocation12 [shape = 'u8[16384]{0}', space=vmem, size = 0x4000, scoped, tag = 'output window, operand 0']
    #allocation13 [shape = 'u8[8192]{0}', space=vmem, size = 0x2000, scoped, tag = 'output window, operand 1']
    #allocation14 [shape = 's32[2]{0}', space=sflag, size = 0x8, scoped, tag = 'scoped memory for tpu_custom_call.1']
    %12 = vsyncpa [#allocation3], 0
    %s13 = scalar_lea.sflag [#allocation3], 1
    %14 = vsyncpa %s13, 0
    %15 = vsyncpa [#allocation5], 0
    %16 = vsyncpa [#allocation8], 0
    %17 = vsyncpa [#allocation11], 0
    %18 = vsyncpa [#allocation4], 0
    %s19 = scalar_lea.sflag [#allocation4], 1
    %20 = vsyncpa %s19, 0
    %21 = vsyncpa [#allocation14], 0
    %s22 = scalar_lea.sflag [#allocation14], 1
    %23 = vsyncpa %s22, 0
    loop: start=0, step=1, limit=4
    $region2: #{tpu_custom_call.1} parent=1 // loop_pre_header
      _
    $region3: #{tpu_custom_call.1} parent=1 // loop_header
      %s25 = sphi 0, %s29
      %p26 = scmp.ge.s32.totalorder %s25, 4
      %s35 = sphi 0, %s37
      %s38 = sphi 0, %s35
      %s39 = sphi 0, %s38
      %s55 = sphi 0, %s39
      %s59 = sphi 0, %s59
      %s61 = sphi 0, %s59
      %s62 = sphi 0, %s61
      %s76 = sphi 0, %s62
      %s80 = sphi 0, %s80
      %s82 = sphi 0, %s80
      %s83 = sphi 0, %s82
      %s97 = sphi 0, %s83
      %s101 = sphi 0, %s101
      %s103 = sphi 0, %s101
      %s104 = sphi 0, %s103
      %s118 = sphi 0, %s104
      %s122 = sphi 0, %s122
      %s124 = sphi 0, %s122
      %s125 = sphi 0, %s124
      %s139 = sphi 0, %s125
      %s145 = sphi 0, %s147
      %s148 = sphi 0, %s145
      %s149 = sphi 0, %s148
      %s165 = sphi 0, %s149
      %s171 = sphi 0, %s173
      %s174 = sphi 0, %s171
      %s175 = sphi 0, %s174
      %s191 = sphi 0, %s175
    $region4: #{tpu_custom_call.1} parent=1 // loop_header_branch
      %28 = sbr.rel (%p26) target = $region8
    $region5: #{tpu_custom_call.1} parent=1 // loop_body
      %s30 = ssub.s32 %s25, 1
      %s31 = ssub.s32 %s25, 2
      %s32 = sadd.s32 %s25, 1
      %s33 = ssub.s32 %s25, %s32
      %p34 = scmp.eq.s32.totalorder %s33, 0
      %s36 = sadd.s32 %s35, 1
      %s37 = scalar_select %p34, %s35, %s36
      %p40 = pneg %p34
      %p41 = scmp.eq.s32.totalorder %s25, 1
      %p42 = por %p40, %p41
      %p43 = scmp.ne.s32.totalorder %s35, %s38
      %p44 = scmp.eq.s32.totalorder %s25, 0
      %p45 = por %p43, %p44
      %p46 = scmp.ne.s32.totalorder %s35, %s38
      %p47 = scmp.eq.s32.totalorder %s30, 1
      %p48 = por %p46, %p47
      %p49 = scmp.ne.s32.totalorder %s38, %s39
      %p50 = scmp.eq.s32.totalorder %s30, 0
      %p51 = por %p49, %p50
      %p52 = scmp.ne.s32.totalorder %s38, %s39
      %p53 = scmp.eq.s32.totalorder %s31, 1
      %p54 = por %p52, %p53
      %p56 = scmp.ne.s32.totalorder %s39, %s55
      %p57 = scmp.eq.s32.totalorder %s31, 0
      %p58 = por %p56, %p57
      %s60 = sadd.s32 %s59, 1
      %p63 = scmp.eq.s32.totalorder %s25, 1
      %p64 = scmp.ne.s32.totalorder %s59, %s61
      %p65 = scmp.eq.s32.totalorder %s25, 0
      %p66 = por %p64, %p65
      %p67 = scmp.ne.s32.totalorder %s59, %s61
      %p68 = scmp.eq.s32.totalorder %s30, 1
      %p69 = por %p67, %p68
      %p70 = scmp.ne.s32.totalorder %s61, %s62
      %p71 = scmp.eq.s32.totalorder %s30, 0
      %p72 = por %p70, %p71
      %p73 = scmp.ne.s32.totalorder %s61, %s62
      %p74 = scmp.eq.s32.totalorder %s31, 1
      %p75 = por %p73, %p74
      %p77 = scmp.ne.s32.totalorder %s62, %s76
      %p78 = scmp.eq.s32.totalorder %s31, 0
      %p79 = por %p77, %p78
      %s81 = sadd.s32 %s80, 1
      %p84 = scmp.eq.s32.totalorder %s25, 1
      %p85 = scmp.ne.s32.totalorder %s80, %s82
      %p86 = scmp.eq.s32.totalorder %s25, 0
      %p87 = por %p85, %p86
      %p88 = scmp.ne.s32.totalorder %s80, %s82
      %p89 = scmp.eq.s32.totalorder %s30, 1
      %p90 = por %p88, %p89
      %p91 = scmp.ne.s32.totalorder %s82, %s83
      %p92 = scmp.eq.s32.totalorder %s30, 0
      %p93 = por %p91, %p92
      %p94 = scmp.ne.s32.totalorder %s82, %s83
      %p95 = scmp.eq.s32.totalorder %s31, 1
      %p96 = por %p94, %p95
      %p98 = scmp.ne.s32.totalorder %s83, %s97
      %p99 = scmp.eq.s32.totalorder %s31, 0
      %p100 = por %p98, %p99
      %s102 = sadd.s32 %s101, 1
      %p105 = scmp.eq.s32.totalorder %s25, 1
      %p106 = scmp.ne.s32.totalorder %s101, %s103
      %p107 = scmp.eq.s32.totalorder %s25, 0
      %p108 = por %p106, %p107
      %p109 = scmp.ne.s32.totalorder %s101, %s103
      %p110 = scmp.eq.s32.totalorder %s30, 1
      %p111 = por %p109, %p110
      %p112 = scmp.ne.s32.totalorder %s103, %s104
      %p113 = scmp.eq.s32.totalorder %s30, 0
      %p114 = por %p112, %p113
      %p115 = scmp.ne.s32.totalorder %s103, %s104
      %p116 = scmp.eq.s32.totalorder %s31, 1
      %p117 = por %p115, %p116
      %p119 = scmp.ne.s32.totalorder %s104, %s118
      %p120 = scmp.eq.s32.totalorder %s31, 0
      %p121 = por %p119, %p120
      %s123 = sadd.s32 %s122, 1
      %p126 = scmp.eq.s32.totalorder %s25, 1
      %p127 = scmp.ne.s32.totalorder %s122, %s124
      %p128 = scmp.eq.s32.totalorder %s25, 0
      %p129 = por %p127, %p128
      %p130 = scmp.ne.s32.totalorder %s122, %s124
      %p131 = scmp.eq.s32.totalorder %s30, 1
      %p132 = por %p130, %p131
      %p133 = scmp.ne.s32.totalorder %s124, %s125
      %p134 = scmp.eq.s32.totalorder %s30, 0
      %p135 = por %p133, %p134
      %p136 = scmp.ne.s32.totalorder %s124, %s125
      %p137 = scmp.eq.s32.totalorder %s31, 1
      %p138 = por %p136, %p137
      %p140 = scmp.ne.s32.totalorder %s125, %s139
      %p141 = scmp.eq.s32.totalorder %s31, 0
      %p142 = por %p140, %p141
      %s143 = ssub.s32 %s25, %s32
      %p144 = scmp.eq.s32.totalorder %s143, 0
      %s146 = sadd.s32 %s145, 1
      %s147 = scalar_select %p144, %s145, %s146
      %p150 = pneg %p144
      %p151 = scmp.eq.s32.totalorder %s25, 1
      %p152 = por %p150, %p151
      %p153 = scmp.ne.s32.totalorder %s145, %s148
      %p154 = scmp.eq.s32.totalorder %s25, 0
      %p155 = por %p153, %p154
      %p156 = scmp.ne.s32.totalorder %s145, %s148
      %p157 = scmp.eq.s32.totalorder %s30, 1
      %p158 = por %p156, %p157
      %p159 = scmp.ne.s32.totalorder %s148, %s149
      %p160 = scmp.eq.s32.totalorder %s30, 0
      %p161 = por %p159, %p160
      %p162 = scmp.ne.s32.totalorder %s148, %s149
      %p163 = scmp.eq.s32.totalorder %s31, 1
      %p164 = por %p162, %p163
      %p166 = scmp.ne.s32.totalorder %s149, %s165
      %p167 = scmp.eq.s32.totalorder %s31, 0
      %p168 = por %p166, %p167
      %s169 = ssub.s32 %s25, %s32
      %p170 = scmp.eq.s32.totalorder %s169, 0
      %s172 = sadd.s32 %s171, 1
      %s173 = scalar_select %p170, %s171, %s172
      %p176 = pneg %p170
      %p177 = scmp.eq.s32.totalorder %s25, 1
      %p178 = por %p176, %p177
      %p179 = scmp.ne.s32.totalorder %s171, %s174
      %p180 = scmp.eq.s32.totalorder %s25, 0
      %p181 = por %p179, %p180
      %p182 = scmp.ne.s32.totalorder %s171, %s174
      %p183 = scmp.eq.s32.totalorder %s30, 1
      %p184 = por %p182, %p183
      %p185 = scmp.ne.s32.totalorder %s174, %s175
      %p186 = scmp.eq.s32.totalorder %s30, 0
      %p187 = por %p185, %p186
      %p188 = scmp.ne.s32.totalorder %s174, %s175
      %p189 = scmp.eq.s32.totalorder %s31, 1
      %p190 = por %p188, %p189
      %p192 = scmp.ne.s32.totalorder %s175, %s191
      %p193 = scmp.eq.s32.totalorder %s31, 0
      %p194 = por %p192, %p193
      %p195 = scmp.le.s32.totalorder 1, %s25
      %p196 = scmp.lt.s32.totalorder %s25, 3
      %p197 = pnand %p195, %p196
      %p198 = pneg %p197
      // Predicated region
      $region9: #{tpu_custom_call.1} parent=5 // pred_check
        _
      $region10: #{tpu_custom_call.1} parent=5 // pred_check_branch
        %200 = sbr.rel (%p197) target = $region12
      $region11: #{tpu_custom_call.1} parent=5 // pred_region
        %s201 = ssub.s32 %s25, 1
        // Predicated region
        $region13: #{tpu_custom_call.1} parent=11 // pred_check
          %p202 = pneg %p72
        $region14: #{tpu_custom_call.1} parent=11 // pred_check_branch
          %204 = sbr.rel (%p202) target = $region16
        $region15: #{tpu_custom_call.1} parent=11 // pred_region
          %s206 = ssub.s32 16, 16
          %207 = vsyncadd [#allocation5], %s206
          %s209 = sshll.u32 %s1, 4
          %s210 = int_to_ptr.vmem [resolvable:$true] %s209
          %212 = dma.vmem_to_smem %s210, 16, [#allocation6], [#allocation5]
        $region16: #{tpu_custom_call.1} parent=11 // pred_fallthru
          _
        // Predicated region
        $region17: #{tpu_custom_call.1} parent=11 // pred_check
          %p213 = pneg %p93
        $region18: #{tpu_custom_call.1} parent=11 // pred_check_branch
          %215 = sbr.rel (%p213) target = $region20
        $region19: #{tpu_custom_call.1} parent=11 // pred_region
          %s217 = ssub.s32 4096, 4096
          %218 = vsyncadd [#allocation8], %s217
          %s219 = sshll.u32 [#allocation7], 4
          %s220 = int_to_ptr.vmem [resolvable:$true] %s219
          %225 = dma.hbm_to_vmem [thread:$0]  %s2, 4096, %s220, [#allocation8], 128, 128, 8
        $region20: #{tpu_custom_call.1} parent=11 // pred_fallthru
          _
        // Predicated region
        $region21: #{tpu_custom_call.1} parent=11 // pred_check
          %p226 = pneg %p114
        $region22: #{tpu_custom_call.1} parent=11 // pred_check_branch
          %228 = sbr.rel (%p226) target = $region24
        $region23: #{tpu_custom_call.1} parent=11 // pred_region
          %s230 = ssub.s32 8192, 8192
          %231 = vsyncadd [#allocation8], %s230
          %s232 = sshll.u32 [#allocation9], 4
          %s233 = int_to_ptr.vmem [resolvable:$true] %s232
          %238 = dma.hbm_to_vmem [thread:$0]  %s3, 8192, %s233, [#allocation8], 128, 128, 8
        $region24: #{tpu_custom_call.1} parent=11 // pred_fallthru
          _
        // Predicated region
        $region25: #{tpu_custom_call.1} parent=11 // pred_check
          %p239 = pneg %p135
        $region26: #{tpu_custom_call.1} parent=11 // pred_check_branch
          %241 = sbr.rel (%p239) target = $region28
        $region27: #{tpu_custom_call.1} parent=11 // pred_region
          %s243 = ssub.s32 128, 128
          %244 = vsyncadd [#allocation11], %s243
          %s246 = sshll.u32 [#allocation10], 4
          %s247 = int_to_ptr.vmem [resolvable:$true] %s246
          %249 = dma.hbm_to_vmem [thread:$0]  %s4, 128, %s247, [#allocation11]
        $region28: #{tpu_custom_call.1} parent=11 // pred_fallthru
          _
      $region12: #{tpu_custom_call.1} parent=5 // pred_fallthru
        _
      %p250 = scmp.lt.s32.totalorder %s25, 2
      // Predicated region
      $region29: #{tpu_custom_call.1} parent=5 // pred_check
        %p251 = pneg %p250
      $region30: #{tpu_custom_call.1} parent=5 // pred_check_branch
        %253 = sbr.rel (%p251) target = $region32
      $region31: #{tpu_custom_call.1} parent=5 // pred_region
        // Predicated region
        $region33: #{tpu_custom_call.1} parent=31 // pred_check
          %p254 = pneg %p45
        $region34: #{tpu_custom_call.1} parent=31 // pred_check_branch
          %256 = sbr.rel (%p254) target = $region36
        $region35: #{tpu_custom_call.1} parent=31 // pred_region
          %s257 = sand.u32 %s35, 1
          %s258 = scalar_lea.sflag [#allocation3], %s257
          %s259 = sand.u32 %s35, 1
          %s260 = smul.addr %s259, 256
          %s261 = scalar_lea.vmem [#allocation2], %s260
          %s263 = ssub.s32 4096, 4096
          %264 = vsyncadd %s258, %s263
          %s265 = smul.addr %s25, 2
          %s266 = smul.addr %s265, 128
          %s267 = scalar_lea.hbm %s0, %s266
          %s268 = sshll.u32 %s261, 4
          %s269 = int_to_ptr.vmem [resolvable:$true] %s268
          %274 = dma.hbm_to_vmem [thread:$0]  %s267, 4096, %s269, %s258, 512, 256, 16
        $region36: #{tpu_custom_call.1} parent=31 // pred_fallthru
          _
      $region32: #{tpu_custom_call.1} parent=5 // pred_fallthru
        _
      %p275 = scmp.le.s32.totalorder 1, %s25
      %p276 = scmp.lt.s32.totalorder %s25, 3
      %p277 = pnand %p275, %p276
      %p278 = pneg %p277
      // Predicated region
      $region37: #{tpu_custom_call.1} parent=5 // pred_check
        _
      $region38: #{tpu_custom_call.1} parent=5 // pred_check_branch
        %280 = sbr.rel (%p277) target = $region40
      $region39: #{tpu_custom_call.1} parent=5 // pred_region
        %s281 = ssub.s32 %s25, 1
        %s282 = sand.u32 %s38, 1
        %s283 = scalar_lea.sflag [#allocation3], %s282
        %s284 = sand.u32 %s38, 1
        %s285 = smul.addr %s284, 256
        %s286 = scalar_lea.vmem [#allocation2], %s285
        // Predicated region
        $region41: #{tpu_custom_call.1} parent=39 // pred_check
          %p287 = pneg %p51
        $region42: #{tpu_custom_call.1} parent=39 // pred_check_branch
          %289 = sbr.rel (%p287) target = $region44
        $region43: #{tpu_custom_call.1} parent=39 // pred_region
          %290 = dma.done %s283, 4096
        $region44: #{tpu_custom_call.1} parent=39 // pred_fallthru
          _
        // Predicated region
        $region45: #{tpu_custom_call.1} parent=39 // pred_check
          %p291 = pneg %p72
        $region46: #{tpu_custom_call.1} parent=39 // pred_check_branch
          %293 = sbr.rel (%p291) target = $region48
        $region47: #{tpu_custom_call.1} parent=39 // pred_region
          %294 = dma.done [#allocation5], 16
        $region48: #{tpu_custom_call.1} parent=39 // pred_fallthru
          _
        // Predicated region
        $region49: #{tpu_custom_call.1} parent=39 // pred_check
          %p295 = pneg %p93
        $region50: #{tpu_custom_call.1} parent=39 // pred_check_branch
          %297 = sbr.rel (%p295) target = $region52
        $region51: #{tpu_custom_call.1} parent=39 // pred_region
          %298 = dma.done [#allocation8], 4096
        $region52: #{tpu_custom_call.1} parent=39 // pred_fallthru
          _
        // Predicated region
        $region53: #{tpu_custom_call.1} parent=39 // pred_check
          %p299 = pneg %p114
        $region54: #{tpu_custom_call.1} parent=39 // pred_check_branch
          %301 = sbr.rel (%p299) target = $region56
        $region55: #{tpu_custom_call.1} parent=39 // pred_region
          %302 = dma.done [#allocation8], 8192
        $region56: #{tpu_custom_call.1} parent=39 // pred_fallthru
          _
        // Predicated region
        $region57: #{tpu_custom_call.1} parent=39 // pred_check
          %p303 = pneg %p135
        $region58: #{tpu_custom_call.1} parent=39 // pred_check_branch
          %305 = sbr.rel (%p303) target = $region60
        $region59: #{tpu_custom_call.1} parent=39 // pred_region
          %306 = dma.done [#allocation11], 128
        $region60: #{tpu_custom_call.1} parent=39 // pred_fallthru
          _
        %307 = sfence
        %s308 = sand.u32 %s38, 1
        %s309 = scalar_lea.sflag [#allocation3], %s308
        %s310 = sand.u32 %s38, 1
        %s311 = smul.addr %s310, 256
        %s312 = scalar_lea.vmem [#allocation2], %s311
        %p313 = pneg %p51
        %p314 = pneg %p48
        %p315 = pneg %p72
        %p316 = pneg %p69
        %p317 = pneg %p93
        %p318 = pneg %p90
        %p319 = pneg %p114
        %p320 = pneg %p111
        %p321 = pneg %p135
        %p322 = pneg %p132
        %p323 = pneg %p161
        %p324 = pneg %p158
        %s325 = sand.u32 %s148, 1
        %s326 = scalar_lea.sflag [#allocation4], %s325
        %s327 = sand.u32 %s148, 1
        %s328 = smul.addr %s327, 16
        %s329 = scalar_lea.vmem [#allocation12], %s328
        %p330 = pneg %p187
        %p331 = pneg %p184
        %s332 = sand.u32 %s174, 1
        %s333 = scalar_lea.sflag [#allocation14], %s332
        %s334 = sand.u32 %s174, 1
        %s335 = smul.addr %s334, 8
        %s336 = scalar_lea.vmem [#allocation13], %s335
        %v337 = vlaneseq
        %v338 = vand.u32 %v337, 127
        %v339 = vadd.s32 %v338, 128
        %vm340 = vcmp.gt.s32.totalorder %v338, 0
        %vm341 = vcmp.gt.s32.totalorder %v339, 0
        %v342 = vsel %vm340, 1, 0
        %v343 = vsel %vm341, 1, 0
        %v344 = vcvt.s32.f32 %v342
        %v345 = vcvt.s32.f32 %v343
        %vm346 = vcmp.lt.s32.totalorder %v338, 255
        %vm347 = vcmp.lt.s32.totalorder %v339, 255
        %v348 = vsel %vm346, 1, 0
        %v349 = vsel %vm347, 1, 0
        %v350 = vcvt.s32.f32 %v348
        %v351 = vcvt.s32.f32 %v349
        %v352 = vld [vmem:[%s286] sm:$0xff]
        %v353 = vld [vmem:[%s286 + $0x8] sm:$0xff]
        %s354 = scalar_lea.vmem %s286, 16 [#allocation2]
        %v355 = vld [vmem:[%s354] sm:$0xff]
        %v356 = vld [vmem:[%s354 + $0x8] sm:$0xff]
        %s357 = scalar_lea.vmem %s286, 32 [#allocation2]
        %v358 = vld [vmem:[%s357] sm:$0xff]
        %v359 = vld [vmem:[%s357 + $0x8] sm:$0xff]
        %s360 = scalar_lea.vmem %s286, 48 [#allocation2]
        %v361 = vld [vmem:[%s360] sm:$0xff]
        %v362 = vld [vmem:[%s360 + $0x8] sm:$0xff]
        %s363 = scalar_lea.vmem %s286, 64 [#allocation2]
        %v364 = vld [vmem:[%s363] sm:$0xff]
        %v365 = vld [vmem:[%s363 + $0x8] sm:$0xff]
        %s366 = scalar_lea.vmem %s286, 80 [#allocation2]
        %v367 = vld [vmem:[%s366] sm:$0xff]
        %v368 = vld [vmem:[%s366 + $0x8] sm:$0xff]
        %s369 = scalar_lea.vmem %s286, 96 [#allocation2]
        %v370 = vld [vmem:[%s369] sm:$0xff]
        %v371 = vld [vmem:[%s369 + $0x8] sm:$0xff]
        %s372 = scalar_lea.vmem %s286, 112 [#allocation2]
        %v373 = vld [vmem:[%s372] sm:$0xff]
        %v374 = vld [vmem:[%s372 + $0x8] sm:$0xff]
        %s375 = scalar_lea.vmem %s286, 128 [#allocation2]
        %v376 = vld [vmem:[%s375] sm:$0xff]
        %v377 = vld [vmem:[%s375 + $0x8] sm:$0xff]
        %s378 = scalar_lea.vmem %s286, 144 [#allocation2]
        %v379 = vld [vmem:[%s378] sm:$0xff]
        %v380 = vld [vmem:[%s378 + $0x8] sm:$0xff]
        %s381 = scalar_lea.vmem %s286, 160 [#allocation2]
        %v382 = vld [vmem:[%s381] sm:$0xff]
        %v383 = vld [vmem:[%s381 + $0x8] sm:$0xff]
        %s384 = scalar_lea.vmem %s286, 176 [#allocation2]
        %v385 = vld [vmem:[%s384] sm:$0xff]
        %v386 = vld [vmem:[%s384 + $0x8] sm:$0xff]
        %s387 = scalar_lea.vmem %s286, 192 [#allocation2]
        %v388 = vld [vmem:[%s387] sm:$0xff]
        %v389 = vld [vmem:[%s387 + $0x8] sm:$0xff]
        %s390 = scalar_lea.vmem %s286, 208 [#allocation2]
        %v391 = vld [vmem:[%s390] sm:$0xff]
        %v392 = vld [vmem:[%s390 + $0x8] sm:$0xff]
        %s393 = scalar_lea.vmem %s286, 224 [#allocation2]
        %v394 = vld [vmem:[%s393] sm:$0xff]
        %v395 = vld [vmem:[%s393 + $0x8] sm:$0xff]
        %s396 = scalar_lea.vmem %s286, 240 [#allocation2]
        %v397 = vld [vmem:[%s396] sm:$0xff]
        %v398 = vld [vmem:[%s396 + $0x8] sm:$0xff]
        %s399 = sld [smem:[#allocation6 + $0x2]]
        %s400 = sld [smem:[#allocation6 + $0x3]]
        %s401 = sld [smem:[#allocation6 + $0x4]]
        %s402 = sld [smem:[#allocation6 + $0x5]]
        %s403 = sld [smem:[#allocation6 + $0x6]]
        %s404 = sld [smem:[#allocation6 + $0x7]]
        %s405 = sld [smem:[#allocation6]]
        %v406 = vstv %s405
        %s407 = sld [smem:[#allocation6 + $0x1]]
        %v408 = vstv %s407
        %409 = vrot.lane.b32.xlu0 %v397, 1
        %v410 = vpop.permute.xlu0 %409
        %411 = vrot.lane.b32.xlu0 %v398, 1
        %v412 = vpop.permute.xlu0 %411
        %vm413 = vcmp.lt.s32.totalorder %v338, 1
        %v414 = vsel %vm413, %v410, %v412
        %v415 = vsel %vm413, %v412, %v410
        %v416 = vmul.f32 %v415, %v344
        %v417 = vmul.f32 %v414, %v345
        %418 = vrot.lane.b32.xlu0 %v352, 127
        %v419 = vpop.permute.xlu0 %418
        %420 = vrot.lane.b32.xlu0 %v353, 127
        %v421 = vpop.permute.xlu0 %420
        %vm422 = vcmp.lt.s32.totalorder %v338, 127
        %v423 = vsel %vm422, %v419, %v421
        %v424 = vsel %vm422, %v421, %v419
        %v425 = vmul.f32 %v423, %v350
        %v426 = vmul.f32 %v424, %v351
        %v427 = vstv %s399
        %v428 = vmul.f32 %v427, %v416
        %v429 = vmul.f32 %v427, %v417
        %v430 = vadd.f32 %v406, %v428
        %v431 = vadd.f32 %v406, %v429
        %v432 = vstv %s400
        %v433 = vmul.f32 %v432, %v352
        %v434 = vmul.f32 %v432, %v353
        %v435 = vadd.f32 %v430, %v433
        %v436 = vadd.f32 %v431, %v434
        %v437 = vstv %s401
        %v438 = vmul.f32 %v437, %v355
        %v439 = vmul.f32 %v437, %v356
        %v440 = vadd.f32 %v435, %v438
        %v441 = vadd.f32 %v436, %v439
        %v442 = vmul.f32 %v427, %v352
        %v443 = vmul.f32 %v427, %v353
        %v444 = vadd.f32 %v406, %v442
        %v445 = vadd.f32 %v406, %v443
        %v446 = vmul.f32 %v432, %v355
        %v447 = vmul.f32 %v432, %v356
        %v448 = vadd.f32 %v444, %v446
        %v449 = vadd.f32 %v445, %v447
        %v450 = vmul.f32 %v437, %v358
        %v451 = vmul.f32 %v437, %v359
        %v452 = vadd.f32 %v448, %v450
        %v453 = vadd.f32 %v449, %v451
        %v454 = vmax.f32 %v440, %v452
        %v455 = vmax.f32 %v441, %v453
        %v456 = vmax.f32 %v454, 0.0
        %v457 = vmax.f32 %v455, 0.0
        %v458 = vstv %s402
        %v459 = vmul.f32 %v458, %v416
        %v460 = vmul.f32 %v458, %v417
        %v461 = vadd.f32 %v408, %v459
        %v462 = vadd.f32 %v408, %v460
        %v463 = vstv %s403
        %v464 = vmul.f32 %v463, %v352
        %v465 = vmul.f32 %v463, %v353
        %v466 = vadd.f32 %v461, %v464
        %v467 = vadd.f32 %v462, %v465
        %v468 = vstv %s404
        %v469 = vmul.f32 %v468, %v355
        %v470 = vmul.f32 %v468, %v356
        %v471 = vadd.f32 %v466, %v469
        %v472 = vadd.f32 %v467, %v470
        %v473 = vmul.f32 %v458, %v352
        %v474 = vmul.f32 %v458, %v353
        %v475 = vadd.f32 %v408, %v473
        %v476 = vadd.f32 %v408, %v474
        %v477 = vmul.f32 %v463, %v355
        %v478 = vmul.f32 %v463, %v356
        %v479 = vadd.f32 %v475, %v477
        %v480 = vadd.f32 %v476, %v478
        %v481 = vmul.f32 %v468, %v358
        %v482 = vmul.f32 %v468, %v359
        %v483 = vadd.f32 %v479, %v481
        %v484 = vadd.f32 %v480, %v482
        %v485 = vmax.f32 %v471, %v483
        %v486 = vmax.f32 %v472, %v484
        %v487 = vmax.f32 %v485, 0.0
        %v488 = vmax.f32 %v486, 0.0
        %v489 = vmul.f32 %v427, %v355
        %v490 = vmul.f32 %v427, %v356
        %v491 = vadd.f32 %v406, %v489
        %v492 = vadd.f32 %v406, %v490
        %v493 = vmul.f32 %v432, %v358
        %v494 = vmul.f32 %v432, %v359
        %v495 = vadd.f32 %v491, %v493
        %v496 = vadd.f32 %v492, %v494
        %v497 = vmul.f32 %v437, %v361
        %v498 = vmul.f32 %v437, %v362
        %v499 = vadd.f32 %v495, %v497
        %v500 = vadd.f32 %v496, %v498
        %v501 = vmul.f32 %v427, %v358
        %v502 = vmul.f32 %v427, %v359
        %v503 = vadd.f32 %v406, %v501
        %v504 = vadd.f32 %v406, %v502
        %v505 = vmul.f32 %v432, %v361
        %v506 = vmul.f32 %v432, %v362
        %v507 = vadd.f32 %v503, %v505
        %v508 = vadd.f32 %v504, %v506
        %v509 = vmul.f32 %v437, %v364
        %v510 = vmul.f32 %v437, %v365
        %v511 = vadd.f32 %v507, %v509
        %v512 = vadd.f32 %v508, %v510
        %v513 = vmax.f32 %v499, %v511
        %v514 = vmax.f32 %v500, %v512
        %v515 = vmax.f32 %v513, 0.0
        %v516 = vmax.f32 %v514, 0.0
        %v517 = vmul.f32 %v458, %v355
        %v518 = vmul.f32 %v458, %v356
        %v519 = vadd.f32 %v408, %v517
        %v520 = vadd.f32 %v408, %v518
        %v521 = vmul.f32 %v463, %v358
        %v522 = vmul.f32 %v463, %v359
        %v523 = vadd.f32 %v519, %v521
        %v524 = vadd.f32 %v520, %v522
        %v525 = vmul.f32 %v468, %v361
        %v526 = vmul.f32 %v468, %v362
        %v527 = vadd.f32 %v523, %v525
        %v528 = vadd.f32 %v524, %v526
        %v529 = vmul.f32 %v458, %v358
        %v530 = vmul.f32 %v458, %v359
        %v531 = vadd.f32 %v408, %v529
        %v532 = vadd.f32 %v408, %v530
        %v533 = vmul.f32 %v463, %v361
        %v534 = vmul.f32 %v463, %v362
        %v535 = vadd.f32 %v531, %v533
        %v536 = vadd.f32 %v532, %v534
        %v537 = vmul.f32 %v468, %v364
        %v538 = vmul.f32 %v468, %v365
        %v539 = vadd.f32 %v535, %v537
        %v540 = vadd.f32 %v536, %v538
        %v541 = vmax.f32 %v527, %v539
        %v542 = vmax.f32 %v528, %v540
        %v543 = vmax.f32 %v541, 0.0
        %v544 = vmax.f32 %v542, 0.0
        %v545 = vmul.f32 %v427, %v361
        %v546 = vmul.f32 %v427, %v362
        %v547 = vadd.f32 %v406, %v545
        %v548 = vadd.f32 %v406, %v546
        %v549 = vmul.f32 %v432, %v364
        %v550 = vmul.f32 %v432, %v365
        %v551 = vadd.f32 %v547, %v549
        %v552 = vadd.f32 %v548, %v550
        %v553 = vmul.f32 %v437, %v367
        %v554 = vmul.f32 %v437, %v368
        %v555 = vadd.f32 %v551, %v553
        %v556 = vadd.f32 %v552, %v554
        %v557 = vmul.f32 %v427, %v364
        %v558 = vmul.f32 %v427, %v365
        %v559 = vadd.f32 %v406, %v557
        %v560 = vadd.f32 %v406, %v558
        %v561 = vmul.f32 %v432, %v367
        %v562 = vmul.f32 %v432, %v368
        %v563 = vadd.f32 %v559, %v561
        %v564 = vadd.f32 %v560, %v562
        %v565 = vmul.f32 %v437, %v370
        %v566 = vmul.f32 %v437, %v371
        %v567 = vadd.f32 %v563, %v565
        %v568 = vadd.f32 %v564, %v566
        %v569 = vmax.f32 %v555, %v567
        %v570 = vmax.f32 %v556, %v568
        %v571 = vmax.f32 %v569, 0.0
        %v572 = vmax.f32 %v570, 0.0
        %v573 = vmul.f32 %v458, %v361
        %v574 = vmul.f32 %v458, %v362
        %v575 = vadd.f32 %v408, %v573
        %v576 = vadd.f32 %v408, %v574
        %v577 = vmul.f32 %v463, %v364
        %v578 = vmul.f32 %v463, %v365
        %v579 = vadd.f32 %v575, %v577
        %v580 = vadd.f32 %v576, %v578
        %v581 = vmul.f32 %v468, %v367
        %v582 = vmul.f32 %v468, %v368
        %v583 = vadd.f32 %v579, %v581
        %v584 = vadd.f32 %v580, %v582
        %v585 = vmul.f32 %v458, %v364
        %v586 = vmul.f32 %v458, %v365
        %v587 = vadd.f32 %v408, %v585
        %v588 = vadd.f32 %v408, %v586
        %v589 = vmul.f32 %v463, %v367
        %v590 = vmul.f32 %v463, %v368
        %v591 = vadd.f32 %v587, %v589
        %v592 = vadd.f32 %v588, %v590
        %v593 = vmul.f32 %v468, %v370
        %v594 = vmul.f32 %v468, %v371
        %v595 = vadd.f32 %v591, %v593
        %v596 = vadd.f32 %v592, %v594
        %v597 = vmax.f32 %v583, %v595
        %v598 = vmax.f32 %v584, %v596
        %v599 = vmax.f32 %v597, 0.0
        %v600 = vmax.f32 %v598, 0.0
        %v601 = vmul.f32 %v427, %v367
        %v602 = vmul.f32 %v427, %v368
        %v603 = vadd.f32 %v406, %v601
        %v604 = vadd.f32 %v406, %v602
        %v605 = vmul.f32 %v432, %v370
        %v606 = vmul.f32 %v432, %v371
        %v607 = vadd.f32 %v603, %v605
        %v608 = vadd.f32 %v604, %v606
        %v609 = vmul.f32 %v437, %v373
        %v610 = vmul.f32 %v437, %v374
        %v611 = vadd.f32 %v607, %v609
        %v612 = vadd.f32 %v608, %v610
        %v613 = vmul.f32 %v427, %v370
        %v614 = vmul.f32 %v427, %v371
        %v615 = vadd.f32 %v406, %v613
        %v616 = vadd.f32 %v406, %v614
        %v617 = vmul.f32 %v432, %v373
        %v618 = vmul.f32 %v432, %v374
        %v619 = vadd.f32 %v615, %v617
        %v620 = vadd.f32 %v616, %v618
        %v621 = vmul.f32 %v437, %v376
        %v622 = vmul.f32 %v437, %v377
        %v623 = vadd.f32 %v619, %v621
        %v624 = vadd.f32 %v620, %v622
        %v625 = vmax.f32 %v611, %v623
        %v626 = vmax.f32 %v612, %v624
        %v627 = vmax.f32 %v625, 0.0
        %v628 = vmax.f32 %v626, 0.0
        %v629 = vmul.f32 %v458, %v367
        %v630 = vmul.f32 %v458, %v368
        %v631 = vadd.f32 %v408, %v629
        %v632 = vadd.f32 %v408, %v630
        %v633 = vmul.f32 %v463, %v370
        %v634 = vmul.f32 %v463, %v371
        %v635 = vadd.f32 %v631, %v633
        %v636 = vadd.f32 %v632, %v634
        %v637 = vmul.f32 %v468, %v373
        %v638 = vmul.f32 %v468, %v374
        %v639 = vadd.f32 %v635, %v637
        %v640 = vadd.f32 %v636, %v638
        %v641 = vmul.f32 %v458, %v370
        %v642 = vmul.f32 %v458, %v371
        %v643 = vadd.f32 %v408, %v641
        %v644 = vadd.f32 %v408, %v642
        %v645 = vmul.f32 %v463, %v373
        %v646 = vmul.f32 %v463, %v374
        %v647 = vadd.f32 %v643, %v645
        %v648 = vadd.f32 %v644, %v646
        %v649 = vmul.f32 %v468, %v376
        %v650 = vmul.f32 %v468, %v377
        %v651 = vadd.f32 %v647, %v649
        %v652 = vadd.f32 %v648, %v650
        %v653 = vmax.f32 %v639, %v651
        %v654 = vmax.f32 %v640, %v652
        %v655 = vmax.f32 %v653, 0.0
        %v656 = vmax.f32 %v654, 0.0
        %v657 = vmul.f32 %v427, %v373
        %v658 = vmul.f32 %v427, %v374
        %v659 = vadd.f32 %v406, %v657
        %v660 = vadd.f32 %v406, %v658
        %v661 = vmul.f32 %v432, %v376
        %v662 = vmul.f32 %v432, %v377
        %v663 = vadd.f32 %v659, %v661
        %v664 = vadd.f32 %v660, %v662
        %v665 = vmul.f32 %v437, %v379
        %v666 = vmul.f32 %v437, %v380
        %v667 = vadd.f32 %v663, %v665
        %v668 = vadd.f32 %v664, %v666
        %v669 = vmul.f32 %v427, %v376
        %v670 = vmul.f32 %v427, %v377
        %v671 = vadd.f32 %v406, %v669
        %v672 = vadd.f32 %v406, %v670
        %v673 = vmul.f32 %v432, %v379
        %v674 = vmul.f32 %v432, %v380
        %v675 = vadd.f32 %v671, %v673
        %v676 = vadd.f32 %v672, %v674
        %v677 = vmul.f32 %v437, %v382
        %v678 = vmul.f32 %v437, %v383
        %v679 = vadd.f32 %v675, %v677
        %v680 = vadd.f32 %v676, %v678
        %v681 = vmax.f32 %v667, %v679
        %v682 = vmax.f32 %v668, %v680
        %v683 = vmax.f32 %v681, 0.0
        %v684 = vmax.f32 %v682, 0.0
        %v685 = vmul.f32 %v458, %v373
        %v686 = vmul.f32 %v458, %v374
        %v687 = vadd.f32 %v408, %v685
        %v688 = vadd.f32 %v408, %v686
        %v689 = vmul.f32 %v463, %v376
        %v690 = vmul.f32 %v463, %v377
        %v691 = vadd.f32 %v687, %v689
        %v692 = vadd.f32 %v688, %v690
        %v693 = vmul.f32 %v468, %v379
        %v694 = vmul.f32 %v468, %v380
        %v695 = vadd.f32 %v691, %v693
        %v696 = vadd.f32 %v692, %v694
        %v697 = vmul.f32 %v458, %v376
        %v698 = vmul.f32 %v458, %v377
        %v699 = vadd.f32 %v408, %v697
        %v700 = vadd.f32 %v408, %v698
        %v701 = vmul.f32 %v463, %v379
        %v702 = vmul.f32 %v463, %v380
        %v703 = vadd.f32 %v699, %v701
        %v704 = vadd.f32 %v700, %v702
        %v705 = vmul.f32 %v468, %v382
        %v706 = vmul.f32 %v468, %v383
        %v707 = vadd.f32 %v703, %v705
        %v708 = vadd.f32 %v704, %v706
        %v709 = vmax.f32 %v695, %v707
        %v710 = vmax.f32 %v696, %v708
        %v711 = vmax.f32 %v709, 0.0
        %v712 = vmax.f32 %v710, 0.0
        %v713 = vmul.f32 %v427, %v379
        %v714 = vmul.f32 %v427, %v380
        %v715 = vadd.f32 %v406, %v713
        %v716 = vadd.f32 %v406, %v714
        %v717 = vmul.f32 %v432, %v382
        %v718 = vmul.f32 %v432, %v383
        %v719 = vadd.f32 %v715, %v717
        %v720 = vadd.f32 %v716, %v718
        %v721 = vmul.f32 %v437, %v385
        %v722 = vmul.f32 %v437, %v386
        %v723 = vadd.f32 %v719, %v721
        %v724 = vadd.f32 %v720, %v722
        %v725 = vmul.f32 %v427, %v382
        %v726 = vmul.f32 %v427, %v383
        %v727 = vadd.f32 %v406, %v725
        %v728 = vadd.f32 %v406, %v726
        %v729 = vmul.f32 %v432, %v385
        %v730 = vmul.f32 %v432, %v386
        %v731 = vadd.f32 %v727, %v729
        %v732 = vadd.f32 %v728, %v730
        %v733 = vmul.f32 %v437, %v388
        %v734 = vmul.f32 %v437, %v389
        %v735 = vadd.f32 %v731, %v733
        %v736 = vadd.f32 %v732, %v734
        %v737 = vmax.f32 %v723, %v735
        %v738 = vmax.f32 %v724, %v736
        %v739 = vmax.f32 %v737, 0.0
        %v740 = vmax.f32 %v738, 0.0
        %v741 = vmul.f32 %v458, %v379
        %v742 = vmul.f32 %v458, %v380
        %v743 = vadd.f32 %v408, %v741
        %v744 = vadd.f32 %v408, %v742
        %v745 = vmul.f32 %v463, %v382
        %v746 = vmul.f32 %v463, %v383
        %v747 = vadd.f32 %v743, %v745
        %v748 = vadd.f32 %v744, %v746
        %v749 = vmul.f32 %v468, %v385
        %v750 = vmul.f32 %v468, %v386
        %v751 = vadd.f32 %v747, %v749
        %v752 = vadd.f32 %v748, %v750
        %v753 = vmul.f32 %v458, %v382
        %v754 = vmul.f32 %v458, %v383
        %v755 = vadd.f32 %v408, %v753
        %v756 = vadd.f32 %v408, %v754
        %v757 = vmul.f32 %v463, %v385
        %v758 = vmul.f32 %v463, %v386
        %v759 = vadd.f32 %v755, %v757
        %v760 = vadd.f32 %v756, %v758
        %v761 = vmul.f32 %v468, %v388
        %v762 = vmul.f32 %v468, %v389
        %v763 = vadd.f32 %v759, %v761
        %v764 = vadd.f32 %v760, %v762
        %v765 = vmax.f32 %v751, %v763
        %v766 = vmax.f32 %v752, %v764
        %v767 = vmax.f32 %v765, 0.0
        %v768 = vmax.f32 %v766, 0.0
        %v769 = vmul.f32 %v427, %v385
        %v770 = vmul.f32 %v427, %v386
        %v771 = vadd.f32 %v406, %v769
        %v772 = vadd.f32 %v406, %v770
        %v773 = vmul.f32 %v432, %v388
        %v774 = vmul.f32 %v432, %v389
        %v775 = vadd.f32 %v771, %v773
        %v776 = vadd.f32 %v772, %v774
        %v777 = vmul.f32 %v437, %v391
        %v778 = vmul.f32 %v437, %v392
        %v779 = vadd.f32 %v775, %v777
        %v780 = vadd.f32 %v776, %v778
        %v781 = vmul.f32 %v427, %v388
        %v782 = vmul.f32 %v427, %v389
        %v783 = vadd.f32 %v406, %v781
        %v784 = vadd.f32 %v406, %v782
        %v785 = vmul.f32 %v432, %v391
        %v786 = vmul.f32 %v432, %v392
        %v787 = vadd.f32 %v783, %v785
        %v788 = vadd.f32 %v784, %v786
        %v789 = vmul.f32 %v437, %v394
        %v790 = vmul.f32 %v437, %v395
        %v791 = vadd.f32 %v787, %v789
        %v792 = vadd.f32 %v788, %v790
        %v793 = vmax.f32 %v779, %v791
        %v794 = vmax.f32 %v780, %v792
        %v795 = vmax.f32 %v793, 0.0
        %v796 = vmax.f32 %v794, 0.0
        %v797 = vmul.f32 %v458, %v385
        %v798 = vmul.f32 %v458, %v386
        %v799 = vadd.f32 %v408, %v797
        %v800 = vadd.f32 %v408, %v798
        %v801 = vmul.f32 %v463, %v388
        %v802 = vmul.f32 %v463, %v389
        %v803 = vadd.f32 %v799, %v801
        %v804 = vadd.f32 %v800, %v802
        %v805 = vmul.f32 %v468, %v391
        %v806 = vmul.f32 %v468, %v392
        %v807 = vadd.f32 %v803, %v805
        %v808 = vadd.f32 %v804, %v806
        %v809 = vmul.f32 %v458, %v388
        %v810 = vmul.f32 %v458, %v389
        %v811 = vadd.f32 %v408, %v809
        %v812 = vadd.f32 %v408, %v810
        %v813 = vmul.f32 %v463, %v391
        %v814 = vmul.f32 %v463, %v392
        %v815 = vadd.f32 %v811, %v813
        %v816 = vadd.f32 %v812, %v814
        %v817 = vmul.f32 %v468, %v394
        %v818 = vmul.f32 %v468, %v395
        %v819 = vadd.f32 %v815, %v817
        %v820 = vadd.f32 %v816, %v818
        %v821 = vmax.f32 %v807, %v819
        %v822 = vmax.f32 %v808, %v820
        %v823 = vmax.f32 %v821, 0.0
        %v824 = vmax.f32 %v822, 0.0
        %v825 = vmul.f32 %v427, %v391
        %v826 = vmul.f32 %v427, %v392
        %v827 = vadd.f32 %v406, %v825
        %v828 = vadd.f32 %v406, %v826
        %v829 = vmul.f32 %v432, %v394
        %v830 = vmul.f32 %v432, %v395
        %v831 = vadd.f32 %v827, %v829
        %v832 = vadd.f32 %v828, %v830
        %v833 = vmul.f32 %v437, %v397
        %v834 = vmul.f32 %v437, %v398
        %v835 = vadd.f32 %v831, %v833
        %v836 = vadd.f32 %v832, %v834
        %v837 = vmul.f32 %v427, %v394
        %v838 = vmul.f32 %v427, %v395
        %v839 = vadd.f32 %v406, %v837
        %v840 = vadd.f32 %v406, %v838
        %v841 = vmul.f32 %v432, %v397
        %v842 = vmul.f32 %v432, %v398
        %v843 = vadd.f32 %v839, %v841
        %v844 = vadd.f32 %v840, %v842
        %v845 = vmul.f32 %v437, %v425
        %v846 = vmul.f32 %v437, %v426
        %v847 = vadd.f32 %v843, %v845
        %v848 = vadd.f32 %v844, %v846
        %v849 = vmax.f32 %v835, %v847
        %v850 = vmax.f32 %v836, %v848
        %v851 = vmax.f32 %v849, 0.0
        %v852 = vmax.f32 %v850, 0.0
        %v853 = vmul.f32 %v458, %v391
        %v854 = vmul.f32 %v458, %v392
        %v855 = vadd.f32 %v408, %v853
        %v856 = vadd.f32 %v408, %v854
        %v857 = vmul.f32 %v463, %v394
        %v858 = vmul.f32 %v463, %v395
        %v859 = vadd.f32 %v855, %v857
        %v860 = vadd.f32 %v856, %v858
        %v861 = vmul.f32 %v468, %v397
        %v862 = vmul.f32 %v468, %v398
        %v863 = vadd.f32 %v859, %v861
        %v864 = vadd.f32 %v860, %v862
        %v865 = vmul.f32 %v458, %v394
        %v866 = vmul.f32 %v458, %v395
        %v867 = vadd.f32 %v408, %v865
        %v868 = vadd.f32 %v408, %v866
        %v869 = vmul.f32 %v463, %v397
        %v870 = vmul.f32 %v463, %v398
        %v871 = vadd.f32 %v867, %v869
        %v872 = vadd.f32 %v868, %v870
        %v873 = vmul.f32 %v468, %v425
        %v874 = vmul.f32 %v468, %v426
        %v875 = vadd.f32 %v871, %v873
        %v876 = vadd.f32 %v872, %v874
        %v877 = vmax.f32 %v863, %v875
        %v878 = vmax.f32 %v864, %v876
        %v879 = vmax.f32 %v877, 0.0
        %v880 = vmax.f32 %v878, 0.0
        %s881 = sld [smem:[#allocation6 + $0xc]]
        %s882 = sld [smem:[#allocation6 + $0xd]]
        %s883 = sld [smem:[#allocation6 + $0xe]]
        %s884 = sld [smem:[#allocation6 + $0xf]]
        %s885 = sld [smem:[#allocation6 + $0x10]]
        %s886 = sld [smem:[#allocation6 + $0x11]]
        %s887 = sld [smem:[#allocation6 + $0x12]]
        %s888 = sld [smem:[#allocation6 + $0x13]]
        %s889 = sld [smem:[#allocation6 + $0x14]]
        %s890 = sld [smem:[#allocation6 + $0x15]]
        %s891 = sld [smem:[#allocation6 + $0x16]]
        %s892 = sld [smem:[#allocation6 + $0x17]]
        %s893 = sld [smem:[#allocation6 + $0x18]]
        %s894 = sld [smem:[#allocation6 + $0x19]]
        %s895 = sld [smem:[#allocation6 + $0x1a]]
        %s896 = sld [smem:[#allocation6 + $0x1b]]
        %s897 = sld [smem:[#allocation6 + $0x1c]]
        %s898 = sld [smem:[#allocation6 + $0x1d]]
        %s899 = sld [smem:[#allocation6 + $0x1e]]
        %s900 = sld [smem:[#allocation6 + $0x1f]]
        %s901 = sld [smem:[#allocation6 + $0x20]]
        %s902 = sld [smem:[#allocation6 + $0x21]]
        %s903 = sld [smem:[#allocation6 + $0x22]]
        %s904 = sld [smem:[#allocation6 + $0x23]]
        %s905 = sld [smem:[#allocation6 + $0x8]]
        %v906 = vstv %s905
        %s907 = sld [smem:[#allocation6 + $0x9]]
        %v908 = vstv %s907
        %s909 = sld [smem:[#allocation6 + $0xa]]
        %v910 = vstv %s909
        %s911 = sld [smem:[#allocation6 + $0xb]]
        %v912 = vstv %s911
        %913 = vrot.lane.b32.xlu0 %v851, 1
        %v914 = vpop.permute.xlu0 %913
        %915 = vrot.lane.b32.xlu0 %v852, 1
        %v916 = vpop.permute.xlu0 %915
        %v917 = vsel %vm413, %v914, %v916
        %v918 = vsel %vm413, %v916, %v914
        %v919 = vmul.f32 %v918, %v344
        %v920 = vmul.f32 %v917, %v345
        %921 = vrot.lane.b32.xlu0 %v879, 1
        %v922 = vpop.permute.xlu0 %921
        %923 = vrot.lane.b32.xlu0 %v880, 1
        %v924 = vpop.permute.xlu0 %923
        %v925 = vsel %vm413, %v922, %v924
        %v926 = vsel %vm413, %v924, %v922
        %v927 = vmul.f32 %v926, %v344
        %v928 = vmul.f32 %v925, %v345
        %929 = vrot.lane.b32.xlu0 %v456, 127
        %v930 = vpop.permute.xlu0 %929
        %931 = vrot.lane.b32.xlu0 %v457, 127
        %v932 = vpop.permute.xlu0 %931
        %v933 = vsel %vm422, %v930, %v932
        %v934 = vsel %vm422, %v932, %v930
        %v935 = vmul.f32 %v933, %v350
        %v936 = vmul.f32 %v934, %v351
        %937 = vrot.lane.b32.xlu0 %v487, 127
        %v938 = vpop.permute.xlu0 %937
        %939 = vrot.lane.b32.xlu0 %v488, 127
        %v940 = vpop.permute.xlu0 %939
        %v941 = vsel %vm422, %v938, %v940
        %v942 = vsel %vm422, %v940, %v938
        %v943 = vmul.f32 %v941, %v350
        %v944 = vmul.f32 %v942, %v351
        %v945 = vstv %s881
        %v946 = vmul.f32 %v945, %v919
        %v947 = vmul.f32 %v945, %v920
        %v948 = vadd.f32 %v906, %v946
        %v949 = vadd.f32 %v906, %v947
        %v950 = vstv %s884
        %v951 = vmul.f32 %v950, %v927
        %v952 = vmul.f32 %v950, %v928
        %v953 = vadd.f32 %v948, %v951
        %v954 = vadd.f32 %v949, %v952
        %v955 = vstv %s882
        %v956 = vmul.f32 %v955, %v456
        %v957 = vmul.f32 %v955, %v457
        %v958 = vadd.f32 %v953, %v956
        %v959 = vadd.f32 %v954, %v957
        %v960 = vstv %s885
        %v961 = vmul.f32 %v960, %v487
        %v962 = vmul.f32 %v960, %v488
        %v963 = vadd.f32 %v958, %v961
        %v964 = vadd.f32 %v959, %v962
        %v965 = vstv %s883
        %v966 = vmul.f32 %v965, %v515
        %v967 = vmul.f32 %v965, %v516
        %v968 = vadd.f32 %v963, %v966
        %v969 = vadd.f32 %v964, %v967
        %v970 = vstv %s886
        %v971 = vmul.f32 %v970, %v543
        %v972 = vmul.f32 %v970, %v544
        %v973 = vadd.f32 %v968, %v971
        %v974 = vadd.f32 %v969, %v972
        %v975 = vmul.f32 %v945, %v456
        %v976 = vmul.f32 %v945, %v457
        %v977 = vadd.f32 %v906, %v975
        %v978 = vadd.f32 %v906, %v976
        %v979 = vmul.f32 %v950, %v487
        %v980 = vmul.f32 %v950, %v488
        %v981 = vadd.f32 %v977, %v979
        %v982 = vadd.f32 %v978, %v980
        %v983 = vmul.f32 %v955, %v515
        %v984 = vmul.f32 %v955, %v516
        %v985 = vadd.f32 %v981, %v983
        %v986 = vadd.f32 %v982, %v984
        %v987 = vmul.f32 %v960, %v543
        %v988 = vmul.f32 %v960, %v544
        %v989 = vadd.f32 %v985, %v987
        %v990 = vadd.f32 %v986, %v988
        %v991 = vmul.f32 %v965, %v571
        %v992 = vmul.f32 %v965, %v572
        %v993 = vadd.f32 %v989, %v991
        %v994 = vadd.f32 %v990, %v992
        %v995 = vmul.f32 %v970, %v599
        %v996 = vmul.f32 %v970, %v600
        %v997 = vadd.f32 %v993, %v995
        %v998 = vadd.f32 %v994, %v996
        %v999 = vmax.f32 %v973, %v997
        %v1000 = vmax.f32 %v974, %v998
        %v1001 = vmax.f32 %v999, 0.0
        %v1002 = vmax.f32 %v1000, 0.0
        %v1003 = vstv %s887
        %v1004 = vmul.f32 %v1003, %v919
        %v1005 = vmul.f32 %v1003, %v920
        %v1006 = vadd.f32 %v908, %v1004
        %v1007 = vadd.f32 %v908, %v1005
        %v1008 = vstv %s890
        %v1009 = vmul.f32 %v1008, %v927
        %v1010 = vmul.f32 %v1008, %v928
        %v1011 = vadd.f32 %v1006, %v1009
        %v1012 = vadd.f32 %v1007, %v1010
        %v1013 = vstv %s888
        %v1014 = vmul.f32 %v1013, %v456
        %v1015 = vmul.f32 %v1013, %v457
        %v1016 = vadd.f32 %v1011, %v1014
        %v1017 = vadd.f32 %v1012, %v1015
        %v1018 = vstv %s891
        %v1019 = vmul.f32 %v1018, %v487
        %v1020 = vmul.f32 %v1018, %v488
        %v1021 = vadd.f32 %v1016, %v1019
        %v1022 = vadd.f32 %v1017, %v1020
        %v1023 = vstv %s889
        %v1024 = vmul.f32 %v1023, %v515
        %v1025 = vmul.f32 %v1023, %v516
        %v1026 = vadd.f32 %v1021, %v1024
        %v1027 = vadd.f32 %v1022, %v1025
        %v1028 = vstv %s892
        %v1029 = vmul.f32 %v1028, %v543
        %v1030 = vmul.f32 %v1028, %v544
        %v1031 = vadd.f32 %v1026, %v1029
        %v1032 = vadd.f32 %v1027, %v1030
        %v1033 = vmul.f32 %v1003, %v456
        %v1034 = vmul.f32 %v1003, %v457
        %v1035 = vadd.f32 %v908, %v1033
        %v1036 = vadd.f32 %v908, %v1034
        %v1037 = vmul.f32 %v1008, %v487
        %v1038 = vmul.f32 %v1008, %v488
        %v1039 = vadd.f32 %v1035, %v1037
        %v1040 = vadd.f32 %v1036, %v1038
        %v1041 = vmul.f32 %v1013, %v515
        %v1042 = vmul.f32 %v1013, %v516
        %v1043 = vadd.f32 %v1039, %v1041
        %v1044 = vadd.f32 %v1040, %v1042
        %v1045 = vmul.f32 %v1018, %v543
        %v1046 = vmul.f32 %v1018, %v544
        %v1047 = vadd.f32 %v1043, %v1045
        %v1048 = vadd.f32 %v1044, %v1046
        %v1049 = vmul.f32 %v1023, %v571
        %v1050 = vmul.f32 %v1023, %v572
        %v1051 = vadd.f32 %v1047, %v1049
        %v1052 = vadd.f32 %v1048, %v1050
        %v1053 = vmul.f32 %v1028, %v599
        %v1054 = vmul.f32 %v1028, %v600
        %v1055 = vadd.f32 %v1051, %v1053
        %v1056 = vadd.f32 %v1052, %v1054
        %v1057 = vmax.f32 %v1031, %v1055
        %v1058 = vmax.f32 %v1032, %v1056
        %v1059 = vmax.f32 %v1057, 0.0
        %v1060 = vmax.f32 %v1058, 0.0
        %v1061 = vstv %s893
        %v1062 = vmul.f32 %v1061, %v919
        %v1063 = vmul.f32 %v1061, %v920
        %v1064 = vadd.f32 %v910, %v1062
        %v1065 = vadd.f32 %v910, %v1063
        %v1066 = vstv %s896
        %v1067 = vmul.f32 %v1066, %v927
        %v1068 = vmul.f32 %v1066, %v928
        %v1069 = vadd.f32 %v1064, %v1067
        %v1070 = vadd.f32 %v1065, %v1068
        %v1071 = vstv %s894
        %v1072 = vmul.f32 %v1071, %v456
        %v1073 = vmul.f32 %v1071, %v457
        %v1074 = vadd.f32 %v1069, %v1072
        %v1075 = vadd.f32 %v1070, %v1073
        %v1076 = vstv %s897
        %v1077 = vmul.f32 %v1076, %v487
        %v1078 = vmul.f32 %v1076, %v488
        %v1079 = vadd.f32 %v1074, %v1077
        %v1080 = vadd.f32 %v1075, %v1078
        %v1081 = vstv %s895
        %v1082 = vmul.f32 %v1081, %v515
        %v1083 = vmul.f32 %v1081, %v516
        %v1084 = vadd.f32 %v1079, %v1082
        %v1085 = vadd.f32 %v1080, %v1083
        %v1086 = vstv %s898
        %v1087 = vmul.f32 %v1086, %v543
        %v1088 = vmul.f32 %v1086, %v544
        %v1089 = vadd.f32 %v1084, %v1087
        %v1090 = vadd.f32 %v1085, %v1088
        %v1091 = vmul.f32 %v1061, %v456
        %v1092 = vmul.f32 %v1061, %v457
        %v1093 = vadd.f32 %v910, %v1091
        %v1094 = vadd.f32 %v910, %v1092
        %v1095 = vmul.f32 %v1066, %v487
        %v1096 = vmul.f32 %v1066, %v488
        %v1097 = vadd.f32 %v1093, %v1095
        %v1098 = vadd.f32 %v1094, %v1096
        %v1099 = vmul.f32 %v1071, %v515
        %v1100 = vmul.f32 %v1071, %v516
        %v1101 = vadd.f32 %v1097, %v1099
        %v1102 = vadd.f32 %v1098, %v1100
        %v1103 = vmul.f32 %v1076, %v543
        %v1104 = vmul.f32 %v1076, %v544
        %v1105 = vadd.f32 %v1101, %v1103
        %v1106 = vadd.f32 %v1102, %v1104
        %v1107 = vmul.f32 %v1081, %v571
        %v1108 = vmul.f32 %v1081, %v572
        %v1109 = vadd.f32 %v1105, %v1107
        %v1110 = vadd.f32 %v1106, %v1108
        %v1111 = vmul.f32 %v1086, %v599
        %v1112 = vmul.f32 %v1086, %v600
        %v1113 = vadd.f32 %v1109, %v1111
        %v1114 = vadd.f32 %v1110, %v1112
        %v1115 = vmax.f32 %v1089, %v1113
        %v1116 = vmax.f32 %v1090, %v1114
        %v1117 = vmax.f32 %v1115, 0.0
        %v1118 = vmax.f32 %v1116, 0.0
        %v1119 = vstv %s899
        %v1120 = vmul.f32 %v1119, %v919
        %v1121 = vmul.f32 %v1119, %v920
        %v1122 = vadd.f32 %v912, %v1120
        %v1123 = vadd.f32 %v912, %v1121
        %v1124 = vstv %s902
        %v1125 = vmul.f32 %v1124, %v927
        %v1126 = vmul.f32 %v1124, %v928
        %v1127 = vadd.f32 %v1122, %v1125
        %v1128 = vadd.f32 %v1123, %v1126
        %v1129 = vstv %s900
        %v1130 = vmul.f32 %v1129, %v456
        %v1131 = vmul.f32 %v1129, %v457
        %v1132 = vadd.f32 %v1127, %v1130
        %v1133 = vadd.f32 %v1128, %v1131
        %v1134 = vstv %s903
        %v1135 = vmul.f32 %v1134, %v487
        %v1136 = vmul.f32 %v1134, %v488
        %v1137 = vadd.f32 %v1132, %v1135
        %v1138 = vadd.f32 %v1133, %v1136
        %v1139 = vstv %s901
        %v1140 = vmul.f32 %v1139, %v515
        %v1141 = vmul.f32 %v1139, %v516
        %v1142 = vadd.f32 %v1137, %v1140
        %v1143 = vadd.f32 %v1138, %v1141
        %v1144 = vstv %s904
        %v1145 = vmul.f32 %v1144, %v543
        %v1146 = vmul.f32 %v1144, %v544
        %v1147 = vadd.f32 %v1142, %v1145
        %v1148 = vadd.f32 %v1143, %v1146
        %v1149 = vmul.f32 %v1119, %v456
        %v1150 = vmul.f32 %v1119, %v457
        %v1151 = vadd.f32 %v912, %v1149
        %v1152 = vadd.f32 %v912, %v1150
        %v1153 = vmul.f32 %v1124, %v487
        %v1154 = vmul.f32 %v1124, %v488
        %v1155 = vadd.f32 %v1151, %v1153
        %v1156 = vadd.f32 %v1152, %v1154
        %v1157 = vmul.f32 %v1129, %v515
        %v1158 = vmul.f32 %v1129, %v516
        %v1159 = vadd.f32 %v1155, %v1157
        %v1160 = vadd.f32 %v1156, %v1158
        %v1161 = vmul.f32 %v1134, %v543
        %v1162 = vmul.f32 %v1134, %v544
        %v1163 = vadd.f32 %v1159, %v1161
        %v1164 = vadd.f32 %v1160, %v1162
        %v1165 = vmul.f32 %v1139, %v571
        %v1166 = vmul.f32 %v1139, %v572
        %v1167 = vadd.f32 %v1163, %v1165
        %v1168 = vadd.f32 %v1164, %v1166
        %v1169 = vmul.f32 %v1144, %v599
        %v1170 = vmul.f32 %v1144, %v600
        %v1171 = vadd.f32 %v1167, %v1169
        %v1172 = vadd.f32 %v1168, %v1170
        %v1173 = vmax.f32 %v1147, %v1171
        %v1174 = vmax.f32 %v1148, %v1172
        %v1175 = vmax.f32 %v1173, 0.0
        %v1176 = vmax.f32 %v1174, 0.0
        %v1177 = vmul.f32 %v945, %v515
        %v1178 = vmul.f32 %v945, %v516
        %v1179 = vadd.f32 %v906, %v1177
        %v1180 = vadd.f32 %v906, %v1178
        %v1181 = vmul.f32 %v950, %v543
        %v1182 = vmul.f32 %v950, %v544
        %v1183 = vadd.f32 %v1179, %v1181
        %v1184 = vadd.f32 %v1180, %v1182
        %v1185 = vmul.f32 %v955, %v571
        %v1186 = vmul.f32 %v955, %v572
        %v1187 = vadd.f32 %v1183, %v1185
        %v1188 = vadd.f32 %v1184, %v1186
        %v1189 = vmul.f32 %v960, %v599
        %v1190 = vmul.f32 %v960, %v600
        %v1191 = vadd.f32 %v1187, %v1189
        %v1192 = vadd.f32 %v1188, %v1190
        %v1193 = vmul.f32 %v965, %v627
        %v1194 = vmul.f32 %v965, %v628
        %v1195 = vadd.f32 %v1191, %v1193
        %v1196 = vadd.f32 %v1192, %v1194
        %v1197 = vmul.f32 %v970, %v655
        %v1198 = vmul.f32 %v970, %v656
        %v1199 = vadd.f32 %v1195, %v1197
        %v1200 = vadd.f32 %v1196, %v1198
        %v1201 = vmul.f32 %v945, %v571
        %v1202 = vmul.f32 %v945, %v572
        %v1203 = vadd.f32 %v906, %v1201
        %v1204 = vadd.f32 %v906, %v1202
        %v1205 = vmul.f32 %v950, %v599
        %v1206 = vmul.f32 %v950, %v600
        %v1207 = vadd.f32 %v1203, %v1205
        %v1208 = vadd.f32 %v1204, %v1206
        %v1209 = vmul.f32 %v955, %v627
        %v1210 = vmul.f32 %v955, %v628
        %v1211 = vadd.f32 %v1207, %v1209
        %v1212 = vadd.f32 %v1208, %v1210
        %v1213 = vmul.f32 %v960, %v655
        %v1214 = vmul.f32 %v960, %v656
        %v1215 = vadd.f32 %v1211, %v1213
        %v1216 = vadd.f32 %v1212, %v1214
        %v1217 = vmul.f32 %v965, %v683
        %v1218 = vmul.f32 %v965, %v684
        %v1219 = vadd.f32 %v1215, %v1217
        %v1220 = vadd.f32 %v1216, %v1218
        %v1221 = vmul.f32 %v970, %v711
        %v1222 = vmul.f32 %v970, %v712
        %v1223 = vadd.f32 %v1219, %v1221
        %v1224 = vadd.f32 %v1220, %v1222
        %v1225 = vmax.f32 %v1199, %v1223
        %v1226 = vmax.f32 %v1200, %v1224
        %v1227 = vmax.f32 %v1225, 0.0
        %v1228 = vmax.f32 %v1226, 0.0
        %v1229 = vmul.f32 %v1003, %v515
        %v1230 = vmul.f32 %v1003, %v516
        %v1231 = vadd.f32 %v908, %v1229
        %v1232 = vadd.f32 %v908, %v1230
        %v1233 = vmul.f32 %v1008, %v543
        %v1234 = vmul.f32 %v1008, %v544
        %v1235 = vadd.f32 %v1231, %v1233
        %v1236 = vadd.f32 %v1232, %v1234
        %v1237 = vmul.f32 %v1013, %v571
        %v1238 = vmul.f32 %v1013, %v572
        %v1239 = vadd.f32 %v1235, %v1237
        %v1240 = vadd.f32 %v1236, %v1238
        %v1241 = vmul.f32 %v1018, %v599
        %v1242 = vmul.f32 %v1018, %v600
        %v1243 = vadd.f32 %v1239, %v1241
        %v1244 = vadd.f32 %v1240, %v1242
        %v1245 = vmul.f32 %v1023, %v627
        %v1246 = vmul.f32 %v1023, %v628
        %v1247 = vadd.f32 %v1243, %v1245
        %v1248 = vadd.f32 %v1244, %v1246
        %v1249 = vmul.f32 %v1028, %v655
        %v1250 = vmul.f32 %v1028, %v656
        %v1251 = vadd.f32 %v1247, %v1249
        %v1252 = vadd.f32 %v1248, %v1250
        %v1253 = vmul.f32 %v1003, %v571
        %v1254 = vmul.f32 %v1003, %v572
        %v1255 = vadd.f32 %v908, %v1253
        %v1256 = vadd.f32 %v908, %v1254
        %v1257 = vmul.f32 %v1008, %v599
        %v1258 = vmul.f32 %v1008, %v600
        %v1259 = vadd.f32 %v1255, %v1257
        %v1260 = vadd.f32 %v1256, %v1258
        %v1261 = vmul.f32 %v1013, %v627
        %v1262 = vmul.f32 %v1013, %v628
        %v1263 = vadd.f32 %v1259, %v1261
        %v1264 = vadd.f32 %v1260, %v1262
        %v1265 = vmul.f32 %v1018, %v655
        %v1266 = vmul.f32 %v1018, %v656
        %v1267 = vadd.f32 %v1263, %v1265
        %v1268 = vadd.f32 %v1264, %v1266
        %v1269 = vmul.f32 %v1023, %v683
        %v1270 = vmul.f32 %v1023, %v684
        %v1271 = vadd.f32 %v1267, %v1269
        %v1272 = vadd.f32 %v1268, %v1270
        %v1273 = vmul.f32 %v1028, %v711
        %v1274 = vmul.f32 %v1028, %v712
        %v1275 = vadd.f32 %v1271, %v1273
        %v1276 = vadd.f32 %v1272, %v1274
        %v1277 = vmax.f32 %v1251, %v1275
        %v1278 = vmax.f32 %v1252, %v1276
        %v1279 = vmax.f32 %v1277, 0.0
        %v1280 = vmax.f32 %v1278, 0.0
        %v1281 = vmul.f32 %v1061, %v515
        %v1282 = vmul.f32 %v1061, %v516
        %v1283 = vadd.f32 %v910, %v1281
        %v1284 = vadd.f32 %v910, %v1282
        %v1285 = vmul.f32 %v1066, %v543
        %v1286 = vmul.f32 %v1066, %v544
        %v1287 = vadd.f32 %v1283, %v1285
        %v1288 = vadd.f32 %v1284, %v1286
        %v1289 = vmul.f32 %v1071, %v571
        %v1290 = vmul.f32 %v1071, %v572
        %v1291 = vadd.f32 %v1287, %v1289
        %v1292 = vadd.f32 %v1288, %v1290
        %v1293 = vmul.f32 %v1076, %v599
        %v1294 = vmul.f32 %v1076, %v600
        %v1295 = vadd.f32 %v1291, %v1293
        %v1296 = vadd.f32 %v1292, %v1294
        %v1297 = vmul.f32 %v1081, %v627
        %v1298 = vmul.f32 %v1081, %v628
        %v1299 = vadd.f32 %v1295, %v1297
        %v1300 = vadd.f32 %v1296, %v1298
        %v1301 = vmul.f32 %v1086, %v655
        %v1302 = vmul.f32 %v1086, %v656
        %v1303 = vadd.f32 %v1299, %v1301
        %v1304 = vadd.f32 %v1300, %v1302
        %v1305 = vmul.f32 %v1061, %v571
        %v1306 = vmul.f32 %v1061, %v572
        %v1307 = vadd.f32 %v910, %v1305
        %v1308 = vadd.f32 %v910, %v1306
        %v1309 = vmul.f32 %v1066, %v599
        %v1310 = vmul.f32 %v1066, %v600
        %v1311 = vadd.f32 %v1307, %v1309
        %v1312 = vadd.f32 %v1308, %v1310
        %v1313 = vmul.f32 %v1071, %v627
        %v1314 = vmul.f32 %v1071, %v628
        %v1315 = vadd.f32 %v1311, %v1313
        %v1316 = vadd.f32 %v1312, %v1314
        %v1317 = vmul.f32 %v1076, %v655
        %v1318 = vmul.f32 %v1076, %v656
        %v1319 = vadd.f32 %v1315, %v1317
        %v1320 = vadd.f32 %v1316, %v1318
        %v1321 = vmul.f32 %v1081, %v683
        %v1322 = vmul.f32 %v1081, %v684
        %v1323 = vadd.f32 %v1319, %v1321
        %v1324 = vadd.f32 %v1320, %v1322
        %v1325 = vmul.f32 %v1086, %v711
        %v1326 = vmul.f32 %v1086, %v712
        %v1327 = vadd.f32 %v1323, %v1325
        %v1328 = vadd.f32 %v1324, %v1326
        %v1329 = vmax.f32 %v1303, %v1327
        %v1330 = vmax.f32 %v1304, %v1328
        %v1331 = vmax.f32 %v1329, 0.0
        %v1332 = vmax.f32 %v1330, 0.0
        %v1333 = vmul.f32 %v1119, %v515
        %v1334 = vmul.f32 %v1119, %v516
        %v1335 = vadd.f32 %v912, %v1333
        %v1336 = vadd.f32 %v912, %v1334
        %v1337 = vmul.f32 %v1124, %v543
        %v1338 = vmul.f32 %v1124, %v544
        %v1339 = vadd.f32 %v1335, %v1337
        %v1340 = vadd.f32 %v1336, %v1338
        %v1341 = vmul.f32 %v1129, %v571
        %v1342 = vmul.f32 %v1129, %v572
        %v1343 = vadd.f32 %v1339, %v1341
        %v1344 = vadd.f32 %v1340, %v1342
        %v1345 = vmul.f32 %v1134, %v599
        %v1346 = vmul.f32 %v1134, %v600
        %v1347 = vadd.f32 %v1343, %v1345
        %v1348 = vadd.f32 %v1344, %v1346
        %v1349 = vmul.f32 %v1139, %v627
        %v1350 = vmul.f32 %v1139, %v628
        %v1351 = vadd.f32 %v1347, %v1349
        %v1352 = vadd.f32 %v1348, %v1350
        %v1353 = vmul.f32 %v1144, %v655
        %v1354 = vmul.f32 %v1144, %v656
        %v1355 = vadd.f32 %v1351, %v1353
        %v1356 = vadd.f32 %v1352, %v1354
        %v1357 = vmul.f32 %v1119, %v571
        %v1358 = vmul.f32 %v1119, %v572
        %v1359 = vadd.f32 %v912, %v1357
        %v1360 = vadd.f32 %v912, %v1358
        %v1361 = vmul.f32 %v1124, %v599
        %v1362 = vmul.f32 %v1124, %v600
        %v1363 = vadd.f32 %v1359, %v1361
        %v1364 = vadd.f32 %v1360, %v1362
        %v1365 = vmul.f32 %v1129, %v627
        %v1366 = vmul.f32 %v1129, %v628
        %v1367 = vadd.f32 %v1363, %v1365
        %v1368 = vadd.f32 %v1364, %v1366
        %v1369 = vmul.f32 %v1134, %v655
        %v1370 = vmul.f32 %v1134, %v656
        %v1371 = vadd.f32 %v1367, %v1369
        %v1372 = vadd.f32 %v1368, %v1370
        %v1373 = vmul.f32 %v1139, %v683
        %v1374 = vmul.f32 %v1139, %v684
        %v1375 = vadd.f32 %v1371, %v1373
        %v1376 = vadd.f32 %v1372, %v1374
        %v1377 = vmul.f32 %v1144, %v711
        %v1378 = vmul.f32 %v1144, %v712
        %v1379 = vadd.f32 %v1375, %v1377
        %v1380 = vadd.f32 %v1376, %v1378
        %v1381 = vmax.f32 %v1355, %v1379
        %v1382 = vmax.f32 %v1356, %v1380
        %v1383 = vmax.f32 %v1381, 0.0
        %v1384 = vmax.f32 %v1382, 0.0
        %v1385 = vmul.f32 %v945, %v627
        %v1386 = vmul.f32 %v945, %v628
        %v1387 = vadd.f32 %v906, %v1385
        %v1388 = vadd.f32 %v906, %v1386
        %v1389 = vmul.f32 %v950, %v655
        %v1390 = vmul.f32 %v950, %v656
        %v1391 = vadd.f32 %v1387, %v1389
        %v1392 = vadd.f32 %v1388, %v1390
        %v1393 = vmul.f32 %v955, %v683
        %v1394 = vmul.f32 %v955, %v684
        %v1395 = vadd.f32 %v1391, %v1393
        %v1396 = vadd.f32 %v1392, %v1394
        %v1397 = vmul.f32 %v960, %v711
        %v1398 = vmul.f32 %v960, %v712
        %v1399 = vadd.f32 %v1395, %v1397
        %v1400 = vadd.f32 %v1396, %v1398
        %v1401 = vmul.f32 %v965, %v739
        %v1402 = vmul.f32 %v965, %v740
        %v1403 = vadd.f32 %v1399, %v1401
        %v1404 = vadd.f32 %v1400, %v1402
        %v1405 = vmul.f32 %v970, %v767
        %v1406 = vmul.f32 %v970, %v768
        %v1407 = vadd.f32 %v1403, %v1405
        %v1408 = vadd.f32 %v1404, %v1406
        %v1409 = vmul.f32 %v945, %v683
        %v1410 = vmul.f32 %v945, %v684
        %v1411 = vadd.f32 %v906, %v1409
        %v1412 = vadd.f32 %v906, %v1410
        %v1413 = vmul.f32 %v950, %v711
        %v1414 = vmul.f32 %v950, %v712
        %v1415 = vadd.f32 %v1411, %v1413
        %v1416 = vadd.f32 %v1412, %v1414
        %v1417 = vmul.f32 %v955, %v739
        %v1418 = vmul.f32 %v955, %v740
        %v1419 = vadd.f32 %v1415, %v1417
        %v1420 = vadd.f32 %v1416, %v1418
        %v1421 = vmul.f32 %v960, %v767
        %v1422 = vmul.f32 %v960, %v768
        %v1423 = vadd.f32 %v1419, %v1421
        %v1424 = vadd.f32 %v1420, %v1422
        %v1425 = vmul.f32 %v965, %v795
        %v1426 = vmul.f32 %v965, %v796
        %v1427 = vadd.f32 %v1423, %v1425
        %v1428 = vadd.f32 %v1424, %v1426
        %v1429 = vmul.f32 %v970, %v823
        %v1430 = vmul.f32 %v970, %v824
        %v1431 = vadd.f32 %v1427, %v1429
        %v1432 = vadd.f32 %v1428, %v1430
        %v1433 = vmax.f32 %v1407, %v1431
        %v1434 = vmax.f32 %v1408, %v1432
        %v1435 = vmax.f32 %v1433, 0.0
        %v1436 = vmax.f32 %v1434, 0.0
        %v1437 = vmul.f32 %v1003, %v627
        %v1438 = vmul.f32 %v1003, %v628
        %v1439 = vadd.f32 %v908, %v1437
        %v1440 = vadd.f32 %v908, %v1438
        %v1441 = vmul.f32 %v1008, %v655
        %v1442 = vmul.f32 %v1008, %v656
        %v1443 = vadd.f32 %v1439, %v1441
        %v1444 = vadd.f32 %v1440, %v1442
        %v1445 = vmul.f32 %v1013, %v683
        %v1446 = vmul.f32 %v1013, %v684
        %v1447 = vadd.f32 %v1443, %v1445
        %v1448 = vadd.f32 %v1444, %v1446
        %v1449 = vmul.f32 %v1018, %v711
        %v1450 = vmul.f32 %v1018, %v712
        %v1451 = vadd.f32 %v1447, %v1449
        %v1452 = vadd.f32 %v1448, %v1450
        %v1453 = vmul.f32 %v1023, %v739
        %v1454 = vmul.f32 %v1023, %v740
        %v1455 = vadd.f32 %v1451, %v1453
        %v1456 = vadd.f32 %v1452, %v1454
        %v1457 = vmul.f32 %v1028, %v767
        %v1458 = vmul.f32 %v1028, %v768
        %v1459 = vadd.f32 %v1455, %v1457
        %v1460 = vadd.f32 %v1456, %v1458
        %v1461 = vmul.f32 %v1003, %v683
        %v1462 = vmul.f32 %v1003, %v684
        %v1463 = vadd.f32 %v908, %v1461
        %v1464 = vadd.f32 %v908, %v1462
        %v1465 = vmul.f32 %v1008, %v711
        %v1466 = vmul.f32 %v1008, %v712
        %v1467 = vadd.f32 %v1463, %v1465
        %v1468 = vadd.f32 %v1464, %v1466
        %v1469 = vmul.f32 %v1013, %v739
        %v1470 = vmul.f32 %v1013, %v740
        %v1471 = vadd.f32 %v1467, %v1469
        %v1472 = vadd.f32 %v1468, %v1470
        %v1473 = vmul.f32 %v1018, %v767
        %v1474 = vmul.f32 %v1018, %v768
        %v1475 = vadd.f32 %v1471, %v1473
        %v1476 = vadd.f32 %v1472, %v1474
        %v1477 = vmul.f32 %v1023, %v795
        %v1478 = vmul.f32 %v1023, %v796
        %v1479 = vadd.f32 %v1475, %v1477
        %v1480 = vadd.f32 %v1476, %v1478
        %v1481 = vmul.f32 %v1028, %v823
        %v1482 = vmul.f32 %v1028, %v824
        %v1483 = vadd.f32 %v1479, %v1481
        %v1484 = vadd.f32 %v1480, %v1482
        %v1485 = vmax.f32 %v1459, %v1483
        %v1486 = vmax.f32 %v1460, %v1484
        %v1487 = vmax.f32 %v1485, 0.0
        %v1488 = vmax.f32 %v1486, 0.0
        %v1489 = vmul.f32 %v1061, %v627
        %v1490 = vmul.f32 %v1061, %v628
        %v1491 = vadd.f32 %v910, %v1489
        %v1492 = vadd.f32 %v910, %v1490
        %v1493 = vmul.f32 %v1066, %v655
        %v1494 = vmul.f32 %v1066, %v656
        %v1495 = vadd.f32 %v1491, %v1493
        %v1496 = vadd.f32 %v1492, %v1494
        %v1497 = vmul.f32 %v1071, %v683
        %v1498 = vmul.f32 %v1071, %v684
        %v1499 = vadd.f32 %v1495, %v1497
        %v1500 = vadd.f32 %v1496, %v1498
        %v1501 = vmul.f32 %v1076, %v711
        %v1502 = vmul.f32 %v1076, %v712
        %v1503 = vadd.f32 %v1499, %v1501
        %v1504 = vadd.f32 %v1500, %v1502
        %v1505 = vmul.f32 %v1081, %v739
        %v1506 = vmul.f32 %v1081, %v740
        %v1507 = vadd.f32 %v1503, %v1505
        %v1508 = vadd.f32 %v1504, %v1506
        %v1509 = vmul.f32 %v1086, %v767
        %v1510 = vmul.f32 %v1086, %v768
        %v1511 = vadd.f32 %v1507, %v1509
        %v1512 = vadd.f32 %v1508, %v1510
        %v1513 = vmul.f32 %v1061, %v683
        %v1514 = vmul.f32 %v1061, %v684
        %v1515 = vadd.f32 %v910, %v1513
        %v1516 = vadd.f32 %v910, %v1514
        %v1517 = vmul.f32 %v1066, %v711
        %v1518 = vmul.f32 %v1066, %v712
        %v1519 = vadd.f32 %v1515, %v1517
        %v1520 = vadd.f32 %v1516, %v1518
        %v1521 = vmul.f32 %v1071, %v739
        %v1522 = vmul.f32 %v1071, %v740
        %v1523 = vadd.f32 %v1519, %v1521
        %v1524 = vadd.f32 %v1520, %v1522
        %v1525 = vmul.f32 %v1076, %v767
        %v1526 = vmul.f32 %v1076, %v768
        %v1527 = vadd.f32 %v1523, %v1525
        %v1528 = vadd.f32 %v1524, %v1526
        %v1529 = vmul.f32 %v1081, %v795
        %v1530 = vmul.f32 %v1081, %v796
        %v1531 = vadd.f32 %v1527, %v1529
        %v1532 = vadd.f32 %v1528, %v1530
        %v1533 = vmul.f32 %v1086, %v823
        %v1534 = vmul.f32 %v1086, %v824
        %v1535 = vadd.f32 %v1531, %v1533
        %v1536 = vadd.f32 %v1532, %v1534
        %v1537 = vmax.f32 %v1511, %v1535
        %v1538 = vmax.f32 %v1512, %v1536
        %v1539 = vmax.f32 %v1537, 0.0
        %v1540 = vmax.f32 %v1538, 0.0
        %v1541 = vmul.f32 %v1119, %v627
        %v1542 = vmul.f32 %v1119, %v628
        %v1543 = vadd.f32 %v912, %v1541
        %v1544 = vadd.f32 %v912, %v1542
        %v1545 = vmul.f32 %v1124, %v655
        %v1546 = vmul.f32 %v1124, %v656
        %v1547 = vadd.f32 %v1543, %v1545
        %v1548 = vadd.f32 %v1544, %v1546
        %v1549 = vmul.f32 %v1129, %v683
        %v1550 = vmul.f32 %v1129, %v684
        %v1551 = vadd.f32 %v1547, %v1549
        %v1552 = vadd.f32 %v1548, %v1550
        %v1553 = vmul.f32 %v1134, %v711
        %v1554 = vmul.f32 %v1134, %v712
        %v1555 = vadd.f32 %v1551, %v1553
        %v1556 = vadd.f32 %v1552, %v1554
        %v1557 = vmul.f32 %v1139, %v739
        %v1558 = vmul.f32 %v1139, %v740
        %v1559 = vadd.f32 %v1555, %v1557
        %v1560 = vadd.f32 %v1556, %v1558
        %v1561 = vmul.f32 %v1144, %v767
        %v1562 = vmul.f32 %v1144, %v768
        %v1563 = vadd.f32 %v1559, %v1561
        %v1564 = vadd.f32 %v1560, %v1562
        %v1565 = vmul.f32 %v1119, %v683
        %v1566 = vmul.f32 %v1119, %v684
        %v1567 = vadd.f32 %v912, %v1565
        %v1568 = vadd.f32 %v912, %v1566
        %v1569 = vmul.f32 %v1124, %v711
        %v1570 = vmul.f32 %v1124, %v712
        %v1571 = vadd.f32 %v1567, %v1569
        %v1572 = vadd.f32 %v1568, %v1570
        %v1573 = vmul.f32 %v1129, %v739
        %v1574 = vmul.f32 %v1129, %v740
        %v1575 = vadd.f32 %v1571, %v1573
        %v1576 = vadd.f32 %v1572, %v1574
        %v1577 = vmul.f32 %v1134, %v767
        %v1578 = vmul.f32 %v1134, %v768
        %v1579 = vadd.f32 %v1575, %v1577
        %v1580 = vadd.f32 %v1576, %v1578
        %v1581 = vmul.f32 %v1139, %v795
        %v1582 = vmul.f32 %v1139, %v796
        %v1583 = vadd.f32 %v1579, %v1581
        %v1584 = vadd.f32 %v1580, %v1582
        %v1585 = vmul.f32 %v1144, %v823
        %v1586 = vmul.f32 %v1144, %v824
        %v1587 = vadd.f32 %v1583, %v1585
        %v1588 = vadd.f32 %v1584, %v1586
        %v1589 = vmax.f32 %v1563, %v1587
        %v1590 = vmax.f32 %v1564, %v1588
        %v1591 = vmax.f32 %v1589, 0.0
        %v1592 = vmax.f32 %v1590, 0.0
        %v1593 = vmul.f32 %v945, %v739
        %v1594 = vmul.f32 %v945, %v740
        %v1595 = vadd.f32 %v906, %v1593
        %v1596 = vadd.f32 %v906, %v1594
        %v1597 = vmul.f32 %v950, %v767
        %v1598 = vmul.f32 %v950, %v768
        %v1599 = vadd.f32 %v1595, %v1597
        %v1600 = vadd.f32 %v1596, %v1598
        %v1601 = vmul.f32 %v955, %v795
        %v1602 = vmul.f32 %v955, %v796
        %v1603 = vadd.f32 %v1599, %v1601
        %v1604 = vadd.f32 %v1600, %v1602
        %v1605 = vmul.f32 %v960, %v823
        %v1606 = vmul.f32 %v960, %v824
        %v1607 = vadd.f32 %v1603, %v1605
        %v1608 = vadd.f32 %v1604, %v1606
        %v1609 = vmul.f32 %v965, %v851
        %v1610 = vmul.f32 %v965, %v852
        %v1611 = vadd.f32 %v1607, %v1609
        %v1612 = vadd.f32 %v1608, %v1610
        %v1613 = vmul.f32 %v970, %v879
        %v1614 = vmul.f32 %v970, %v880
        %v1615 = vadd.f32 %v1611, %v1613
        %v1616 = vadd.f32 %v1612, %v1614
        %v1617 = vmul.f32 %v945, %v795
        %v1618 = vmul.f32 %v945, %v796
        %v1619 = vadd.f32 %v906, %v1617
        %v1620 = vadd.f32 %v906, %v1618
        %v1621 = vmul.f32 %v950, %v823
        %v1622 = vmul.f32 %v950, %v824
        %v1623 = vadd.f32 %v1619, %v1621
        %v1624 = vadd.f32 %v1620, %v1622
        %v1625 = vmul.f32 %v955, %v851
        %v1626 = vmul.f32 %v955, %v852
        %v1627 = vadd.f32 %v1623, %v1625
        %v1628 = vadd.f32 %v1624, %v1626
        %v1629 = vmul.f32 %v960, %v879
        %v1630 = vmul.f32 %v960, %v880
        %v1631 = vadd.f32 %v1627, %v1629
        %v1632 = vadd.f32 %v1628, %v1630
        %v1633 = vmul.f32 %v965, %v935
        %v1634 = vmul.f32 %v965, %v936
        %v1635 = vadd.f32 %v1631, %v1633
        %v1636 = vadd.f32 %v1632, %v1634
        %v1637 = vmul.f32 %v970, %v943
        %v1638 = vmul.f32 %v970, %v944
        %v1639 = vadd.f32 %v1635, %v1637
        %v1640 = vadd.f32 %v1636, %v1638
        %v1641 = vmax.f32 %v1615, %v1639
        %v1642 = vmax.f32 %v1616, %v1640
        %v1643 = vmax.f32 %v1641, 0.0
        %v1644 = vmax.f32 %v1642, 0.0
        %v1645 = vmul.f32 %v1003, %v739
        %v1646 = vmul.f32 %v1003, %v740
        %v1647 = vadd.f32 %v908, %v1645
        %v1648 = vadd.f32 %v908, %v1646
        %v1649 = vmul.f32 %v1008, %v767
        %v1650 = vmul.f32 %v1008, %v768
        %v1651 = vadd.f32 %v1647, %v1649
        %v1652 = vadd.f32 %v1648, %v1650
        %v1653 = vmul.f32 %v1013, %v795
        %v1654 = vmul.f32 %v1013, %v796
        %v1655 = vadd.f32 %v1651, %v1653
        %v1656 = vadd.f32 %v1652, %v1654
        %v1657 = vmul.f32 %v1018, %v823
        %v1658 = vmul.f32 %v1018, %v824
        %v1659 = vadd.f32 %v1655, %v1657
        %v1660 = vadd.f32 %v1656, %v1658
        %v1661 = vmul.f32 %v1023, %v851
        %v1662 = vmul.f32 %v1023, %v852
        %v1663 = vadd.f32 %v1659, %v1661
        %v1664 = vadd.f32 %v1660, %v1662
        %v1665 = vmul.f32 %v1028, %v879
        %v1666 = vmul.f32 %v1028, %v880
        %v1667 = vadd.f32 %v1663, %v1665
        %v1668 = vadd.f32 %v1664, %v1666
        %v1669 = vmul.f32 %v1003, %v795
        %v1670 = vmul.f32 %v1003, %v796
        %v1671 = vadd.f32 %v908, %v1669
        %v1672 = vadd.f32 %v908, %v1670
        %v1673 = vmul.f32 %v1008, %v823
        %v1674 = vmul.f32 %v1008, %v824
        %v1675 = vadd.f32 %v1671, %v1673
        %v1676 = vadd.f32 %v1672, %v1674
        %v1677 = vmul.f32 %v1013, %v851
        %v1678 = vmul.f32 %v1013, %v852
        %v1679 = vadd.f32 %v1675, %v1677
        %v1680 = vadd.f32 %v1676, %v1678
        %v1681 = vmul.f32 %v1018, %v879
        %v1682 = vmul.f32 %v1018, %v880
        %v1683 = vadd.f32 %v1679, %v1681
        %v1684 = vadd.f32 %v1680, %v1682
        %v1685 = vmul.f32 %v1023, %v935
        %v1686 = vmul.f32 %v1023, %v936
        %v1687 = vadd.f32 %v1683, %v1685
        %v1688 = vadd.f32 %v1684, %v1686
        %v1689 = vmul.f32 %v1028, %v943
        %v1690 = vmul.f32 %v1028, %v944
        %v1691 = vadd.f32 %v1687, %v1689
        %v1692 = vadd.f32 %v1688, %v1690
        %v1693 = vmax.f32 %v1667, %v1691
        %v1694 = vmax.f32 %v1668, %v1692
        %v1695 = vmax.f32 %v1693, 0.0
        %v1696 = vmax.f32 %v1694, 0.0
        %v1697 = vmul.f32 %v1061, %v739
        %v1698 = vmul.f32 %v1061, %v740
        %v1699 = vadd.f32 %v910, %v1697
        %v1700 = vadd.f32 %v910, %v1698
        %v1701 = vmul.f32 %v1066, %v767
        %v1702 = vmul.f32 %v1066, %v768
        %v1703 = vadd.f32 %v1699, %v1701
        %v1704 = vadd.f32 %v1700, %v1702
        %v1705 = vmul.f32 %v1071, %v795
        %v1706 = vmul.f32 %v1071, %v796
        %v1707 = vadd.f32 %v1703, %v1705
        %v1708 = vadd.f32 %v1704, %v1706
        %v1709 = vmul.f32 %v1076, %v823
        %v1710 = vmul.f32 %v1076, %v824
        %v1711 = vadd.f32 %v1707, %v1709
        %v1712 = vadd.f32 %v1708, %v1710
        %v1713 = vmul.f32 %v1081, %v851
        %v1714 = vmul.f32 %v1081, %v852
        %v1715 = vadd.f32 %v1711, %v1713
        %v1716 = vadd.f32 %v1712, %v1714
        %v1717 = vmul.f32 %v1086, %v879
        %v1718 = vmul.f32 %v1086, %v880
        %v1719 = vadd.f32 %v1715, %v1717
        %v1720 = vadd.f32 %v1716, %v1718
        %v1721 = vmul.f32 %v1061, %v795
        %v1722 = vmul.f32 %v1061, %v796
        %v1723 = vadd.f32 %v910, %v1721
        %v1724 = vadd.f32 %v910, %v1722
        %v1725 = vmul.f32 %v1066, %v823
        %v1726 = vmul.f32 %v1066, %v824
        %v1727 = vadd.f32 %v1723, %v1725
        %v1728 = vadd.f32 %v1724, %v1726
        %v1729 = vmul.f32 %v1071, %v851
        %v1730 = vmul.f32 %v1071, %v852
        %v1731 = vadd.f32 %v1727, %v1729
        %v1732 = vadd.f32 %v1728, %v1730
        %v1733 = vmul.f32 %v1076, %v879
        %v1734 = vmul.f32 %v1076, %v880
        %v1735 = vadd.f32 %v1731, %v1733
        %v1736 = vadd.f32 %v1732, %v1734
        %v1737 = vmul.f32 %v1081, %v935
        %v1738 = vmul.f32 %v1081, %v936
        %v1739 = vadd.f32 %v1735, %v1737
        %v1740 = vadd.f32 %v1736, %v1738
        %v1741 = vmul.f32 %v1086, %v943
        %v1742 = vmul.f32 %v1086, %v944
        %v1743 = vadd.f32 %v1739, %v1741
        %v1744 = vadd.f32 %v1740, %v1742
        %v1745 = vmax.f32 %v1719, %v1743
        %v1746 = vmax.f32 %v1720, %v1744
        %v1747 = vmax.f32 %v1745, 0.0
        %v1748 = vmax.f32 %v1746, 0.0
        %v1749 = vmul.f32 %v1119, %v739
        %v1750 = vmul.f32 %v1119, %v740
        %v1751 = vadd.f32 %v912, %v1749
        %v1752 = vadd.f32 %v912, %v1750
        %v1753 = vmul.f32 %v1124, %v767
        %v1754 = vmul.f32 %v1124, %v768
        %v1755 = vadd.f32 %v1751, %v1753
        %v1756 = vadd.f32 %v1752, %v1754
        %v1757 = vmul.f32 %v1129, %v795
        %v1758 = vmul.f32 %v1129, %v796
        %v1759 = vadd.f32 %v1755, %v1757
        %v1760 = vadd.f32 %v1756, %v1758
        %v1761 = vmul.f32 %v1134, %v823
        %v1762 = vmul.f32 %v1134, %v824
        %v1763 = vadd.f32 %v1759, %v1761
        %v1764 = vadd.f32 %v1760, %v1762
        %v1765 = vmul.f32 %v1139, %v851
        %v1766 = vmul.f32 %v1139, %v852
        %v1767 = vadd.f32 %v1763, %v1765
        %v1768 = vadd.f32 %v1764, %v1766
        %v1769 = vmul.f32 %v1144, %v879
        %v1770 = vmul.f32 %v1144, %v880
        %v1771 = vadd.f32 %v1767, %v1769
        %v1772 = vadd.f32 %v1768, %v1770
        %v1773 = vmul.f32 %v1119, %v795
        %v1774 = vmul.f32 %v1119, %v796
        %v1775 = vadd.f32 %v912, %v1773
        %v1776 = vadd.f32 %v912, %v1774
        %v1777 = vmul.f32 %v1124, %v823
        %v1778 = vmul.f32 %v1124, %v824
        %v1779 = vadd.f32 %v1775, %v1777
        %v1780 = vadd.f32 %v1776, %v1778
        %v1781 = vmul.f32 %v1129, %v851
        %v1782 = vmul.f32 %v1129, %v852
        %v1783 = vadd.f32 %v1779, %v1781
        %v1784 = vadd.f32 %v1780, %v1782
        %v1785 = vmul.f32 %v1134, %v879
        %v1786 = vmul.f32 %v1134, %v880
        %v1787 = vadd.f32 %v1783, %v1785
        %v1788 = vadd.f32 %v1784, %v1786
        %v1789 = vmul.f32 %v1139, %v935
        %v1790 = vmul.f32 %v1139, %v936
        %v1791 = vadd.f32 %v1787, %v1789
        %v1792 = vadd.f32 %v1788, %v1790
        %v1793 = vmul.f32 %v1144, %v943
        %v1794 = vmul.f32 %v1144, %v944
        %v1795 = vadd.f32 %v1791, %v1793
        %v1796 = vadd.f32 %v1792, %v1794
        %v1797 = vmax.f32 %v1771, %v1795
        %v1798 = vmax.f32 %v1772, %v1796
        %v1799 = vmax.f32 %v1797, 0.0
        %v1800 = vmax.f32 %v1798, 0.0
        %s1801 = sld [smem:[#allocation6 + $0x26]]
        %s1802 = sld [smem:[#allocation6 + $0x27]]
        %s1803 = sld [smem:[#allocation6 + $0x28]]
        %s1804 = sld [smem:[#allocation6 + $0x29]]
        %s1805 = sld [smem:[#allocation6 + $0x2a]]
        %s1806 = sld [smem:[#allocation6 + $0x2b]]
        %s1807 = sld [smem:[#allocation6 + $0x2c]]
        %s1808 = sld [smem:[#allocation6 + $0x2d]]
        %s1809 = sld [smem:[#allocation6 + $0x2e]]
        %s1810 = sld [smem:[#allocation6 + $0x2f]]
        %s1811 = sld [smem:[#allocation6 + $0x30]]
        %s1812 = sld [smem:[#allocation6 + $0x31]]
        %s1813 = sld [smem:[#allocation6 + $0x32]]
        %s1814 = sld [smem:[#allocation6 + $0x33]]
        %s1815 = sld [smem:[#allocation6 + $0x34]]
        %s1816 = sld [smem:[#allocation6 + $0x35]]
        %s1817 = sld [smem:[#allocation6 + $0x36]]
        %s1818 = sld [smem:[#allocation6 + $0x37]]
        %s1819 = sld [smem:[#allocation6 + $0x38]]
        %s1820 = sld [smem:[#allocation6 + $0x39]]
        %s1821 = sld [smem:[#allocation6 + $0x3a]]
        %s1822 = sld [smem:[#allocation6 + $0x3b]]
        %s1823 = sld [smem:[#allocation6 + $0x3c]]
        %s1824 = sld [smem:[#allocation6 + $0x3d]]
        %s1825 = sld [smem:[#allocation6 + $0x24]]
        %v1826 = vstv %s1825
        %s1827 = sld [smem:[#allocation6 + $0x25]]
        %v1828 = vstv %s1827
        %1829 = vrot.lane.b32.xlu0 %v1643, 1
        %v1830 = vpop.permute.xlu0 %1829
        %1831 = vrot.lane.b32.xlu0 %v1644, 1
        %v1832 = vpop.permute.xlu0 %1831
        %v1833 = vsel %vm413, %v1830, %v1832
        %v1834 = vsel %vm413, %v1832, %v1830
        %v1835 = vmul.f32 %v1834, %v344
        %v1836 = vmul.f32 %v1833, %v345
        %1837 = vrot.lane.b32.xlu0 %v1695, 1
        %v1838 = vpop.permute.xlu0 %1837
        %1839 = vrot.lane.b32.xlu0 %v1696, 1
        %v1840 = vpop.permute.xlu0 %1839
        %v1841 = vsel %vm413, %v1838, %v1840
        %v1842 = vsel %vm413, %v1840, %v1838
        %v1843 = vmul.f32 %v1842, %v344
        %v1844 = vmul.f32 %v1841, %v345
        %1845 = vrot.lane.b32.xlu0 %v1747, 1
        %v1846 = vpop.permute.xlu0 %1845
        %1847 = vrot.lane.b32.xlu0 %v1748, 1
        %v1848 = vpop.permute.xlu0 %1847
        %v1849 = vsel %vm413, %v1846, %v1848
        %v1850 = vsel %vm413, %v1848, %v1846
        %v1851 = vmul.f32 %v1850, %v344
        %v1852 = vmul.f32 %v1849, %v345
        %1853 = vrot.lane.b32.xlu0 %v1799, 1
        %v1854 = vpop.permute.xlu0 %1853
        %1855 = vrot.lane.b32.xlu0 %v1800, 1
        %v1856 = vpop.permute.xlu0 %1855
        %v1857 = vsel %vm413, %v1854, %v1856
        %v1858 = vsel %vm413, %v1856, %v1854
        %v1859 = vmul.f32 %v1858, %v344
        %v1860 = vmul.f32 %v1857, %v345
        %1861 = vrot.lane.b32.xlu0 %v1001, 127
        %v1862 = vpop.permute.xlu0 %1861
        %1863 = vrot.lane.b32.xlu0 %v1002, 127
        %v1864 = vpop.permute.xlu0 %1863
        %v1865 = vsel %vm422, %v1862, %v1864
        %v1866 = vsel %vm422, %v1864, %v1862
        %v1867 = vmul.f32 %v1865, %v350
        %v1868 = vmul.f32 %v1866, %v351
        %1869 = vrot.lane.b32.xlu0 %v1059, 127
        %v1870 = vpop.permute.xlu0 %1869
        %1871 = vrot.lane.b32.xlu0 %v1060, 127
        %v1872 = vpop.permute.xlu0 %1871
        %v1873 = vsel %vm422, %v1870, %v1872
        %v1874 = vsel %vm422, %v1872, %v1870
        %v1875 = vmul.f32 %v1873, %v350
        %v1876 = vmul.f32 %v1874, %v351
        %1877 = vrot.lane.b32.xlu0 %v1117, 127
        %v1878 = vpop.permute.xlu0 %1877
        %1879 = vrot.lane.b32.xlu0 %v1118, 127
        %v1880 = vpop.permute.xlu0 %1879
        %v1881 = vsel %vm422, %v1878, %v1880
        %v1882 = vsel %vm422, %v1880, %v1878
        %v1883 = vmul.f32 %v1881, %v350
        %v1884 = vmul.f32 %v1882, %v351
        %1885 = vrot.lane.b32.xlu0 %v1175, 127
        %v1886 = vpop.permute.xlu0 %1885
        %1887 = vrot.lane.b32.xlu0 %v1176, 127
        %v1888 = vpop.permute.xlu0 %1887
        %v1889 = vsel %vm422, %v1886, %v1888
        %v1890 = vsel %vm422, %v1888, %v1886
        %v1891 = vmul.f32 %v1889, %v350
        %v1892 = vmul.f32 %v1890, %v351
        %v1893 = vstv %s1801
        %v1894 = vmul.f32 %v1893, %v1835
        %v1895 = vmul.f32 %v1893, %v1836
        %v1896 = vadd.f32 %v1826, %v1894
        %v1897 = vadd.f32 %v1826, %v1895
        %v1898 = vstv %s1804
        %v1899 = vmul.f32 %v1898, %v1843
        %v1900 = vmul.f32 %v1898, %v1844
        %v1901 = vadd.f32 %v1896, %v1899
        %v1902 = vadd.f32 %v1897, %v1900
        %v1903 = vstv %s1807
        %v1904 = vmul.f32 %v1903, %v1851
        %v1905 = vmul.f32 %v1903, %v1852
        %v1906 = vadd.f32 %v1901, %v1904
        %v1907 = vadd.f32 %v1902, %v1905
        %v1908 = vstv %s1810
        %v1909 = vmul.f32 %v1908, %v1859
        %v1910 = vmul.f32 %v1908, %v1860
        %v1911 = vadd.f32 %v1906, %v1909
        %v1912 = vadd.f32 %v1907, %v1910
        %v1913 = vstv %s1802
        %v1914 = vmul.f32 %v1913, %v1001
        %v1915 = vmul.f32 %v1913, %v1002
        %v1916 = vadd.f32 %v1911, %v1914
        %v1917 = vadd.f32 %v1912, %v1915
        %v1918 = vstv %s1805
        %v1919 = vmul.f32 %v1918, %v1059
        %v1920 = vmul.f32 %v1918, %v1060
        %v1921 = vadd.f32 %v1916, %v1919
        %v1922 = vadd.f32 %v1917, %v1920
        %v1923 = vstv %s1808
        %v1924 = vmul.f32 %v1923, %v1117
        %v1925 = vmul.f32 %v1923, %v1118
        %v1926 = vadd.f32 %v1921, %v1924
        %v1927 = vadd.f32 %v1922, %v1925
        %v1928 = vstv %s1811
        %v1929 = vmul.f32 %v1928, %v1175
        %v1930 = vmul.f32 %v1928, %v1176
        %v1931 = vadd.f32 %v1926, %v1929
        %v1932 = vadd.f32 %v1927, %v1930
        %v1933 = vstv %s1803
        %v1934 = vmul.f32 %v1933, %v1227
        %v1935 = vmul.f32 %v1933, %v1228
        %v1936 = vadd.f32 %v1931, %v1934
        %v1937 = vadd.f32 %v1932, %v1935
        %v1938 = vstv %s1806
        %v1939 = vmul.f32 %v1938, %v1279
        %v1940 = vmul.f32 %v1938, %v1280
        %v1941 = vadd.f32 %v1936, %v1939
        %v1942 = vadd.f32 %v1937, %v1940
        %v1943 = vstv %s1809
        %v1944 = vmul.f32 %v1943, %v1331
        %v1945 = vmul.f32 %v1943, %v1332
        %v1946 = vadd.f32 %v1941, %v1944
        %v1947 = vadd.f32 %v1942, %v1945
        %v1948 = vstv %s1812
        %v1949 = vmul.f32 %v1948, %v1383
        %v1950 = vmul.f32 %v1948, %v1384
        %v1951 = vadd.f32 %v1946, %v1949
        %v1952 = vadd.f32 %v1947, %v1950
        %v1953 = vmul.f32 %v1893, %v1001
        %v1954 = vmul.f32 %v1893, %v1002
        %v1955 = vadd.f32 %v1826, %v1953
        %v1956 = vadd.f32 %v1826, %v1954
        %v1957 = vmul.f32 %v1898, %v1059
        %v1958 = vmul.f32 %v1898, %v1060
        %v1959 = vadd.f32 %v1955, %v1957
        %v1960 = vadd.f32 %v1956, %v1958
        %v1961 = vmul.f32 %v1903, %v1117
        %v1962 = vmul.f32 %v1903, %v1118
        %v1963 = vadd.f32 %v1959, %v1961
        %v1964 = vadd.f32 %v1960, %v1962
        %v1965 = vmul.f32 %v1908, %v1175
        %v1966 = vmul.f32 %v1908, %v1176
        %v1967 = vadd.f32 %v1963, %v1965
        %v1968 = vadd.f32 %v1964, %v1966
        %v1969 = vmul.f32 %v1913, %v1227
        %v1970 = vmul.f32 %v1913, %v1228
        %v1971 = vadd.f32 %v1967, %v1969
        %v1972 = vadd.f32 %v1968, %v1970
        %v1973 = vmul.f32 %v1918, %v1279
        %v1974 = vmul.f32 %v1918, %v1280
        %v1975 = vadd.f32 %v1971, %v1973
        %v1976 = vadd.f32 %v1972, %v1974
        %v1977 = vmul.f32 %v1923, %v1331
        %v1978 = vmul.f32 %v1923, %v1332
        %v1979 = vadd.f32 %v1975, %v1977
        %v1980 = vadd.f32 %v1976, %v1978
        %v1981 = vmul.f32 %v1928, %v1383
        %v1982 = vmul.f32 %v1928, %v1384
        %v1983 = vadd.f32 %v1979, %v1981
        %v1984 = vadd.f32 %v1980, %v1982
        %v1985 = vmul.f32 %v1933, %v1435
        %v1986 = vmul.f32 %v1933, %v1436
        %v1987 = vadd.f32 %v1983, %v1985
        %v1988 = vadd.f32 %v1984, %v1986
        %v1989 = vmul.f32 %v1938, %v1487
        %v1990 = vmul.f32 %v1938, %v1488
        %v1991 = vadd.f32 %v1987, %v1989
        %v1992 = vadd.f32 %v1988, %v1990
        %v1993 = vmul.f32 %v1943, %v1539
        %v1994 = vmul.f32 %v1943, %v1540
        %v1995 = vadd.f32 %v1991, %v1993
        %v1996 = vadd.f32 %v1992, %v1994
        %v1997 = vmul.f32 %v1948, %v1591
        %v1998 = vmul.f32 %v1948, %v1592
        %v1999 = vadd.f32 %v1995, %v1997
        %v2000 = vadd.f32 %v1996, %v1998
        %v2001 = vmax.f32 %v1951, %v1999
        %v2002 = vmax.f32 %v1952, %v2000
        %v2003 = vmax.f32 %v2001, 0.0
        %v2004 = vmax.f32 %v2002, 0.0
        %v2005 = vstv %s1813
        %v2006 = vmul.f32 %v2005, %v1835
        %v2007 = vmul.f32 %v2005, %v1836
        %v2008 = vadd.f32 %v1828, %v2006
        %v2009 = vadd.f32 %v1828, %v2007
        %v2010 = vstv %s1816
        %v2011 = vmul.f32 %v2010, %v1843
        %v2012 = vmul.f32 %v2010, %v1844
        %v2013 = vadd.f32 %v2008, %v2011
        %v2014 = vadd.f32 %v2009, %v2012
        %v2015 = vstv %s1819
        %v2016 = vmul.f32 %v2015, %v1851
        %v2017 = vmul.f32 %v2015, %v1852
        %v2018 = vadd.f32 %v2013, %v2016
        %v2019 = vadd.f32 %v2014, %v2017
        %v2020 = vstv %s1822
        %v2021 = vmul.f32 %v2020, %v1859
        %v2022 = vmul.f32 %v2020, %v1860
        %v2023 = vadd.f32 %v2018, %v2021
        %v2024 = vadd.f32 %v2019, %v2022
        %v2025 = vstv %s1814
        %v2026 = vmul.f32 %v2025, %v1001
        %v2027 = vmul.f32 %v2025, %v1002
        %v2028 = vadd.f32 %v2023, %v2026
        %v2029 = vadd.f32 %v2024, %v2027
        %v2030 = vstv %s1817
        %v2031 = vmul.f32 %v2030, %v1059
        %v2032 = vmul.f32 %v2030, %v1060
        %v2033 = vadd.f32 %v2028, %v2031
        %v2034 = vadd.f32 %v2029, %v2032
        %v2035 = vstv %s1820
        %v2036 = vmul.f32 %v2035, %v1117
        %v2037 = vmul.f32 %v2035, %v1118
        %v2038 = vadd.f32 %v2033, %v2036
        %v2039 = vadd.f32 %v2034, %v2037
        %v2040 = vstv %s1823
        %v2041 = vmul.f32 %v2040, %v1175
        %v2042 = vmul.f32 %v2040, %v1176
        %v2043 = vadd.f32 %v2038, %v2041
        %v2044 = vadd.f32 %v2039, %v2042
        %v2045 = vstv %s1815
        %v2046 = vmul.f32 %v2045, %v1227
        %v2047 = vmul.f32 %v2045, %v1228
        %v2048 = vadd.f32 %v2043, %v2046
        %v2049 = vadd.f32 %v2044, %v2047
        %v2050 = vstv %s1818
        %v2051 = vmul.f32 %v2050, %v1279
        %v2052 = vmul.f32 %v2050, %v1280
        %v2053 = vadd.f32 %v2048, %v2051
        %v2054 = vadd.f32 %v2049, %v2052
        %v2055 = vstv %s1821
        %v2056 = vmul.f32 %v2055, %v1331
        %v2057 = vmul.f32 %v2055, %v1332
        %v2058 = vadd.f32 %v2053, %v2056
        %v2059 = vadd.f32 %v2054, %v2057
        %v2060 = vstv %s1824
        %v2061 = vmul.f32 %v2060, %v1383
        %v2062 = vmul.f32 %v2060, %v1384
        %v2063 = vadd.f32 %v2058, %v2061
        %v2064 = vadd.f32 %v2059, %v2062
        %v2065 = vmul.f32 %v2005, %v1001
        %v2066 = vmul.f32 %v2005, %v1002
        %v2067 = vadd.f32 %v1828, %v2065
        %v2068 = vadd.f32 %v1828, %v2066
        %v2069 = vmul.f32 %v2010, %v1059
        %v2070 = vmul.f32 %v2010, %v1060
        %v2071 = vadd.f32 %v2067, %v2069
        %v2072 = vadd.f32 %v2068, %v2070
        %v2073 = vmul.f32 %v2015, %v1117
        %v2074 = vmul.f32 %v2015, %v1118
        %v2075 = vadd.f32 %v2071, %v2073
        %v2076 = vadd.f32 %v2072, %v2074
        %v2077 = vmul.f32 %v2020, %v1175
        %v2078 = vmul.f32 %v2020, %v1176
        %v2079 = vadd.f32 %v2075, %v2077
        %v2080 = vadd.f32 %v2076, %v2078
        %v2081 = vmul.f32 %v2025, %v1227
        %v2082 = vmul.f32 %v2025, %v1228
        %v2083 = vadd.f32 %v2079, %v2081
        %v2084 = vadd.f32 %v2080, %v2082
        %v2085 = vmul.f32 %v2030, %v1279
        %v2086 = vmul.f32 %v2030, %v1280
        %v2087 = vadd.f32 %v2083, %v2085
        %v2088 = vadd.f32 %v2084, %v2086
        %v2089 = vmul.f32 %v2035, %v1331
        %v2090 = vmul.f32 %v2035, %v1332
        %v2091 = vadd.f32 %v2087, %v2089
        %v2092 = vadd.f32 %v2088, %v2090
        %v2093 = vmul.f32 %v2040, %v1383
        %v2094 = vmul.f32 %v2040, %v1384
        %v2095 = vadd.f32 %v2091, %v2093
        %v2096 = vadd.f32 %v2092, %v2094
        %v2097 = vmul.f32 %v2045, %v1435
        %v2098 = vmul.f32 %v2045, %v1436
        %v2099 = vadd.f32 %v2095, %v2097
        %v2100 = vadd.f32 %v2096, %v2098
        %v2101 = vmul.f32 %v2050, %v1487
        %v2102 = vmul.f32 %v2050, %v1488
        %v2103 = vadd.f32 %v2099, %v2101
        %v2104 = vadd.f32 %v2100, %v2102
        %v2105 = vmul.f32 %v2055, %v1539
        %v2106 = vmul.f32 %v2055, %v1540
        %v2107 = vadd.f32 %v2103, %v2105
        %v2108 = vadd.f32 %v2104, %v2106
        %v2109 = vmul.f32 %v2060, %v1591
        %v2110 = vmul.f32 %v2060, %v1592
        %v2111 = vadd.f32 %v2107, %v2109
        %v2112 = vadd.f32 %v2108, %v2110
        %v2113 = vmax.f32 %v2063, %v2111
        %v2114 = vmax.f32 %v2064, %v2112
        %v2115 = vmax.f32 %v2113, 0.0
        %v2116 = vmax.f32 %v2114, 0.0
        %v2117 = vmul.f32 %v1893, %v1227
        %v2118 = vmul.f32 %v1893, %v1228
        %v2119 = vadd.f32 %v1826, %v2117
        %v2120 = vadd.f32 %v1826, %v2118
        %v2121 = vmul.f32 %v1898, %v1279
        %v2122 = vmul.f32 %v1898, %v1280
        %v2123 = vadd.f32 %v2119, %v2121
        %v2124 = vadd.f32 %v2120, %v2122
        %v2125 = vmul.f32 %v1903, %v1331
        %v2126 = vmul.f32 %v1903, %v1332
        %v2127 = vadd.f32 %v2123, %v2125
        %v2128 = vadd.f32 %v2124, %v2126
        %v2129 = vmul.f32 %v1908, %v1383
        %v2130 = vmul.f32 %v1908, %v1384
        %v2131 = vadd.f32 %v2127, %v2129
        %v2132 = vadd.f32 %v2128, %v2130
        %v2133 = vmul.f32 %v1913, %v1435
        %v2134 = vmul.f32 %v1913, %v1436
        %v2135 = vadd.f32 %v2131, %v2133
        %v2136 = vadd.f32 %v2132, %v2134
        %v2137 = vmul.f32 %v1918, %v1487
        %v2138 = vmul.f32 %v1918, %v1488
        %v2139 = vadd.f32 %v2135, %v2137
        %v2140 = vadd.f32 %v2136, %v2138
        %v2141 = vmul.f32 %v1923, %v1539
        %v2142 = vmul.f32 %v1923, %v1540
        %v2143 = vadd.f32 %v2139, %v2141
        %v2144 = vadd.f32 %v2140, %v2142
        %v2145 = vmul.f32 %v1928, %v1591
        %v2146 = vmul.f32 %v1928, %v1592
        %v2147 = vadd.f32 %v2143, %v2145
        %v2148 = vadd.f32 %v2144, %v2146
        %v2149 = vmul.f32 %v1933, %v1643
        %v2150 = vmul.f32 %v1933, %v1644
        %v2151 = vadd.f32 %v2147, %v2149
        %v2152 = vadd.f32 %v2148, %v2150
        %v2153 = vmul.f32 %v1938, %v1695
        %v2154 = vmul.f32 %v1938, %v1696
        %v2155 = vadd.f32 %v2151, %v2153
        %v2156 = vadd.f32 %v2152, %v2154
        %v2157 = vmul.f32 %v1943, %v1747
        %v2158 = vmul.f32 %v1943, %v1748
        %v2159 = vadd.f32 %v2155, %v2157
        %v2160 = vadd.f32 %v2156, %v2158
        %v2161 = vmul.f32 %v1948, %v1799
        %v2162 = vmul.f32 %v1948, %v1800
        %v2163 = vadd.f32 %v2159, %v2161
        %v2164 = vadd.f32 %v2160, %v2162
        %v2165 = vmul.f32 %v1893, %v1435
        %v2166 = vmul.f32 %v1893, %v1436
        %v2167 = vadd.f32 %v1826, %v2165
        %v2168 = vadd.f32 %v1826, %v2166
        %v2169 = vmul.f32 %v1898, %v1487
        %v2170 = vmul.f32 %v1898, %v1488
        %v2171 = vadd.f32 %v2167, %v2169
        %v2172 = vadd.f32 %v2168, %v2170
        %v2173 = vmul.f32 %v1903, %v1539
        %v2174 = vmul.f32 %v1903, %v1540
        %v2175 = vadd.f32 %v2171, %v2173
        %v2176 = vadd.f32 %v2172, %v2174
        %v2177 = vmul.f32 %v1908, %v1591
        %v2178 = vmul.f32 %v1908, %v1592
        %v2179 = vadd.f32 %v2175, %v2177
        %v2180 = vadd.f32 %v2176, %v2178
        %v2181 = vmul.f32 %v1913, %v1643
        %v2182 = vmul.f32 %v1913, %v1644
        %v2183 = vadd.f32 %v2179, %v2181
        %v2184 = vadd.f32 %v2180, %v2182
        %v2185 = vmul.f32 %v1918, %v1695
        %v2186 = vmul.f32 %v1918, %v1696
        %v2187 = vadd.f32 %v2183, %v2185
        %v2188 = vadd.f32 %v2184, %v2186
        %v2189 = vmul.f32 %v1923, %v1747
        %v2190 = vmul.f32 %v1923, %v1748
        %v2191 = vadd.f32 %v2187, %v2189
        %v2192 = vadd.f32 %v2188, %v2190
        %v2193 = vmul.f32 %v1928, %v1799
        %v2194 = vmul.f32 %v1928, %v1800
        %v2195 = vadd.f32 %v2191, %v2193
        %v2196 = vadd.f32 %v2192, %v2194
        %v2197 = vmul.f32 %v1933, %v1867
        %v2198 = vmul.f32 %v1933, %v1868
        %v2199 = vadd.f32 %v2195, %v2197
        %v2200 = vadd.f32 %v2196, %v2198
        %v2201 = vmul.f32 %v1938, %v1875
        %v2202 = vmul.f32 %v1938, %v1876
        %v2203 = vadd.f32 %v2199, %v2201
        %v2204 = vadd.f32 %v2200, %v2202
        %v2205 = vmul.f32 %v1943, %v1883
        %v2206 = vmul.f32 %v1943, %v1884
        %v2207 = vadd.f32 %v2203, %v2205
        %v2208 = vadd.f32 %v2204, %v2206
        %v2209 = vmul.f32 %v1948, %v1891
        %v2210 = vmul.f32 %v1948, %v1892
        %v2211 = vadd.f32 %v2207, %v2209
        %v2212 = vadd.f32 %v2208, %v2210
        %v2213 = vmax.f32 %v2163, %v2211
        %v2214 = vmax.f32 %v2164, %v2212
        %v2215 = vmax.f32 %v2213, 0.0
        %v2216 = vmax.f32 %v2214, 0.0
        %v2217 = vmul.f32 %v2005, %v1227
        %v2218 = vmul.f32 %v2005, %v1228
        %v2219 = vadd.f32 %v1828, %v2217
        %v2220 = vadd.f32 %v1828, %v2218
        %v2221 = vmul.f32 %v2010, %v1279
        %v2222 = vmul.f32 %v2010, %v1280
        %v2223 = vadd.f32 %v2219, %v2221
        %v2224 = vadd.f32 %v2220, %v2222
        %v2225 = vmul.f32 %v2015, %v1331
        %v2226 = vmul.f32 %v2015, %v1332
        %v2227 = vadd.f32 %v2223, %v2225
        %v2228 = vadd.f32 %v2224, %v2226
        %v2229 = vmul.f32 %v2020, %v1383
        %v2230 = vmul.f32 %v2020, %v1384
        %v2231 = vadd.f32 %v2227, %v2229
        %v2232 = vadd.f32 %v2228, %v2230
        %v2233 = vmul.f32 %v2025, %v1435
        %v2234 = vmul.f32 %v2025, %v1436
        %v2235 = vadd.f32 %v2231, %v2233
        %v2236 = vadd.f32 %v2232, %v2234
        %v2237 = vmul.f32 %v2030, %v1487
        %v2238 = vmul.f32 %v2030, %v1488
        %v2239 = vadd.f32 %v2235, %v2237
        %v2240 = vadd.f32 %v2236, %v2238
        %v2241 = vmul.f32 %v2035, %v1539
        %v2242 = vmul.f32 %v2035, %v1540
        %v2243 = vadd.f32 %v2239, %v2241
        %v2244 = vadd.f32 %v2240, %v2242
        %v2245 = vmul.f32 %v2040, %v1591
        %v2246 = vmul.f32 %v2040, %v1592
        %v2247 = vadd.f32 %v2243, %v2245
        %v2248 = vadd.f32 %v2244, %v2246
        %v2249 = vmul.f32 %v2045, %v1643
        %v2250 = vmul.f32 %v2045, %v1644
        %v2251 = vadd.f32 %v2247, %v2249
        %v2252 = vadd.f32 %v2248, %v2250
        %v2253 = vmul.f32 %v2050, %v1695
        %v2254 = vmul.f32 %v2050, %v1696
        %v2255 = vadd.f32 %v2251, %v2253
        %v2256 = vadd.f32 %v2252, %v2254
        %v2257 = vmul.f32 %v2055, %v1747
        %v2258 = vmul.f32 %v2055, %v1748
        %v2259 = vadd.f32 %v2255, %v2257
        %v2260 = vadd.f32 %v2256, %v2258
        %v2261 = vmul.f32 %v2060, %v1799
        %v2262 = vmul.f32 %v2060, %v1800
        %v2263 = vadd.f32 %v2259, %v2261
        %v2264 = vadd.f32 %v2260, %v2262
        %v2265 = vmul.f32 %v2005, %v1435
        %v2266 = vmul.f32 %v2005, %v1436
        %v2267 = vadd.f32 %v1828, %v2265
        %v2268 = vadd.f32 %v1828, %v2266
        %v2269 = vmul.f32 %v2010, %v1487
        %v2270 = vmul.f32 %v2010, %v1488
        %v2271 = vadd.f32 %v2267, %v2269
        %v2272 = vadd.f32 %v2268, %v2270
        %v2273 = vmul.f32 %v2015, %v1539
        %v2274 = vmul.f32 %v2015, %v1540
        %v2275 = vadd.f32 %v2271, %v2273
        %v2276 = vadd.f32 %v2272, %v2274
        %v2277 = vmul.f32 %v2020, %v1591
        %v2278 = vmul.f32 %v2020, %v1592
        %v2279 = vadd.f32 %v2275, %v2277
        %v2280 = vadd.f32 %v2276, %v2278
        %v2281 = vmul.f32 %v2025, %v1643
        %v2282 = vmul.f32 %v2025, %v1644
        %v2283 = vadd.f32 %v2279, %v2281
        %v2284 = vadd.f32 %v2280, %v2282
        %v2285 = vmul.f32 %v2030, %v1695
        %v2286 = vmul.f32 %v2030, %v1696
        %v2287 = vadd.f32 %v2283, %v2285
        %v2288 = vadd.f32 %v2284, %v2286
        %v2289 = vmul.f32 %v2035, %v1747
        %v2290 = vmul.f32 %v2035, %v1748
        %v2291 = vadd.f32 %v2287, %v2289
        %v2292 = vadd.f32 %v2288, %v2290
        %v2293 = vmul.f32 %v2040, %v1799
        %v2294 = vmul.f32 %v2040, %v1800
        %v2295 = vadd.f32 %v2291, %v2293
        %v2296 = vadd.f32 %v2292, %v2294
        %v2297 = vmul.f32 %v2045, %v1867
        %v2298 = vmul.f32 %v2045, %v1868
        %v2299 = vadd.f32 %v2295, %v2297
        %v2300 = vadd.f32 %v2296, %v2298
        %v2301 = vmul.f32 %v2050, %v1875
        %v2302 = vmul.f32 %v2050, %v1876
        %v2303 = vadd.f32 %v2299, %v2301
        %v2304 = vadd.f32 %v2300, %v2302
        %v2305 = vmul.f32 %v2055, %v1883
        %v2306 = vmul.f32 %v2055, %v1884
        %v2307 = vadd.f32 %v2303, %v2305
        %v2308 = vadd.f32 %v2304, %v2306
        %v2309 = vmul.f32 %v2060, %v1891
        %v2310 = vmul.f32 %v2060, %v1892
        %v2311 = vadd.f32 %v2307, %v2309
        %v2312 = vadd.f32 %v2308, %v2310
        %v2313 = vmax.f32 %v2263, %v2311
        %v2314 = vmax.f32 %v2264, %v2312
        %v2315 = vmax.f32 %v2313, 0.0
        %v2316 = vmax.f32 %v2314, 0.0
        %s2317 = sld [smem:[#allocation6 + $0x3f]]
        %s2318 = sld [smem:[#allocation6 + $0x40]]
        %s2319 = sld [smem:[#allocation6 + $0x41]]
        %s2320 = sld [smem:[#allocation6 + $0x42]]
        %s2321 = sld [smem:[#allocation6 + $0x43]]
        %s2322 = sld [smem:[#allocation6 + $0x44]]
        %s2323 = sld [smem:[#allocation6 + $0x3e]]
        %v2324 = vstv %s2323
        %2325 = vrot.lane.b32.xlu0 %v2215, 1
        %v2326 = vpop.permute.xlu0 %2325
        %2327 = vrot.lane.b32.xlu0 %v2216, 1
        %v2328 = vpop.permute.xlu0 %2327
        %v2329 = vsel %vm413, %v2326, %v2328
        %v2330 = vsel %vm413, %v2328, %v2326
        %v2331 = vmul.f32 %v2330, %v344
        %v2332 = vmul.f32 %v2329, %v345
        %2333 = vrot.lane.b32.xlu0 %v2315, 1
        %v2334 = vpop.permute.xlu0 %2333
        %2335 = vrot.lane.b32.xlu0 %v2316, 1
        %v2336 = vpop.permute.xlu0 %2335
        %v2337 = vsel %vm413, %v2334, %v2336
        %v2338 = vsel %vm413, %v2336, %v2334
        %v2339 = vmul.f32 %v2338, %v344
        %v2340 = vmul.f32 %v2337, %v345
        %2341 = vrot.lane.b32.xlu0 %v2003, 127
        %v2342 = vpop.permute.xlu0 %2341
        %2343 = vrot.lane.b32.xlu0 %v2004, 127
        %v2344 = vpop.permute.xlu0 %2343
        %v2345 = vsel %vm422, %v2342, %v2344
        %v2346 = vsel %vm422, %v2344, %v2342
        %v2347 = vmul.f32 %v2345, %v350
        %v2348 = vmul.f32 %v2346, %v351
        %2349 = vrot.lane.b32.xlu0 %v2115, 127
        %v2350 = vpop.permute.xlu0 %2349
        %2351 = vrot.lane.b32.xlu0 %v2116, 127
        %v2352 = vpop.permute.xlu0 %2351
        %v2353 = vsel %vm422, %v2350, %v2352
        %v2354 = vsel %vm422, %v2352, %v2350
        %v2355 = vmul.f32 %v2353, %v350
        %v2356 = vmul.f32 %v2354, %v351
        %v2357 = vstv %s2317
        %v2358 = vmul.f32 %v2357, %v2331
        %v2359 = vmul.f32 %v2357, %v2332
        %v2360 = vadd.f32 %v2324, %v2358
        %v2361 = vadd.f32 %v2324, %v2359
        %v2362 = vstv %s2320
        %v2363 = vmul.f32 %v2362, %v2339
        %v2364 = vmul.f32 %v2362, %v2340
        %v2365 = vadd.f32 %v2360, %v2363
        %v2366 = vadd.f32 %v2361, %v2364
        %v2367 = vstv %s2318
        %v2368 = vmul.f32 %v2367, %v2003
        %v2369 = vmul.f32 %v2367, %v2004
        %v2370 = vadd.f32 %v2365, %v2368
        %v2371 = vadd.f32 %v2366, %v2369
        %v2372 = vstv %s2321
        %v2373 = vmul.f32 %v2372, %v2115
        %v2374 = vmul.f32 %v2372, %v2116
        %v2375 = vadd.f32 %v2370, %v2373
        %v2376 = vadd.f32 %v2371, %v2374
        %v2377 = vstv %s2319
        %v2378 = vmul.f32 %v2377, %v2215
        %v2379 = vmul.f32 %v2377, %v2216
        %v2380 = vadd.f32 %v2375, %v2378
        %v2381 = vadd.f32 %v2376, %v2379
        %v2382 = vstv %s2322
        %v2383 = vmul.f32 %v2382, %v2315
        %v2384 = vmul.f32 %v2382, %v2316
        %v2385 = vadd.f32 %v2380, %v2383
        %v2386 = vadd.f32 %v2381, %v2384
        %v2387 = vmul.f32 %v2357, %v2003
        %v2388 = vmul.f32 %v2357, %v2004
        %v2389 = vadd.f32 %v2324, %v2387
        %v2390 = vadd.f32 %v2324, %v2388
        %v2391 = vmul.f32 %v2362, %v2115
        %v2392 = vmul.f32 %v2362, %v2116
        %v2393 = vadd.f32 %v2389, %v2391
        %v2394 = vadd.f32 %v2390, %v2392
        %v2395 = vmul.f32 %v2367, %v2215
        %v2396 = vmul.f32 %v2367, %v2216
        %v2397 = vadd.f32 %v2393, %v2395
        %v2398 = vadd.f32 %v2394, %v2396
        %v2399 = vmul.f32 %v2372, %v2315
        %v2400 = vmul.f32 %v2372, %v2316
        %v2401 = vadd.f32 %v2397, %v2399
        %v2402 = vadd.f32 %v2398, %v2400
        %v2403 = vmul.f32 %v2377, %v2347
        %v2404 = vmul.f32 %v2377, %v2348
        %v2405 = vadd.f32 %v2401, %v2403
        %v2406 = vadd.f32 %v2402, %v2404
        %v2407 = vmul.f32 %v2382, %v2355
        %v2408 = vmul.f32 %v2382, %v2356
        %v2409 = vadd.f32 %v2405, %v2407
        %v2410 = vadd.f32 %v2406, %v2408
        %v2411 = vmax.f32 %v2385, %v2409
        %v2412 = vmax.f32 %v2386, %v2410
        %v2413 = vmax.f32 %v2411, 0.0
        %v2414 = vmax.f32 %v2412, 0.0
        %2415 = vst [vmem:[%s329] sm:$0xff] %v2413
        %2416 = vst [vmem:[%s329 + $0x8] sm:$0xff] %v2414
        %v2417 = vld [vmem:[#allocation10] sm:$0xff]
        %v2418 = vld [vmem:[#allocation7] sm:$0xff]
        %v2419 = vld [vmem:[#allocation7 + $0x8] sm:$0xff]
        %v2420 = vld [vmem:[#allocation7 + $0x10] sm:$0xff]
        %v2421 = vld [vmem:[#allocation7 + $0x18] sm:$0xff]
        %v2422 = vld [vmem:[#allocation7 + $0x20] sm:$0xff]
        %v2423 = vld [vmem:[#allocation7 + $0x28] sm:$0xff]
        %v2424 = vld [vmem:[#allocation7 + $0x30] sm:$0xff]
        %v2425 = vld [vmem:[#allocation7 + $0x38] sm:$0xff]
        %v2426 = vld [vmem:[#allocation7 + $0x40] sm:$0xff]
        %v2427 = vld [vmem:[#allocation7 + $0x48] sm:$0xff]
        %v2428 = vld [vmem:[#allocation7 + $0x50] sm:$0xff]
        %v2429 = vld [vmem:[#allocation7 + $0x58] sm:$0xff]
        %v2430 = vld [vmem:[#allocation7 + $0x60] sm:$0xff]
        %v2431 = vld [vmem:[#allocation7 + $0x68] sm:$0xff]
        %v2432 = vld [vmem:[#allocation7 + $0x70] sm:$0xff]
        %v2433 = vld [vmem:[#allocation7 + $0x78] sm:$0xff]
        %v2434 = vld [vmem:[#allocation7 + $0x80] sm:$0xff]
        %v2435 = vld [vmem:[#allocation7 + $0x88] sm:$0xff]
        %v2436 = vld [vmem:[#allocation7 + $0x90] sm:$0xff]
        %v2437 = vld [vmem:[#allocation7 + $0x98] sm:$0xff]
        %v2438 = vld [vmem:[#allocation7 + $0xa0] sm:$0xff]
        %v2439 = vld [vmem:[#allocation7 + $0xa8] sm:$0xff]
        %v2440 = vld [vmem:[#allocation7 + $0xb0] sm:$0xff]
        %v2441 = vld [vmem:[#allocation7 + $0xb8] sm:$0xff]
        %v2442 = vld [vmem:[#allocation7 + $0xc0] sm:$0xff]
        %v2443 = vld [vmem:[#allocation7 + $0xc8] sm:$0xff]
        %v2444 = vld [vmem:[#allocation7 + $0xd0] sm:$0xff]
        %v2445 = vld [vmem:[#allocation7 + $0xd8] sm:$0xff]
        %v2446 = vld [vmem:[#allocation7 + $0xe0] sm:$0xff]
        %v2447 = vld [vmem:[#allocation7 + $0xe8] sm:$0xff]
        %v2448 = vld [vmem:[#allocation7 + $0xf0] sm:$0xff]
        %v2449 = vld [vmem:[#allocation7 + $0xf8] sm:$0xff]
        %v2450 = vlaneseq
        %v2451 = vshrl.u32 %v2450, 7
        %v2452 = vsub.s32 0, %v2451
        %v2453 = vrot.slane %v2417, %v2452
        %2454 = vmatprep.subr.mxu0 0.0
        %2455 = vmatpush1.msra.mxu0 %v2433
        %2456 = vmatprep.subr.mxu0 0.0
        %2457 = vmatpush1.msra.mxu0 %v2432
        %2458 = vmatprep.subr.mxu0 0.0
        %2459 = vmatpush1.msra.mxu0 %v2431
        %2460 = vmatprep.subr.mxu0 0.0
        %2461 = vmatpush1.msra.mxu0 %v2430
        %2462 = vmatprep.subr.mxu0 0.0
        %2463 = vmatpush1.msra.mxu0 %v2429
        %2464 = vmatprep.subr.mxu0 0.0
        %2465 = vmatpush1.msra.mxu0 %v2428
        %2466 = vmatprep.subr.mxu0 0.0
        %2467 = vmatpush1.msra.mxu0 %v2427
        %2468 = vmatprep.subr.mxu0 0.0
        %2469 = vmatpush1.msra.mxu0 %v2426
        %2470 = vmatprep.subr.mxu0 0.0
        %2471 = vmatpush1.msra.mxu0 %v2425
        %2472 = vmatprep.subr.mxu0 0.0
        %2473 = vmatpush1.msra.mxu0 %v2424
        %2474 = vmatprep.subr.mxu0 0.0
        %2475 = vmatpush1.msra.mxu0 %v2423
        %2476 = vmatprep.subr.mxu0 0.0
        %2477 = vmatpush1.msra.mxu0 %v2422
        %2478 = vmatprep.subr.mxu0 0.0
        %2479 = vmatpush1.msra.mxu0 %v2421
        %2480 = vmatprep.subr.mxu0 0.0
        %2481 = vmatpush1.msra.mxu0 %v2420
        %2482 = vmatprep.subr.mxu0 0.0
        %2483 = vmatpush1.msra.mxu0 %v2419
        %2484 = vmatprep.subr.mxu0 0.0
        %2485 = vmatpush1.msra.mxu0 %v2418
        %2486 = vmatprep.subr.mxu0 0.0
        %2487 = vmatpush2.msra.mxu0 %v2449
        %2488 = vmatprep.subr.mxu0 0.0
        %2489 = vmatpush2.msra.mxu0 %v2448
        %2490 = vmatprep.subr.mxu0 0.0
        %2491 = vmatpush2.msra.mxu0 %v2447
        %2492 = vmatprep.subr.mxu0 0.0
        %2493 = vmatpush2.msra.mxu0 %v2446
        %2494 = vmatprep.subr.mxu0 0.0
        %2495 = vmatpush2.msra.mxu0 %v2445
        %2496 = vmatprep.subr.mxu0 0.0
        %2497 = vmatpush2.msra.mxu0 %v2444
        %2498 = vmatprep.subr.mxu0 0.0
        %2499 = vmatpush2.msra.mxu0 %v2443
        %2500 = vmatprep.subr.mxu0 0.0
        %2501 = vmatpush2.msra.mxu0 %v2442
        %2502 = vmatprep.subr.mxu0 0.0
        %2503 = vmatpush2.msra.mxu0 %v2441
        %2504 = vmatprep.subr.mxu0 0.0
        %2505 = vmatpush2.msra.mxu0 %v2440
        %2506 = vmatprep.subr.mxu0 0.0
        %2507 = vmatpush2.msra.mxu0 %v2439
        %2508 = vmatprep.subr.mxu0 0.0
        %2509 = vmatpush2.msra.mxu0 %v2438
        %2510 = vmatprep.subr.mxu0 0.0
        %2511 = vmatpush2.msra.mxu0 %v2437
        %2512 = vmatprep.subr.mxu0 0.0
        %2513 = vmatpush2.msra.mxu0 %v2436
        %2514 = vmatprep.subr.mxu0 0.0
        %2515 = vmatpush2.msra.mxu0 %v2435
        %2516 = vmatprep.subr.mxu0 0.0
        %2517 = vmatpush2.msra.mxu0 %v2434
        %2518 = vmatprep.mubr.f32.mxu0 %v2414
        %2519 = vmatmul.mubr.f32.gmra.mxu0 %v2413
        %v2520 = vpop.f32.mrf.mxu0
        %v2521 = vadd.f32 %v2453, %v2520
        %v2522 = vpop.f32.mrf.mxu0
        %2523 = vdwg.mxu0
        %v2524 = vmax.f32 %v2521, 0.0
        %v2525 = vld [vmem:[#allocation9] sm:$0xff]
        %v2526 = vld [vmem:[#allocation9 + $0x8] sm:$0xff]
        %v2527 = vld [vmem:[#allocation9 + $0x10] sm:$0xff]
        %v2528 = vld [vmem:[#allocation9 + $0x18] sm:$0xff]
        %v2529 = vld [vmem:[#allocation9 + $0x20] sm:$0xff]
        %v2530 = vld [vmem:[#allocation9 + $0x28] sm:$0xff]
        %v2531 = vld [vmem:[#allocation9 + $0x30] sm:$0xff]
        %v2532 = vld [vmem:[#allocation9 + $0x38] sm:$0xff]
        %v2533 = vld [vmem:[#allocation9 + $0x40] sm:$0xff]
        %v2534 = vld [vmem:[#allocation9 + $0x48] sm:$0xff]
        %v2535 = vld [vmem:[#allocation9 + $0x50] sm:$0xff]
        %v2536 = vld [vmem:[#allocation9 + $0x58] sm:$0xff]
        %v2537 = vld [vmem:[#allocation9 + $0x60] sm:$0xff]
        %v2538 = vld [vmem:[#allocation9 + $0x68] sm:$0xff]
        %v2539 = vld [vmem:[#allocation9 + $0x70] sm:$0xff]
        %v2540 = vld [vmem:[#allocation9 + $0x78] sm:$0xff]
        %v2541 = vlaneseq
        %v2542 = vshrl.u32 %v2541, 7
        %v2543 = vsub.s32 1, %v2542
        %v2544 = vrot.slane %v2417, %v2543
        %2545 = vmatprep.subr.mxu0 0.0
        %2546 = vmatpush1.msra.mxu0 %v2540
        %2547 = vmatprep.subr.mxu0 0.0
        %2548 = vmatpush1.msra.mxu0 %v2539
        %2549 = vmatprep.subr.mxu0 0.0
        %2550 = vmatpush1.msra.mxu0 %v2538
        %2551 = vmatprep.subr.mxu0 0.0
        %2552 = vmatpush1.msra.mxu0 %v2537
        %2553 = vmatprep.subr.mxu0 0.0
        %2554 = vmatpush1.msra.mxu0 %v2536
        %2555 = vmatprep.subr.mxu0 0.0
        %2556 = vmatpush1.msra.mxu0 %v2535
        %2557 = vmatprep.subr.mxu0 0.0
        %2558 = vmatpush1.msra.mxu0 %v2534
        %2559 = vmatprep.subr.mxu0 0.0
        %2560 = vmatpush1.msra.mxu0 %v2533
        %2561 = vmatprep.subr.mxu0 0.0
        %2562 = vmatpush1.msra.mxu0 %v2532
        %2563 = vmatprep.subr.mxu0 0.0
        %2564 = vmatpush1.msra.mxu0 %v2531
        %2565 = vmatprep.subr.mxu0 0.0
        %2566 = vmatpush1.msra.mxu0 %v2530
        %2567 = vmatprep.subr.mxu0 0.0
        %2568 = vmatpush1.msra.mxu0 %v2529
        %2569 = vmatprep.subr.mxu0 0.0
        %2570 = vmatpush1.msra.mxu0 %v2528
        %2571 = vmatprep.subr.mxu0 0.0
        %2572 = vmatpush1.msra.mxu0 %v2527
        %2573 = vmatprep.subr.mxu0 0.0
        %2574 = vmatpush1.msra.mxu0 %v2526
        %2575 = vmatprep.subr.mxu0 0.0
        %2576 = vmatpush1.msra.mxu0 %v2525
        %2577 = vmatprep.subr.mxu0 0.0
        %2578 = vmatpush2.msra.mxu0 0.0
        %2579 = vmatprep.subr.mxu0 0.0
        %2580 = vmatpush2.msra.mxu0 0.0
        %2581 = vmatprep.subr.mxu0 0.0
        %2582 = vmatpush2.msra.mxu0 0.0
        %2583 = vmatprep.subr.mxu0 0.0
        %2584 = vmatpush2.msra.mxu0 0.0
        %2585 = vmatprep.subr.mxu0 0.0
        %2586 = vmatpush2.msra.mxu0 0.0
        %2587 = vmatprep.subr.mxu0 0.0
        %2588 = vmatpush2.msra.mxu0 0.0
        %2589 = vmatprep.subr.mxu0 0.0
        %2590 = vmatpush2.msra.mxu0 0.0
        %2591 = vmatprep.subr.mxu0 0.0
        %2592 = vmatpush2.msra.mxu0 0.0
        %2593 = vmatprep.subr.mxu0 0.0
        %2594 = vmatpush2.msra.mxu0 0.0
        %2595 = vmatprep.subr.mxu0 0.0
        %2596 = vmatpush2.msra.mxu0 0.0
        %2597 = vmatprep.subr.mxu0 0.0
        %2598 = vmatpush2.msra.mxu0 0.0
        %2599 = vmatprep.subr.mxu0 0.0
        %2600 = vmatpush2.msra.mxu0 0.0
        %2601 = vmatprep.subr.mxu0 0.0
        %2602 = vmatpush2.msra.mxu0 0.0
        %2603 = vmatprep.subr.mxu0 0.0
        %2604 = vmatpush2.msra.mxu0 0.0
        %2605 = vmatprep.subr.mxu0 0.0
        %2606 = vmatpush2.msra.mxu0 0.0
        %2607 = vmatprep.subr.mxu0 0.0
        %2608 = vmatpush2.msra.mxu0 0.0
        %2609 = vmatprep.mubr.f32.mxu0 0.0
        %2610 = vmatmul.mubr.f32.gmra.mxu0 %v2524
        %v2611 = vpop.f32.mrf.mxu0
        %v2612 = vadd.f32 %v2544, %v2611
        %v2613 = vpop.f32.mrf.mxu0
        %2614 = vdwg.mxu0
        %v2615 = vmax.f32 %v2612, 0.0
        %s2616 = scalar_lea.vmem [#allocation9], 128
        %v2617 = vld [vmem:[%s2616] sm:$0xff]
        %v2618 = vld [vmem:[%s2616 + $0x8] sm:$0xff]
        %v2619 = vld [vmem:[%s2616 + $0x10] sm:$0xff]
        %v2620 = vld [vmem:[%s2616 + $0x18] sm:$0xff]
        %v2621 = vld [vmem:[%s2616 + $0x20] sm:$0xff]
        %v2622 = vld [vmem:[%s2616 + $0x28] sm:$0xff]
        %v2623 = vld [vmem:[%s2616 + $0x30] sm:$0xff]
        %v2624 = vld [vmem:[%s2616 + $0x38] sm:$0xff]
        %v2625 = vld [vmem:[%s2616 + $0x40] sm:$0xff]
        %v2626 = vld [vmem:[%s2616 + $0x48] sm:$0xff]
        %v2627 = vld [vmem:[%s2616 + $0x50] sm:$0xff]
        %v2628 = vld [vmem:[%s2616 + $0x58] sm:$0xff]
        %v2629 = vld [vmem:[%s2616 + $0x60] sm:$0xff]
        %v2630 = vld [vmem:[%s2616 + $0x68] sm:$0xff]
        %v2631 = vld [vmem:[%s2616 + $0x70] sm:$0xff]
        %v2632 = vld [vmem:[%s2616 + $0x78] sm:$0xff]
        %v2633 = vlaneseq
        %v2634 = vshrl.u32 %v2633, 7
        %v2635 = vsub.s32 2, %v2634
        %v2636 = vrot.slane %v2417, %v2635
        %2637 = vmatprep.subr.mxu0 0.0
        %2638 = vmatpush1.msra.mxu0 %v2632
        %2639 = vmatprep.subr.mxu0 0.0
        %2640 = vmatpush1.msra.mxu0 %v2631
        %2641 = vmatprep.subr.mxu0 0.0
        %2642 = vmatpush1.msra.mxu0 %v2630
        %2643 = vmatprep.subr.mxu0 0.0
        %2644 = vmatpush1.msra.mxu0 %v2629
        %2645 = vmatprep.subr.mxu0 0.0
        %2646 = vmatpush1.msra.mxu0 %v2628
        %2647 = vmatprep.subr.mxu0 0.0
        %2648 = vmatpush1.msra.mxu0 %v2627
        %2649 = vmatprep.subr.mxu0 0.0
        %2650 = vmatpush1.msra.mxu0 %v2626
        %2651 = vmatprep.subr.mxu0 0.0
        %2652 = vmatpush1.msra.mxu0 %v2625
        %2653 = vmatprep.subr.mxu0 0.0
        %2654 = vmatpush1.msra.mxu0 %v2624
        %2655 = vmatprep.subr.mxu0 0.0
        %2656 = vmatpush1.msra.mxu0 %v2623
        %2657 = vmatprep.subr.mxu0 0.0
        %2658 = vmatpush1.msra.mxu0 %v2622
        %2659 = vmatprep.subr.mxu0 0.0
        %2660 = vmatpush1.msra.mxu0 %v2621
        %2661 = vmatprep.subr.mxu0 0.0
        %2662 = vmatpush1.msra.mxu0 %v2620
        %2663 = vmatprep.subr.mxu0 0.0
        %2664 = vmatpush1.msra.mxu0 %v2619
        %2665 = vmatprep.subr.mxu0 0.0
        %2666 = vmatpush1.msra.mxu0 %v2618
        %2667 = vmatprep.subr.mxu0 0.0
        %2668 = vmatpush1.msra.mxu0 %v2617
        %2669 = vmatprep.subr.mxu0 0.0
        %2670 = vmatpush2.msra.mxu0 0.0
        %2671 = vmatprep.subr.mxu0 0.0
        %2672 = vmatpush2.msra.mxu0 0.0
        %2673 = vmatprep.subr.mxu0 0.0
        %2674 = vmatpush2.msra.mxu0 0.0
        %2675 = vmatprep.subr.mxu0 0.0
        %2676 = vmatpush2.msra.mxu0 0.0
        %2677 = vmatprep.subr.mxu0 0.0
        %2678 = vmatpush2.msra.mxu0 0.0
        %2679 = vmatprep.subr.mxu0 0.0
        %2680 = vmatpush2.msra.mxu0 0.0
        %2681 = vmatprep.subr.mxu0 0.0
        %2682 = vmatpush2.msra.mxu0 0.0
        %2683 = vmatprep.subr.mxu0 0.0
        %2684 = vmatpush2.msra.mxu0 0.0
        %2685 = vmatprep.subr.mxu0 0.0
        %2686 = vmatpush2.msra.mxu0 0.0
        %2687 = vmatprep.subr.mxu0 0.0
        %2688 = vmatpush2.msra.mxu0 0.0
        %2689 = vmatprep.subr.mxu0 0.0
        %2690 = vmatpush2.msra.mxu0 0.0
        %2691 = vmatprep.subr.mxu0 0.0
        %2692 = vmatpush2.msra.mxu0 0.0
        %2693 = vmatprep.subr.mxu0 0.0
        %2694 = vmatpush2.msra.mxu0 0.0
        %2695 = vmatprep.subr.mxu0 0.0
        %2696 = vmatpush2.msra.mxu0 0.0
        %2697 = vmatprep.subr.mxu0 0.0
        %2698 = vmatpush2.msra.mxu0 0.0
        %2699 = vmatprep.subr.mxu0 0.0
        %2700 = vmatpush2.msra.mxu0 0.0
        %2701 = vmatprep.mubr.f32.mxu0 0.0
        %2702 = vmatmul.mubr.f32.gmra.mxu0 %v2615
        %v2703 = vpop.f32.mrf.mxu0
        %v2704 = vadd.f32 %v2636, %v2703
        %v2705 = vpop.f32.mrf.mxu0
        %2706 = vdwg.mxu0
        %v2707 = vmax.f32 %v2704, 0.0
        %s2708 = scalar_lea.vmem [#allocation9], 256
        %v2709 = vld [vmem:[%s2708] sm:$0xff]
        %v2710 = vld [vmem:[%s2708 + $0x8] sm:$0xff]
        %v2711 = vld [vmem:[%s2708 + $0x10] sm:$0xff]
        %v2712 = vld [vmem:[%s2708 + $0x18] sm:$0xff]
        %v2713 = vld [vmem:[%s2708 + $0x20] sm:$0xff]
        %v2714 = vld [vmem:[%s2708 + $0x28] sm:$0xff]
        %v2715 = vld [vmem:[%s2708 + $0x30] sm:$0xff]
        %v2716 = vld [vmem:[%s2708 + $0x38] sm:$0xff]
        %v2717 = vld [vmem:[%s2708 + $0x40] sm:$0xff]
        %v2718 = vld [vmem:[%s2708 + $0x48] sm:$0xff]
        %v2719 = vld [vmem:[%s2708 + $0x50] sm:$0xff]
        %v2720 = vld [vmem:[%s2708 + $0x58] sm:$0xff]
        %v2721 = vld [vmem:[%s2708 + $0x60] sm:$0xff]
        %v2722 = vld [vmem:[%s2708 + $0x68] sm:$0xff]
        %v2723 = vld [vmem:[%s2708 + $0x70] sm:$0xff]
        %v2724 = vld [vmem:[%s2708 + $0x78] sm:$0xff]
        %v2725 = vlaneseq
        %v2726 = vshrl.u32 %v2725, 7
        %v2727 = vsub.s32 3, %v2726
        %v2728 = vrot.slane %v2417, %v2727
        %2729 = vmatprep.subr.mxu0 0.0
        %2730 = vmatpush1.msra.mxu0 %v2724
        %2731 = vmatprep.subr.mxu0 0.0
        %2732 = vmatpush1.msra.mxu0 %v2723
        %2733 = vmatprep.subr.mxu0 0.0
        %2734 = vmatpush1.msra.mxu0 %v2722
        %2735 = vmatprep.subr.mxu0 0.0
        %2736 = vmatpush1.msra.mxu0 %v2721
        %2737 = vmatprep.subr.mxu0 0.0
        %2738 = vmatpush1.msra.mxu0 %v2720
        %2739 = vmatprep.subr.mxu0 0.0
        %2740 = vmatpush1.msra.mxu0 %v2719
        %2741 = vmatprep.subr.mxu0 0.0
        %2742 = vmatpush1.msra.mxu0 %v2718
        %2743 = vmatprep.subr.mxu0 0.0
        %2744 = vmatpush1.msra.mxu0 %v2717
        %2745 = vmatprep.subr.mxu0 0.0
        %2746 = vmatpush1.msra.mxu0 %v2716
        %2747 = vmatprep.subr.mxu0 0.0
        %2748 = vmatpush1.msra.mxu0 %v2715
        %2749 = vmatprep.subr.mxu0 0.0
        %2750 = vmatpush1.msra.mxu0 %v2714
        %2751 = vmatprep.subr.mxu0 0.0
        %2752 = vmatpush1.msra.mxu0 %v2713
        %2753 = vmatprep.subr.mxu0 0.0
        %2754 = vmatpush1.msra.mxu0 %v2712
        %2755 = vmatprep.subr.mxu0 0.0
        %2756 = vmatpush1.msra.mxu0 %v2711
        %2757 = vmatprep.subr.mxu0 0.0
        %2758 = vmatpush1.msra.mxu0 %v2710
        %2759 = vmatprep.subr.mxu0 0.0
        %2760 = vmatpush1.msra.mxu0 %v2709
        %2761 = vmatprep.subr.mxu0 0.0
        %2762 = vmatpush2.msra.mxu0 0.0
        %2763 = vmatprep.subr.mxu0 0.0
        %2764 = vmatpush2.msra.mxu0 0.0
        %2765 = vmatprep.subr.mxu0 0.0
        %2766 = vmatpush2.msra.mxu0 0.0
        %2767 = vmatprep.subr.mxu0 0.0
        %2768 = vmatpush2.msra.mxu0 0.0
        %2769 = vmatprep.subr.mxu0 0.0
        %2770 = vmatpush2.msra.mxu0 0.0
        %2771 = vmatprep.subr.mxu0 0.0
        %2772 = vmatpush2.msra.mxu0 0.0
        %2773 = vmatprep.subr.mxu0 0.0
        %2774 = vmatpush2.msra.mxu0 0.0
        %2775 = vmatprep.subr.mxu0 0.0
        %2776 = vmatpush2.msra.mxu0 0.0
        %2777 = vmatprep.subr.mxu0 0.0
        %2778 = vmatpush2.msra.mxu0 0.0
        %2779 = vmatprep.subr.mxu0 0.0
        %2780 = vmatpush2.msra.mxu0 0.0
        %2781 = vmatprep.subr.mxu0 0.0
        %2782 = vmatpush2.msra.mxu0 0.0
        %2783 = vmatprep.subr.mxu0 0.0
        %2784 = vmatpush2.msra.mxu0 0.0
        %2785 = vmatprep.subr.mxu0 0.0
        %2786 = vmatpush2.msra.mxu0 0.0
        %2787 = vmatprep.subr.mxu0 0.0
        %2788 = vmatpush2.msra.mxu0 0.0
        %2789 = vmatprep.subr.mxu0 0.0
        %2790 = vmatpush2.msra.mxu0 0.0
        %2791 = vmatprep.subr.mxu0 0.0
        %2792 = vmatpush2.msra.mxu0 0.0
        %2793 = vmatprep.mubr.f32.mxu0 0.0
        %2794 = vmatmul.mubr.f32.gmra.mxu0 %v2707
        %v2795 = vpop.f32.mrf.mxu0
        %v2796 = vadd.f32 %v2728, %v2795
        %v2797 = vpop.f32.mrf.mxu0
        %2798 = vdwg.mxu0
        %v2799 = vmax.f32 %v2796, 0.0
        %s2800 = scalar_lea.vmem [#allocation9], 384
        %v2801 = vld [vmem:[%s2800] sm:$0xff]
        %v2802 = vld [vmem:[%s2800 + $0x8] sm:$0xff]
        %v2803 = vld [vmem:[%s2800 + $0x10] sm:$0xff]
        %v2804 = vld [vmem:[%s2800 + $0x18] sm:$0xff]
        %v2805 = vld [vmem:[%s2800 + $0x20] sm:$0xff]
        %v2806 = vld [vmem:[%s2800 + $0x28] sm:$0xff]
        %v2807 = vld [vmem:[%s2800 + $0x30] sm:$0xff]
        %v2808 = vld [vmem:[%s2800 + $0x38] sm:$0xff]
        %v2809 = vld [vmem:[%s2800 + $0x40] sm:$0xff]
        %v2810 = vld [vmem:[%s2800 + $0x48] sm:$0xff]
        %v2811 = vld [vmem:[%s2800 + $0x50] sm:$0xff]
        %v2812 = vld [vmem:[%s2800 + $0x58] sm:$0xff]
        %v2813 = vld [vmem:[%s2800 + $0x60] sm:$0xff]
        %v2814 = vld [vmem:[%s2800 + $0x68] sm:$0xff]
        %v2815 = vld [vmem:[%s2800 + $0x70] sm:$0xff]
        %v2816 = vld [vmem:[%s2800 + $0x78] sm:$0xff]
        %v2817 = vlaneseq
        %v2818 = vshrl.u32 %v2817, 7
        %v2819 = vsub.s32 4, %v2818
        %v2820 = vrot.slane %v2417, %v2819
        %2821 = vmatprep.subr.mxu0 0.0
        %2822 = vmatpush1.msra.mxu0 %v2816
        %2823 = vmatprep.subr.mxu0 0.0
        %2824 = vmatpush1.msra.mxu0 %v2815
        %2825 = vmatprep.subr.mxu0 0.0
        %2826 = vmatpush1.msra.mxu0 %v2814
        %2827 = vmatprep.subr.mxu0 0.0
        %2828 = vmatpush1.msra.mxu0 %v2813
        %2829 = vmatprep.subr.mxu0 0.0
        %2830 = vmatpush1.msra.mxu0 %v2812
        %2831 = vmatprep.subr.mxu0 0.0
        %2832 = vmatpush1.msra.mxu0 %v2811
        %2833 = vmatprep.subr.mxu0 0.0
        %2834 = vmatpush1.msra.mxu0 %v2810
        %2835 = vmatprep.subr.mxu0 0.0
        %2836 = vmatpush1.msra.mxu0 %v2809
        %2837 = vmatprep.subr.mxu0 0.0
        %2838 = vmatpush1.msra.mxu0 %v2808
        %2839 = vmatprep.subr.mxu0 0.0
        %2840 = vmatpush1.msra.mxu0 %v2807
        %2841 = vmatprep.subr.mxu0 0.0
        %2842 = vmatpush1.msra.mxu0 %v2806
        %2843 = vmatprep.subr.mxu0 0.0
        %2844 = vmatpush1.msra.mxu0 %v2805
        %2845 = vmatprep.subr.mxu0 0.0
        %2846 = vmatpush1.msra.mxu0 %v2804
        %2847 = vmatprep.subr.mxu0 0.0
        %2848 = vmatpush1.msra.mxu0 %v2803
        %2849 = vmatprep.subr.mxu0 0.0
        %2850 = vmatpush1.msra.mxu0 %v2802
        %2851 = vmatprep.subr.mxu0 0.0
        %2852 = vmatpush1.msra.mxu0 %v2801
        %2853 = vmatprep.subr.mxu0 0.0
        %2854 = vmatpush2.msra.mxu0 0.0
        %2855 = vmatprep.subr.mxu0 0.0
        %2856 = vmatpush2.msra.mxu0 0.0
        %2857 = vmatprep.subr.mxu0 0.0
        %2858 = vmatpush2.msra.mxu0 0.0
        %2859 = vmatprep.subr.mxu0 0.0
        %2860 = vmatpush2.msra.mxu0 0.0
        %2861 = vmatprep.subr.mxu0 0.0
        %2862 = vmatpush2.msra.mxu0 0.0
        %2863 = vmatprep.subr.mxu0 0.0
        %2864 = vmatpush2.msra.mxu0 0.0
        %2865 = vmatprep.subr.mxu0 0.0
        %2866 = vmatpush2.msra.mxu0 0.0
        %2867 = vmatprep.subr.mxu0 0.0
        %2868 = vmatpush2.msra.mxu0 0.0
        %2869 = vmatprep.subr.mxu0 0.0
        %2870 = vmatpush2.msra.mxu0 0.0
        %2871 = vmatprep.subr.mxu0 0.0
        %2872 = vmatpush2.msra.mxu0 0.0
        %2873 = vmatprep.subr.mxu0 0.0
        %2874 = vmatpush2.msra.mxu0 0.0
        %2875 = vmatprep.subr.mxu0 0.0
        %2876 = vmatpush2.msra.mxu0 0.0
        %2877 = vmatprep.subr.mxu0 0.0
        %2878 = vmatpush2.msra.mxu0 0.0
        %2879 = vmatprep.subr.mxu0 0.0
        %2880 = vmatpush2.msra.mxu0 0.0
        %2881 = vmatprep.subr.mxu0 0.0
        %2882 = vmatpush2.msra.mxu0 0.0
        %2883 = vmatprep.subr.mxu0 0.0
        %2884 = vmatpush2.msra.mxu0 0.0
        %2885 = vmatprep.mubr.f32.mxu0 0.0
        %2886 = vmatmul.mubr.f32.gmra.mxu0 %v2799
        %v2887 = vpop.f32.mrf.mxu0
        %v2888 = vadd.f32 %v2820, %v2887
        %v2889 = vpop.f32.mrf.mxu0
        %2890 = vdwg.mxu0
        %2891 = vst [vmem:[%s336] sm:$0xff] %v2888
        %s2892 = sand.u32 %s148, 1
        %s2893 = scalar_lea.sflag [#allocation4], %s2892
        %s2894 = sand.u32 %s148, 1
        %s2895 = smul.addr %s2894, 16
        %s2896 = scalar_lea.vmem [#allocation12], %s2895
        %s2897 = sand.u32 %s174, 1
        %s2898 = scalar_lea.sflag [#allocation14], %s2897
        %s2899 = sand.u32 %s174, 1
        %s2900 = smul.addr %s2899, 8
        %s2901 = scalar_lea.vmem [#allocation13], %s2900
        // Predicated region
        $region61: #{tpu_custom_call.1} parent=39 // pred_check
          %p2902 = pneg %p158
        $region62: #{tpu_custom_call.1} parent=39 // pred_check_branch
          %2904 = sbr.rel (%p2902) target = $region64
        $region63: #{tpu_custom_call.1} parent=39 // pred_region
          %s2906 = ssub.s32 256, 256
          %2907 = vsyncadd %s2893, %s2906
          %s2908 = smul.addr %s30, 2
          %s2909 = smul.addr %s2908, 128
          %s2910 = scalar_lea.hbm %s5, %s2909
          %s2912 = sshll.u32 %s2896, 4
          %s2913 = int_to_ptr.vmem [resolvable:$true] %s2912
          %2915 = dma.vmem_to_hbm [thread:$0]  %s2913, 256, %s2910, %s2893
        $region64: #{tpu_custom_call.1} parent=39 // pred_fallthru
          _
        // Predicated region
        $region65: #{tpu_custom_call.1} parent=39 // pred_check
          %p2916 = pneg %p184
        $region66: #{tpu_custom_call.1} parent=39 // pred_check_branch
          %2918 = sbr.rel (%p2916) target = $region68
        $region67: #{tpu_custom_call.1} parent=39 // pred_region
          %s2920 = ssub.s32 128, 128
          %2921 = vsyncadd %s2898, %s2920
          %s2922 = smul.addr %s30, 128
          %s2923 = scalar_lea.hbm %s6, %s2922
          %s2925 = sshll.u32 %s2901, 4
          %s2926 = int_to_ptr.vmem [resolvable:$true] %s2925
          %2928 = dma.vmem_to_hbm [thread:$0]  %s2926, 128, %s2923, %s2898
        $region68: #{tpu_custom_call.1} parent=39 // pred_fallthru
          _
      $region40: #{tpu_custom_call.1} parent=5 // pred_fallthru
        _
      %p2929 = scmp.le.s32.totalorder 2, %s25
      // Predicated region
      $region69: #{tpu_custom_call.1} parent=5 // pred_check
        %p2930 = pneg %p2929
      $region70: #{tpu_custom_call.1} parent=5 // pred_check_branch
        %2932 = sbr.rel (%p2930) target = $region72
      $region71: #{tpu_custom_call.1} parent=5 // pred_region
        %s2933 = ssub.s32 %s25, 2
        // Predicated region
        $region73: #{tpu_custom_call.1} parent=71 // pred_check
          %p2934 = pneg %p164
        $region74: #{tpu_custom_call.1} parent=71 // pred_check_branch
          %2936 = sbr.rel (%p2934) target = $region76
        $region75: #{tpu_custom_call.1} parent=71 // pred_region
          %s2937 = sand.u32 %s149, 1
          %s2938 = scalar_lea.sflag [#allocation4], %s2937
          %s2939 = sand.u32 %s149, 1
          %s2940 = smul.addr %s2939, 16
          %s2941 = scalar_lea.vmem [#allocation12], %s2940
          %2942 = dma.done %s2938, 256
        $region76: #{tpu_custom_call.1} parent=71 // pred_fallthru
          _
        // Predicated region
        $region77: #{tpu_custom_call.1} parent=71 // pred_check
          %p2943 = pneg %p190
        $region78: #{tpu_custom_call.1} parent=71 // pred_check_branch
          %2945 = sbr.rel (%p2943) target = $region80
        $region79: #{tpu_custom_call.1} parent=71 // pred_region
          %s2946 = sand.u32 %s175, 1
          %s2947 = scalar_lea.sflag [#allocation14], %s2946
          %s2948 = sand.u32 %s175, 1
          %s2949 = smul.addr %s2948, 8
          %s2950 = scalar_lea.vmem [#allocation13], %s2949
          %2951 = dma.done %s2947, 128
        $region80: #{tpu_custom_call.1} parent=71 // pred_fallthru
          _
      $region72: #{tpu_custom_call.1} parent=5 // pred_fallthru
        _
    $region6: #{tpu_custom_call.1} parent=1 // loop_footer
      %s29 = sadd.s32 1, %s25
    $region7: #{tpu_custom_call.1} parent=1 // loop_footer_branch
      %24 = sbr.rel target = $region3
    $region8: #{tpu_custom_call.1} parent=1 // loop_exit
      _
    %2952 = vsyncpa [#allocation3], 1
    %s2953 = scalar_lea.sflag [#allocation3], 1
    %2954 = vsyncpa %s2953, 1
    %2955 = vsyncpa [#allocation8], 1
    %2956 = vsyncpa [#allocation11], 1
    %2957 = vsyncpa [#allocation4], 1
    %s2958 = scalar_lea.sflag [#allocation4], 1
    %2959 = vsyncpa %s2958, 1
    %2960 = vsyncpa [#allocation14], 1
    %s2961 = scalar_lea.sflag [#allocation14], 1
    %2962 = vsyncpa %s2961, 1
    %2963 = vsyncpa [#allocation5], 1
    %s2964 = scalar_lea.sflag [#allocation5], 1
    %2965 = vsyncpa %s2964, 1

</llo_original>
